<compile_context>
chip_gen: v7x
topology: tpu7x:2x2x1
jax: 0.10.0
libtpu: 0.0.40
codegen_flags: <defaults>
</compile_context>

<pallas_src>
import functools

import jax
import jax.numpy as jnp
from jax.experimental import pallas as pl
from jax.experimental.pallas import tpu as pltpu


def _round_up(x, m):
    return (x + m - 1) // m * m


def _vmem_limit_bytes():
    # Half of physical VMEM: 64 MiB on v5e/v6e (128 MiB), 32 MiB on v7x (64 MiB).
    try:
        cap = pltpu.get_tpu_info().vmem_capacity_bytes
    except Exception:
        cap = 64 * 1024 * 1024          # conservative fallback -> 32 MiB limit
    return int(min(cap // 2, 96 * 1024 * 1024))


# ---------------------------------------------------------------------------
# Kernel 2: fused BatchNorm (precomputed per-channel scale/shift) + ReLU
# ---------------------------------------------------------------------------
def _bn_relu_kernel(y_ref, scale_ref, shift_ref, o_ref):
    y = y_ref[...] * scale_ref[...] + shift_ref[...]
    o_ref[...] = jnp.maximum(y, 0.0).astype(o_ref.dtype)


# ---------------------------------------------------------------------------
# Wrapper
# ---------------------------------------------------------------------------
def dorefa_conv_bn_relu(x, weight, bias, gamma, beta, *, stride=1, padding=1,
                        eps=1e-4):
    """Forward pass of DorefaConvBNReLU (w_bit=1, a_bit=32, groups=1,
    dilation=1, training-mode BatchNorm).  x: NCHW, weight: OIHW -> NCHW out."""
    N, C, H, W = x.shape
    O, Cin, K, K2 = weight.shape
    assert C == Cin and K == K2

    x = x.astype(jnp.float32)
    weight = weight.astype(jnp.float32)
    gamma = gamma.astype(jnp.float32)
    beta = beta.astype(jnp.float32)
    # Conv bias followed by training-mode BatchNorm cancels exactly (the
    # per-channel batch mean subtracts it), so it never enters the compute.
    del bias

    # --- activation quantization: a_bit == 32 -> identity -------------------

    # --- DoReFa w_bit == 1: feed +/-1 signs, fold E into the BN scale -------
    E = jnp.mean(jnp.abs(weight))                       # scalar (no division!)
    w_sign = jnp.sign(weight)                           # (O, C, K, K), exact

    OH = (H + 2 * padding - K) // stride + 1
    OW = (W + 2 * padding - K) // stride + 1
    H_pad, W_pad = H + 2 * padding, W + 2 * padding
    M = N * OH * OW
    O_pad = _round_up(O, 128)                           # lane-dense channels

    # Padded NHWC activations (single XLA transpose+pad pass; no im2col).
    xp = jnp.pad(jnp.transpose(x, (0, 2, 3, 1)),
                 ((0, 0), (padding, padding), (padding, padding), (0, 0)))

    # Weights as (K, K, C, O_pad) bf16 signs (+/-1 exact in bf16, 0 in padding).
    w4 = jnp.transpose(w_sign, (2, 3, 1, 0))            # (K, K, C, O)
    w4 = jnp.pad(w4, ((0, 0), (0, 0), (0, 0), (0, O_pad - O)))
    w4 = w4.astype(jnp.bfloat16)

    # --- block sizes ---------------------------------------------------------
    # nb whole images per block so the flat (M, O_pad) output tiles exactly.
    nb = N
    for cand in range(1, N + 1):
        if N % cand == 0 and ((cand * OH * OW) % 8 == 0 or cand == N):
            nb = cand
            break

    tn = 128
    for cand in (512, 256):
        if O_pad % cand == 0:
            tn = cand
            break
    # Keep at least two parallel blocks so both v7x TensorCores get work.
    while tn > 128 and (N // nb) * (O_pad // tn) < 2:
        tn //= 2

    vmem_budget = _vmem_limit_bytes()
    MB = nb * OH * OW
    x_block_bytes = nb * H_pad * _round_up(W_pad, 8) * _round_up(C, 128) * 4
    while tn > 128 and (3 * MB * tn * 4 + 2 * x_block_bytes) > vmem_budget:
        tn //= 2

    # Grow the batch block when the spatial extent is tiny (amortize the
    # ~0.35us/grid-step overhead) without starving the parallel grid.
    while (MB < 256 and nb * 2 <= N and N % (nb * 2) == 0
           and ((nb * 2) * OH * OW) % 8 == 0
           and (N // (nb * 2)) * (O_pad // tn) >= 2):
        nb *= 2
        MB = nb * OH * OW

    num_b = N // nb
    grid = (num_b, O_pad // tn)

    # -----------------------------------------------------------------------
    # Kernel 1: conv (kh/kw shifts folded in) + fused partial BN statistics
    # -----------------------------------------------------------------------
    def conv_stats_kernel(x_ref, w_ref, o_ref, s1_ref, s2_ref):
        # x_ref : (nb, H_pad, W_pad, C)   f32
        # w_ref : (K, K, C, tn)           bf16 (+/-1 signs)
        # o_ref : (MB, tn)                f32   sign-conv output z
        # s1/s2 : (1, 1, tn)              f32   per-block sum(z), sum(z^2)
        acc = jnp.zeros((MB, tn), jnp.float32)
        for kh in range(K):
            for kw in range(K):
                if stride == 1:
                    patch = x_ref[:, kh:kh + OH, kw:kw + OW, :]
                else:
                    # TODO(synk): strided-slice path is functional but untuned.
                    patch = x_ref[:, pl.ds(kh, OH, stride),
                                  pl.ds(kw, OW, stride), :]
                w = w_ref[kh, kw].astype(jnp.float32)          # (C, tn)
                acc = acc + jnp.dot(patch.reshape(MB, C), w,
                                    preferred_element_type=jnp.float32)
        o_ref[...] = acc
        s1_ref[...] = jnp.sum(acc, axis=0, keepdims=True)[None]
        s2_ref[...] = jnp.sum(acc * acc, axis=0, keepdims=True)[None]

    conv_flat, s1, s2 = pl.pallas_call(
        conv_stats_kernel,
        out_shape=(
            jax.ShapeDtypeStruct((M, O_pad), jnp.float32),
            jax.ShapeDtypeStruct((num_b, 1, O_pad), jnp.float32),
            jax.ShapeDtypeStruct((num_b, 1, O_pad), jnp.float32),
        ),
        grid_spec=pltpu.PrefetchScalarGridSpec(
            num_scalar_prefetch=0,
            grid=grid,
            in_specs=[
                pl.BlockSpec((nb, H_pad, W_pad, C), lambda b, j: (b, 0, 0, 0)),
                pl.BlockSpec((K, K, C, tn), lambda b, j: (0, 0, 0, j)),
            ],
            out_specs=(
                pl.BlockSpec((MB, tn), lambda b, j: (b, j)),
                pl.BlockSpec((1, 1, tn), lambda b, j: (b, 0, j)),
                pl.BlockSpec((1, 1, tn), lambda b, j: (b, 0, j)),
            ),
        ),
        compiler_params=pltpu.CompilerParams(
            dimension_semantics=("parallel", "parallel"),
            vmem_limit_bytes=vmem_budget,
        ),
        cost_estimate=pl.CostEstimate(
            flops=2 * M * K * K * C * O_pad,
            transcendentals=0,
            bytes_accessed=(4 * N * H_pad * W_pad * C * (O_pad // tn)
                            + 2 * K * K * C * O_pad * num_b
                            + 4 * M * O_pad),
        ),
    )(xp, w4)

    # --- finish BN statistics (tiny (num_b, O) reduction in JAX) -------------
    # y = E * z (+ bias, which cancels);  mean_y = E*mean_z;  var_y = E^2*var_z.
    S1 = jnp.sum(s1[:, 0, :O], axis=0)
    S2 = jnp.sum(s2[:, 0, :O], axis=0)
    mean_z = S1 / M
    var_z = jnp.maximum(S2 / M - mean_z * mean_z, 0.0)
    inv = gamma / jnp.sqrt(E * E * var_z + eps)
    scale_z = E * inv                      # multiplies the sign-conv output z
    shift = beta - scale_z * mean_z
    scale_p = jnp.pad(scale_z, (0, O_pad - O)).reshape(1, O_pad)
    shift_p = jnp.pad(shift, (0, O_pad - O)).reshape(1, O_pad)

    # --- fused scale/shift + ReLU, in place over the lane-dense slab ---------
    out_flat = pl.pallas_call(
        _bn_relu_kernel,
        out_shape=jax.ShapeDtypeStruct((M, O_pad), jnp.float32),
        grid_spec=pltpu.PrefetchScalarGridSpec(
            num_scalar_prefetch=0,
            grid=grid,
            in_specs=[
                pl.BlockSpec((MB, tn), lambda b, j: (b, j)),
                pl.BlockSpec((1, tn), lambda b, j: (0, j)),
                pl.BlockSpec((1, tn), lambda b, j: (0, j)),
            ],
            out_specs=pl.BlockSpec((MB, tn), lambda b, j: (b, j)),
        ),
        compiler_params=pltpu.CompilerParams(
            dimension_semantics=("parallel", "parallel"),
            vmem_limit_bytes=vmem_budget,
        ),
        input_output_aliases={0: 0},       # reuse the conv buffer in place
    )(conv_flat, scale_p, shift_p)

    # [M, O] -> [N, OH, OW, O] -> NCHW (PyTorch module contract).
    return jnp.transpose(out_flat[:, :O].reshape(N, OH, OW, O), (0, 3, 1, 2))


# ---------------------------------------------------------------------------
# Pure-JAX reference (for self-check)
# ---------------------------------------------------------------------------
def _reference_forward(x, weight, bias, gamma, beta, stride, padding, eps=1e-4):
    E = jnp.mean(jnp.abs(weight))
    w_q = jnp.sign(weight / E) * E
    y = jax.lax.conv_general_dilated(
        x, w_q, window_strides=(stride, stride),
        padding=((padding, padding), (padding, padding)),
        dimension_numbers=("NCHW", "OIHW", "NCHW"))
    y = y + bias[None, :, None, None]
    mean = jnp.mean(y, axis=(0, 2, 3), keepdims=True)
    var = jnp.mean(jnp.square(y - mean), axis=(0, 2, 3), keepdims=True)
    y = (y - mean) / jnp.sqrt(var + eps)
    y = y * gamma[None, :, None, None] + beta[None, :, None, None]
    return jnp.maximum(y, 0.0)


if __name__ == "__main__":
    key = jax.random.PRNGKey(0)
    k_x, k_w, k_b = jax.random.split(key, 3)

    # Small shapes consistent with the module: N=2, C_in=4, H=W=16, C_out=8, K=3.
    N, C_in, H, W = 2, 4, 16, 16
    C_out, K = 8, 3
    stride, padding = 1, 1

    x = jax.random.normal(k_x, (N, C_in, H, W), dtype=jnp.float32)
    weight = 0.05 * jax.random.normal(k_w, (C_out, C_in, K, K), dtype=jnp.float32)
    bias = 0.1 * jax.random.normal(k_b, (C_out,), dtype=jnp.float32)
    gamma = jnp.ones((C_out,), dtype=jnp.float32)   # BN affine weight
    beta = jnp.zeros((C_out,), dtype=jnp.float32)   # BN affine bias

    fwd = jax.jit(functools.partial(dorefa_conv_bn_relu,
                                    stride=stride, padding=padding))
    out = fwd(x, weight, bias, gamma, beta)
    jax.block_until_ready(out)
    assert out.shape == (N, C_out, H, W)
    assert bool(jnp.all(out >= 0.0))

    ref = _reference_forward(x, weight, bias, gamma, beta, stride, padding)
    max_err = float(jnp.max(jnp.abs(out - ref)))
    assert max_err < 5e-2, f"max abs error vs reference: {max_err}"

    print("KERNEL_OK")
</pallas_src>

<mosaic_0001>
module attributes {stable_mosaic.version = 11 : i64} {
  func.func @conv_stats_kernel(%arg0: i32, %arg1: i32, %arg2: memref<1x18x18x4xf32, #tpu.memory_space<vmem>>, %arg3: memref<3x3x4x128xbf16, #tpu.memory_space<vmem>>, %arg4: memref<256x128xf32, #tpu.memory_space<vmem>>, %arg5: memref<1x1x128xf32, #tpu.memory_space<vmem>>, %arg6: memref<1x1x128xf32, #tpu.memory_space<vmem>>) attributes {dimension_semantics = [#tpu.dimension_semantics<parallel>, #tpu.dimension_semantics<parallel>], iteration_bounds = array<i64: 2, 1>, scalar_prefetch = 0 : i64, scratch_operands = 0 : i64, tpu.core_type = #tpu.core_type<tc>, window_params = [{transform_indices = @transform_0, window_bounds = array<i64: 1, 18, 18, 4>}, {transform_indices = @transform_1, window_bounds = array<i64: 3, 3, 4, 128>}, {transform_indices = @transform_2, window_bounds = array<i64: 256, 128>}, {transform_indices = @transform_3, window_bounds = array<i64: 1, 1, 128>}, {transform_indices = @transform_4, window_bounds = array<i64: 1, 1, 128>}]} {
    %cst = arith.constant 0.000000e+00 : f32
    %0 = vector.broadcast %cst : f32 to vector<256x128xf32>
    %c0 = arith.constant 0 : index
    %c0_0 = arith.constant 0 : index
    %c0_1 = arith.constant 0 : index
    %c0_2 = arith.constant 0 : index
    %1 = vector.load %arg2[%c0, %c0_0, %c0_1, %c0_2] : memref<1x18x18x4xf32, #tpu.memory_space<vmem>>, vector<1x16x16x4xf32>
    %c0_3 = arith.constant 0 : index
    %c0_4 = arith.constant 0 : index
    %c0_5 = arith.constant 0 : index
    %c0_6 = arith.constant 0 : index
    %2 = vector.load %arg3[%c0_3, %c0_4, %c0_5, %c0_6] : memref<3x3x4x128xbf16, #tpu.memory_space<vmem>>, vector<1x1x4x128xbf16>
    %3 = vector.shape_cast %2 : vector<1x1x4x128xbf16> to vector<4x128xbf16>
    %4 = arith.extf %3 : vector<4x128xbf16> to vector<4x128xf32>
    %5 = vector.shape_cast %1 : vector<1x16x16x4xf32> to vector<256x4xf32>
    %cst_7 = arith.constant dense<0.000000e+00> : vector<256x128xf32>
    %6 = tpu.matmul %5, %4, %cst_7 {dimension_numbers = #tpu.dot_dimension_numbers<[1], [0], [0], [1], [0, 0, 1, 1], [], []>} : vector<256x4xf32>, vector<4x128xf32>, vector<256x128xf32> -> vector<256x128xf32>
    %7 = arith.addf %0, %6 : vector<256x128xf32>
    %c0_8 = arith.constant 0 : index
    %c0_9 = arith.constant 0 : index
    %c1 = arith.constant 1 : index
    %c0_10 = arith.constant 0 : index
    %8 = vector.load %arg2[%c0_8, %c0_9, %c1, %c0_10] : memref<1x18x18x4xf32, #tpu.memory_space<vmem>>, vector<1x16x16x4xf32>
    %c0_11 = arith.constant 0 : index
    %c1_12 = arith.constant 1 : index
    %c0_13 = arith.constant 0 : index
    %c0_14 = arith.constant 0 : index
    %9 = vector.load %arg3[%c0_11, %c1_12, %c0_13, %c0_14] : memref<3x3x4x128xbf16, #tpu.memory_space<vmem>>, vector<1x1x4x128xbf16>
    %10 = vector.shape_cast %9 : vector<1x1x4x128xbf16> to vector<4x128xbf16>
    %11 = arith.extf %10 : vector<4x128xbf16> to vector<4x128xf32>
    %12 = vector.shape_cast %8 : vector<1x16x16x4xf32> to vector<256x4xf32>
    %cst_15 = arith.constant dense<0.000000e+00> : vector<256x128xf32>
    %13 = tpu.matmul %12, %11, %cst_15 {dimension_numbers = #tpu.dot_dimension_numbers<[1], [0], [0], [1], [0, 0, 1, 1], [], []>} : vector<256x4xf32>, vector<4x128xf32>, vector<256x128xf32> -> vector<256x128xf32>
    %14 = arith.addf %7, %13 : vector<256x128xf32>
    %c0_16 = arith.constant 0 : index
    %c0_17 = arith.constant 0 : index
    %c2 = arith.constant 2 : index
    %c0_18 = arith.constant 0 : index
    %15 = vector.load %arg2[%c0_16, %c0_17, %c2, %c0_18] : memref<1x18x18x4xf32, #tpu.memory_space<vmem>>, vector<1x16x16x4xf32>
    %c0_19 = arith.constant 0 : index
    %c2_20 = arith.constant 2 : index
    %c0_21 = arith.constant 0 : index
    %c0_22 = arith.constant 0 : index
    %16 = vector.load %arg3[%c0_19, %c2_20, %c0_21, %c0_22] : memref<3x3x4x128xbf16, #tpu.memory_space<vmem>>, vector<1x1x4x128xbf16>
    %17 = vector.shape_cast %16 : vector<1x1x4x128xbf16> to vector<4x128xbf16>
    %18 = arith.extf %17 : vector<4x128xbf16> to vector<4x128xf32>
    %19 = vector.shape_cast %15 : vector<1x16x16x4xf32> to vector<256x4xf32>
    %cst_23 = arith.constant dense<0.000000e+00> : vector<256x128xf32>
    %20 = tpu.matmul %19, %18, %cst_23 {dimension_numbers = #tpu.dot_dimension_numbers<[1], [0], [0], [1], [0, 0, 1, 1], [], []>} : vector<256x4xf32>, vector<4x128xf32>, vector<256x128xf32> -> vector<256x128xf32>
    %21 = arith.addf %14, %20 : vector<256x128xf32>
    %c0_24 = arith.constant 0 : index
    %c1_25 = arith.constant 1 : index
    %c0_26 = arith.constant 0 : index
    %c0_27 = arith.constant 0 : index
    %22 = vector.load %arg2[%c0_24, %c1_25, %c0_26, %c0_27] : memref<1x18x18x4xf32, #tpu.memory_space<vmem>>, vector<1x16x16x4xf32>
    %c1_28 = arith.constant 1 : index
    %c0_29 = arith.constant 0 : index
    %c0_30 = arith.constant 0 : index
    %c0_31 = arith.constant 0 : index
    %23 = vector.load %arg3[%c1_28, %c0_29, %c0_30, %c0_31] : memref<3x3x4x128xbf16, #tpu.memory_space<vmem>>, vector<1x1x4x128xbf16>
    %24 = vector.shape_cast %23 : vector<1x1x4x128xbf16> to vector<4x128xbf16>
    %25 = arith.extf %24 : vector<4x128xbf16> to vector<4x128xf32>
    %26 = vector.shape_cast %22 : vector<1x16x16x4xf32> to vector<256x4xf32>
    %cst_32 = arith.constant dense<0.000000e+00> : vector<256x128xf32>
    %27 = tpu.matmul %26, %25, %cst_32 {dimension_numbers = #tpu.dot_dimension_numbers<[1], [0], [0], [1], [0, 0, 1, 1], [], []>} : vector<256x4xf32>, vector<4x128xf32>, vector<256x128xf32> -> vector<256x128xf32>
    %28 = arith.addf %21, %27 : vector<256x128xf32>
    %c0_33 = arith.constant 0 : index
    %c1_34 = arith.constant 1 : index
    %c1_35 = arith.constant 1 : index
    %c0_36 = arith.constant 0 : index
    %29 = vector.load %arg2[%c0_33, %c1_34, %c1_35, %c0_36] : memref<1x18x18x4xf32, #tpu.memory_space<vmem>>, vector<1x16x16x4xf32>
    %c1_37 = arith.constant 1 : index
    %c1_38 = arith.constant 1 : index
    %c0_39 = arith.constant 0 : index
    %c0_40 = arith.constant 0 : index
    %30 = vector.load %arg3[%c1_37, %c1_38, %c0_39, %c0_40] : memref<3x3x4x128xbf16, #tpu.memory_space<vmem>>, vector<1x1x4x128xbf16>
    %31 = vector.shape_cast %30 : vector<1x1x4x128xbf16> to vector<4x128xbf16>
    %32 = arith.extf %31 : vector<4x128xbf16> to vector<4x128xf32>
    %33 = vector.shape_cast %29 : vector<1x16x16x4xf32> to vector<256x4xf32>
    %cst_41 = arith.constant dense<0.000000e+00> : vector<256x128xf32>
    %34 = tpu.matmul %33, %32, %cst_41 {dimension_numbers = #tpu.dot_dimension_numbers<[1], [0], [0], [1], [0, 0, 1, 1], [], []>} : vector<256x4xf32>, vector<4x128xf32>, vector<256x128xf32> -> vector<256x128xf32>
    %35 = arith.addf %28, %34 : vector<256x128xf32>
    %c0_42 = arith.constant 0 : index
    %c1_43 = arith.constant 1 : index
    %c2_44 = arith.constant 2 : index
    %c0_45 = arith.constant 0 : index
    %36 = vector.load %arg2[%c0_42, %c1_43, %c2_44, %c0_45] : memref<1x18x18x4xf32, #tpu.memory_space<vmem>>, vector<1x16x16x4xf32>
    %c1_46 = arith.constant 1 : index
    %c2_47 = arith.constant 2 : index
    %c0_48 = arith.constant 0 : index
    %c0_49 = arith.constant 0 : index
    %37 = vector.load %arg3[%c1_46, %c2_47, %c0_48, %c0_49] : memref<3x3x4x128xbf16, #tpu.memory_space<vmem>>, vector<1x1x4x128xbf16>
    %38 = vector.shape_cast %37 : vector<1x1x4x128xbf16> to vector<4x128xbf16>
    %39 = arith.extf %38 : vector<4x128xbf16> to vector<4x128xf32>
    %40 = vector.shape_cast %36 : vector<1x16x16x4xf32> to vector<256x4xf32>
    %cst_50 = arith.constant dense<0.000000e+00> : vector<256x128xf32>
    %41 = tpu.matmul %40, %39, %cst_50 {dimension_numbers = #tpu.dot_dimension_numbers<[1], [0], [0], [1], [0, 0, 1, 1], [], []>} : vector<256x4xf32>, vector<4x128xf32>, vector<256x128xf32> -> vector<256x128xf32>
    %42 = arith.addf %35, %41 : vector<256x128xf32>
    %c0_51 = arith.constant 0 : index
    %c2_52 = arith.constant 2 : index
    %c0_53 = arith.constant 0 : index
    %c0_54 = arith.constant 0 : index
    %43 = vector.load %arg2[%c0_51, %c2_52, %c0_53, %c0_54] : memref<1x18x18x4xf32, #tpu.memory_space<vmem>>, vector<1x16x16x4xf32>
    %c2_55 = arith.constant 2 : index
    %c0_56 = arith.constant 0 : index
    %c0_57 = arith.constant 0 : index
    %c0_58 = arith.constant 0 : index
    %44 = vector.load %arg3[%c2_55, %c0_56, %c0_57, %c0_58] : memref<3x3x4x128xbf16, #tpu.memory_space<vmem>>, vector<1x1x4x128xbf16>
    %45 = vector.shape_cast %44 : vector<1x1x4x128xbf16> to vector<4x128xbf16>
    %46 = arith.extf %45 : vector<4x128xbf16> to vector<4x128xf32>
    %47 = vector.shape_cast %43 : vector<1x16x16x4xf32> to vector<256x4xf32>
    %cst_59 = arith.constant dense<0.000000e+00> : vector<256x128xf32>
    %48 = tpu.matmul %47, %46, %cst_59 {dimension_numbers = #tpu.dot_dimension_numbers<[1], [0], [0], [1], [0, 0, 1, 1], [], []>} : vector<256x4xf32>, vector<4x128xf32>, vector<256x128xf32> -> vector<256x128xf32>
    %49 = arith.addf %42, %48 : vector<256x128xf32>
    %c0_60 = arith.constant 0 : index
    %c2_61 = arith.constant 2 : index
    %c1_62 = arith.constant 1 : index
    %c0_63 = arith.constant 0 : index
    %50 = vector.load %arg2[%c0_60, %c2_61, %c1_62, %c0_63] : memref<1x18x18x4xf32, #tpu.memory_space<vmem>>, vector<1x16x16x4xf32>
    %c2_64 = arith.constant 2 : index
    %c1_65 = arith.constant 1 : index
    %c0_66 = arith.constant 0 : index
    %c0_67 = arith.constant 0 : index
    %51 = vector.load %arg3[%c2_64, %c1_65, %c0_66, %c0_67] : memref<3x3x4x128xbf16, #tpu.memory_space<vmem>>, vector<1x1x4x128xbf16>
    %52 = vector.shape_cast %51 : vector<1x1x4x128xbf16> to vector<4x128xbf16>
    %53 = arith.extf %52 : vector<4x128xbf16> to vector<4x128xf32>
    %54 = vector.shape_cast %50 : vector<1x16x16x4xf32> to vector<256x4xf32>
    %cst_68 = arith.constant dense<0.000000e+00> : vector<256x128xf32>
    %55 = tpu.matmul %54, %53, %cst_68 {dimension_numbers = #tpu.dot_dimension_numbers<[1], [0], [0], [1], [0, 0, 1, 1], [], []>} : vector<256x4xf32>, vector<4x128xf32>, vector<256x128xf32> -> vector<256x128xf32>
    %56 = arith.addf %49, %55 : vector<256x128xf32>
    %c0_69 = arith.constant 0 : index
    %c2_70 = arith.constant 2 : index
    %c2_71 = arith.constant 2 : index
    %c0_72 = arith.constant 0 : index
    %57 = vector.load %arg2[%c0_69, %c2_70, %c2_71, %c0_72] : memref<1x18x18x4xf32, #tpu.memory_space<vmem>>, vector<1x16x16x4xf32>
    %c2_73 = arith.constant 2 : index
    %c2_74 = arith.constant 2 : index
    %c0_75 = arith.constant 0 : index
    %c0_76 = arith.constant 0 : index
    %58 = vector.load %arg3[%c2_73, %c2_74, %c0_75, %c0_76] : memref<3x3x4x128xbf16, #tpu.memory_space<vmem>>, vector<1x1x4x128xbf16>
    %59 = vector.shape_cast %58 : vector<1x1x4x128xbf16> to vector<4x128xbf16>
    %60 = arith.extf %59 : vector<4x128xbf16> to vector<4x128xf32>
    %61 = vector.shape_cast %57 : vector<1x16x16x4xf32> to vector<256x4xf32>
    %cst_77 = arith.constant dense<0.000000e+00> : vector<256x128xf32>
    %62 = tpu.matmul %61, %60, %cst_77 {dimension_numbers = #tpu.dot_dimension_numbers<[1], [0], [0], [1], [0, 0, 1, 1], [], []>} : vector<256x4xf32>, vector<4x128xf32>, vector<256x128xf32> -> vector<256x128xf32>
    %63 = arith.addf %56, %62 : vector<256x128xf32>
    %c0_78 = arith.constant 0 : index
    %c0_79 = arith.constant 0 : index
    %64 = vector.load %arg4[%c0_78, %c0_79] : memref<256x128xf32, #tpu.memory_space<vmem>>, vector<256x128xf32>
    tpu.vector_store %arg4[%c0_78, %c0_79], %63 {strides = array<i32>} : memref<256x128xf32, #tpu.memory_space<vmem>>, vector<256x128xf32>,
    %cst_80 = arith.constant dense<0.000000e+00> : vector<128xf32>
    %65 = vector.multi_reduction <add>, %63, %cst_80 [0] : vector<256x128xf32> to vector<128xf32>
    %66 = vector.shape_cast %65 : vector<128xf32> to vector<1x128xf32>
    %67 = vector.shape_cast %66 : vector<1x128xf32> to vector<1x1x128xf32>
    %c0_81 = arith.constant 0 : index
    %c0_82 = arith.constant 0 : index
    %c0_83 = arith.constant 0 : index
    %68 = vector.load %arg5[%c0_81, %c0_82, %c0_83] : memref<1x1x128xf32, #tpu.memory_space<vmem>>, vector<1x1x128xf32>
    tpu.vector_store %arg5[%c0_81, %c0_82, %c0_83], %67 {strides = array<i32>} : memref<1x1x128xf32, #tpu.memory_space<vmem>>, vector<1x1x128xf32>,
    %69 = arith.mulf %63, %63 : vector<256x128xf32>
    %cst_84 = arith.constant dense<0.000000e+00> : vector<128xf32>
    %70 = vector.multi_reduction <add>, %69, %cst_84 [0] : vector<256x128xf32> to vector<128xf32>
    %71 = vector.shape_cast %70 : vector<128xf32> to vector<1x128xf32>
    %72 = vector.shape_cast %71 : vector<1x128xf32> to vector<1x1x128xf32>
    %c0_85 = arith.constant 0 : index
    %c0_86 = arith.constant 0 : index
    %c0_87 = arith.constant 0 : index
    %73 = vector.load %arg6[%c0_85, %c0_86, %c0_87] : memref<1x1x128xf32, #tpu.memory_space<vmem>>, vector<1x1x128xf32>
    tpu.vector_store %arg6[%c0_85, %c0_86, %c0_87], %72 {strides = array<i32>} : memref<1x1x128xf32, #tpu.memory_space<vmem>>, vector<1x1x128xf32>,
    return
  }
  func.func @transform_0(%arg0: i32, %arg1: i32) -> (i32, i32, i32, i32) {
    %c0_i32 = arith.constant 0 : i32
    %c0_i32_0 = arith.constant 0 : i32
    %c0_i32_1 = arith.constant 0 : i32
    %c0_i32_2 = arith.constant 0 : i32
    return %arg0, %c0_i32, %c0_i32_0, %c0_i32_1 : i32, i32, i32, i32
  }
  func.func @transform_1(%arg0: i32, %arg1: i32) -> (i32, i32, i32, i32) {
    %c0_i32 = arith.constant 0 : i32
    %c0_i32_0 = arith.constant 0 : i32
    %c0_i32_1 = arith.constant 0 : i32
    %c0_i32_2 = arith.constant 0 : i32
    return %c0_i32, %c0_i32_0, %c0_i32_1, %arg1 : i32, i32, i32, i32
  }
  func.func @transform_2(%arg0: i32, %arg1: i32) -> (i32, i32) {
    %c0_i32 = arith.constant 0 : i32
    return %arg0, %arg1 : i32, i32
  }
  func.func @transform_3(%arg0: i32, %arg1: i32) -> (i32, i32, i32) {
    %c0_i32 = arith.constant 0 : i32
    %c0_i32_0 = arith.constant 0 : i32
    return %arg0, %c0_i32, %arg1 : i32, i32, i32
  }
  func.func @transform_4(%arg0: i32, %arg1: i32) -> (i32, i32, i32) {
    %c0_i32 = arith.constant 0 : i32
    %c0_i32_0 = arith.constant 0 : i32
    return %arg0, %c0_i32, %arg1 : i32, i32, i32
  }
}

module attributes {stable_mosaic.version = 11 : i64} {
  func.func @_bn_relu_kernel(%arg0: i32, %arg1: i32, %arg2: memref<256x128xf32, #tpu.memory_space<vmem>>, %arg3: memref<1x128xf32, #tpu.memory_space<vmem>>, %arg4: memref<1x128xf32, #tpu.memory_space<vmem>>, %arg5: memref<256x128xf32, #tpu.memory_space<vmem>>) attributes {dimension_semantics = [#tpu.dimension_semantics<parallel>, #tpu.dimension_semantics<parallel>], iteration_bounds = array<i64: 2, 1>, scalar_prefetch = 0 : i64, scratch_operands = 0 : i64, tpu.core_type = #tpu.core_type<tc>, window_params = [{transform_indices = @transform_0, window_bounds = array<i64: 256, 128>}, {transform_indices = @transform_1, window_bounds = array<i64: 1, 128>}, {transform_indices = @transform_2, window_bounds = array<i64: 1, 128>}, {transform_indices = @transform_3, window_bounds = array<i64: 256, 128>}]} {
    %c0 = arith.constant 0 : index
    %c0_0 = arith.constant 0 : index
    %0 = vector.load %arg2[%c0, %c0_0] : memref<256x128xf32, #tpu.memory_space<vmem>>, vector<256x128xf32>
    %c0_1 = arith.constant 0 : index
    %c0_2 = arith.constant 0 : index
    %1 = vector.load %arg3[%c0_1, %c0_2] : memref<1x128xf32, #tpu.memory_space<vmem>>, vector<1x128xf32>
    %2 = vector.broadcast %1 : vector<1x128xf32> to vector<256x128xf32>
    %3 = arith.mulf %0, %2 : vector<256x128xf32>
    %c0_3 = arith.constant 0 : index
    %c0_4 = arith.constant 0 : index
    %4 = vector.load %arg4[%c0_3, %c0_4] : memref<1x128xf32, #tpu.memory_space<vmem>>, vector<1x128xf32>
    %5 = vector.broadcast %4 : vector<1x128xf32> to vector<256x128xf32>
    %6 = arith.addf %3, %5 : vector<256x128xf32>
    %cst = arith.constant 0.000000e+00 : f32
    %7 = vector.broadcast %cst : f32 to vector<256x128xf32>
    %8 = arith.maximumf %6, %7 : vector<256x128xf32>
    %c0_5 = arith.constant 0 : index
    %c0_6 = arith.constant 0 : index
    %9 = vector.load %arg5[%c0_5, %c0_6] : memref<256x128xf32, #tpu.memory_space<vmem>>, vector<256x128xf32>
    tpu.vector_store %arg5[%c0_5, %c0_6], %8 {strides = array<i32>} : memref<256x128xf32, #tpu.memory_space<vmem>>, vector<256x128xf32>,
    return
  }
  func.func @transform_0(%arg0: i32, %arg1: i32) -> (i32, i32) {
    %c0_i32 = arith.constant 0 : i32
    return %arg0, %arg1 : i32, i32
  }
  func.func @transform_1(%arg0: i32, %arg1: i32) -> (i32, i32) {
    %c0_i32 = arith.constant 0 : i32
    %c0_i32_0 = arith.constant 0 : i32
    return %c0_i32, %arg1 : i32, i32
  }
  func.func @transform_2(%arg0: i32, %arg1: i32) -> (i32, i32) {
    %c0_i32 = arith.constant 0 : i32
    %c0_i32_0 = arith.constant 0 : i32
    return %c0_i32, %arg1 : i32, i32
  }
  func.func @transform_3(%arg0: i32, %arg1: i32) -> (i32, i32) {
    %c0_i32 = arith.constant 0 : i32
    return %arg0, %arg1 : i32, i32
  }
}

</mosaic_0001>

<llo_original>
// kernel: dorefa_conv_bn_relu.3
$region0: #{dorefa_conv_bn_relu.3}
  #allocation0 [shape = 'u32[]', space=smem, size = 0x4, offset = 0x4, fixed_abs, tag = 'smem constant byte address 0x4 - core index']
  #allocation1 [shape = 'u32[144,128]{1,0:T(1,128)}', space=vmem, size = 0x12000, scoped, tag = 'internal scratch']
  %s0 = inlined_call_operand.vmem [shape: f32[512,128], index: 0, kind: input, shape index: {}, may-alias: {0,3}]
  %s1 = inlined_call_operand.vmem [shape: f32[1,128], index: 1, kind: input, shape index: {}]
  %s2 = inlined_call_operand.vmem [shape: f32[1,128], index: 2, kind: input, shape index: {}]
  %s3 = inlined_call_operand.vmem [shape: f32[512,128], index: 3, kind: output, shape index: {}, may-alias: {0,3}]
  %s4 = sld [smem:[#allocation0]]
  $region45: #{dorefa_conv_bn_relu.3} parent=0
    _
  %s6 = ssub.s32 1, %s4
  %s7 = scalar_select 0, %s6, %s4
  loop: start=0, step=1, limit=4
  $region2: #{dorefa_conv_bn_relu.3} parent=0 // loop_pre_header
    _
  $region3: #{dorefa_conv_bn_relu.3} parent=0 // loop_header
    %s9 = sphi 0, %s13
    %p10 = scmp.ge.s32.totalorder %s9, 4
    %s16 = sphi 0, %s28
    %s17 = sphi 0, %s24
    %s18 = sphi 0, %s16
    %s19 = sphi 0, %s17
    %s20 = sphi 0, %s18
    %s21 = sphi 0, %s19
    %s33 = sphi 0, %s35
    %s36 = sphi 0, %s33
    %s37 = sphi 0, %s36
    %s53 = sphi 0, %s37
    %s59 = sphi 0, %s61
    %s62 = sphi 0, %s59
    %s63 = sphi 0, %s62
    %s79 = sphi 0, %s63
    %s85 = sphi 0, %s87
    %s88 = sphi 0, %s85
    %s89 = sphi 0, %s88
    %s105 = sphi 0, %s89
    %s113 = sphi 0, %s115
    %s116 = sphi 0, %s113
    %s117 = sphi 0, %s116
    %s133 = sphi 0, %s117
  $region4: #{dorefa_conv_bn_relu.3} parent=0 // loop_header_branch
    %12 = sbr.rel (%p10) target = $region8
  $region5: #{dorefa_conv_bn_relu.3} parent=0 // loop_body
    %s14 = ssub.s32 %s9, 1
    %s15 = ssub.s32 %s9, 2
    %s22 = sadd.s32 1, %s17
    %p23 = scmp.ge.s32.totalorder %s22, 1
    %s24 = scalar_select %p23, 0, %s22
    %s25 = sadd.s32 1, %s16
    %s26 = scalar_select %p23, %s25, %s16
    %p27 = scmp.ge.s32.totalorder %s26, 2
    %s28 = scalar_select %p27, 0, %s26
    %s29 = ssub.s32 %s16, %s28
    %s30 = ssub.s32 %s17, %s24
    %s31 = sor.u32 %s29, %s30
    %p32 = scmp.eq.s32.totalorder %s31, 0
    %s34 = sadd.s32 %s33, 1
    %s35 = scalar_select %p32, %s33, %s34
    %p38 = pneg %p32
    %p39 = scmp.eq.s32.totalorder %s9, 1
    %p40 = por %p38, %p39
    %p41 = scmp.ne.s32.totalorder %s33, %s36
    %p42 = scmp.eq.s32.totalorder %s9, 0
    %p43 = por %p41, %p42
    %p44 = scmp.ne.s32.totalorder %s33, %s36
    %p45 = scmp.eq.s32.totalorder %s14, 1
    %p46 = por %p44, %p45
    %p47 = scmp.ne.s32.totalorder %s36, %s37
    %p48 = scmp.eq.s32.totalorder %s14, 0
    %p49 = por %p47, %p48
    %p50 = scmp.ne.s32.totalorder %s36, %s37
    %p51 = scmp.eq.s32.totalorder %s15, 1
    %p52 = por %p50, %p51
    %p54 = scmp.ne.s32.totalorder %s37, %s53
    %p55 = scmp.eq.s32.totalorder %s15, 0
    %p56 = por %p54, %p55
    %s57 = ssub.s32 %s17, %s24
    %p58 = scmp.eq.s32.totalorder %s57, 0
    %s60 = sadd.s32 %s59, 1
    %s61 = scalar_select %p58, %s59, %s60
    %p64 = pneg %p58
    %p65 = scmp.eq.s32.totalorder %s9, 1
    %p66 = por %p64, %p65
    %p67 = scmp.ne.s32.totalorder %s59, %s62
    %p68 = scmp.eq.s32.totalorder %s9, 0
    %p69 = por %p67, %p68
    %p70 = scmp.ne.s32.totalorder %s59, %s62
    %p71 = scmp.eq.s32.totalorder %s14, 1
    %p72 = por %p70, %p71
    %p73 = scmp.ne.s32.totalorder %s62, %s63
    %p74 = scmp.eq.s32.totalorder %s14, 0
    %p75 = por %p73, %p74
    %p76 = scmp.ne.s32.totalorder %s62, %s63
    %p77 = scmp.eq.s32.totalorder %s15, 1
    %p78 = por %p76, %p77
    %p80 = scmp.ne.s32.totalorder %s63, %s79
    %p81 = scmp.eq.s32.totalorder %s15, 0
    %p82 = por %p80, %p81
    %s83 = ssub.s32 %s17, %s24
    %p84 = scmp.eq.s32.totalorder %s83, 0
    %s86 = sadd.s32 %s85, 1
    %s87 = scalar_select %p84, %s85, %s86
    %p90 = pneg %p84
    %p91 = scmp.eq.s32.totalorder %s9, 1
    %p92 = por %p90, %p91
    %p93 = scmp.ne.s32.totalorder %s85, %s88
    %p94 = scmp.eq.s32.totalorder %s9, 0
    %p95 = por %p93, %p94
    %p96 = scmp.ne.s32.totalorder %s85, %s88
    %p97 = scmp.eq.s32.totalorder %s14, 1
    %p98 = por %p96, %p97
    %p99 = scmp.ne.s32.totalorder %s88, %s89
    %p100 = scmp.eq.s32.totalorder %s14, 0
    %p101 = por %p99, %p100
    %p102 = scmp.ne.s32.totalorder %s88, %s89
    %p103 = scmp.eq.s32.totalorder %s15, 1
    %p104 = por %p102, %p103
    %p106 = scmp.ne.s32.totalorder %s89, %s105
    %p107 = scmp.eq.s32.totalorder %s15, 0
    %p108 = por %p106, %p107
    %s109 = ssub.s32 %s16, %s28
    %s110 = ssub.s32 %s17, %s24
    %s111 = sor.u32 %s109, %s110
    %p112 = scmp.eq.s32.totalorder %s111, 0
    %s114 = sadd.s32 %s113, 1
    %s115 = scalar_select %p112, %s113, %s114
    %p118 = pneg %p112
    %p119 = scmp.eq.s32.totalorder %s9, 1
    %p120 = por %p118, %p119
    %p121 = scmp.ne.s32.totalorder %s113, %s116
    %p122 = scmp.eq.s32.totalorder %s9, 0
    %p123 = por %p121, %p122
    %p124 = scmp.ne.s32.totalorder %s113, %s116
    %p125 = scmp.eq.s32.totalorder %s14, 1
    %p126 = por %p124, %p125
    %p127 = scmp.ne.s32.totalorder %s116, %s117
    %p128 = scmp.eq.s32.totalorder %s14, 0
    %p129 = por %p127, %p128
    %p130 = scmp.ne.s32.totalorder %s116, %s117
    %p131 = scmp.eq.s32.totalorder %s15, 1
    %p132 = por %p130, %p131
    %p134 = scmp.ne.s32.totalorder %s117, %s133
    %p135 = scmp.eq.s32.totalorder %s15, 0
    %p136 = por %p134, %p135
    %p137 = scmp.le.s32.totalorder 1, %s9
    %p138 = scmp.lt.s32.totalorder %s9, 3
    %p139 = pnand %p137, %p138
    %p140 = pneg %p139
    // Predicated region
    $region9: #{dorefa_conv_bn_relu.3} parent=5 // pred_check
      _
    $region10: #{dorefa_conv_bn_relu.3} parent=5 // pred_check_branch
      %142 = sbr.rel (%p139) target = $region12
    $region11: #{dorefa_conv_bn_relu.3} parent=5 // pred_region
      %s143 = ssub.s32 %s9, 1
      // Predicated region
      $region13: #{dorefa_conv_bn_relu.3} parent=11 // pred_check
        %p144 = pneg %p75
      $region14: #{dorefa_conv_bn_relu.3} parent=11 // pred_check_branch
        %146 = sbr.rel (%p144) target = $region16
      $region15: #{dorefa_conv_bn_relu.3} parent=11 // pred_region
        %p147 = scmp.lt.s32.totalorder %s19, 0
        %s148 = scalar_select %p147, %s19, 0
        %s149 = scalar_lea.vmem %s1, %s148
      $region16: #{dorefa_conv_bn_relu.3} parent=11 // pred_fallthru
        _
      // Predicated region
      $region17: #{dorefa_conv_bn_relu.3} parent=11 // pred_check
        %p150 = pneg %p101
      $region18: #{dorefa_conv_bn_relu.3} parent=11 // pred_check_branch
        %152 = sbr.rel (%p150) target = $region20
      $region19: #{dorefa_conv_bn_relu.3} parent=11 // pred_region
        %p153 = scmp.lt.s32.totalorder %s19, 0
        %s154 = scalar_select %p153, %s19, 0
        %s155 = scalar_lea.vmem %s2, %s154
      $region20: #{dorefa_conv_bn_relu.3} parent=11 // pred_fallthru
        _
    $region12: #{dorefa_conv_bn_relu.3} parent=5 // pred_fallthru
      _
    %p156 = scmp.lt.s32.totalorder %s9, 2
    // Predicated region
    $region21: #{dorefa_conv_bn_relu.3} parent=5 // pred_check
      %p157 = pneg %p156
    $region22: #{dorefa_conv_bn_relu.3} parent=5 // pred_check_branch
      %159 = sbr.rel (%p157) target = $region24
    $region23: #{dorefa_conv_bn_relu.3} parent=5 // pred_region
      // Predicated region
      $region25: #{dorefa_conv_bn_relu.3} parent=23 // pred_check
        %p160 = pneg %p43
      $region26: #{dorefa_conv_bn_relu.3} parent=23 // pred_check_branch
        %162 = sbr.rel (%p160) target = $region28
      $region27: #{dorefa_conv_bn_relu.3} parent=23 // pred_region
        %s163 = smul.u32 32, %s16
        %p164 = scmp.lt.s32.totalorder %s163, 63
        %s165 = scalar_select %p164, %s163, 63
        %p166 = scmp.lt.s32.totalorder %s17, 0
        %s167 = scalar_select %p166, %s17, 0
        %s168 = sadd.s32 %s167, %s165
        %s169 = smul.addr %s168, 8
        %s170 = scalar_lea.vmem %s0, %s169
        %s171 = smul.u32 32, %s16
      $region28: #{dorefa_conv_bn_relu.3} parent=23 // pred_fallthru
        _
    $region24: #{dorefa_conv_bn_relu.3} parent=5 // pred_fallthru
      _
    %p172 = scmp.le.s32.totalorder 1, %s9
    %p173 = scmp.lt.s32.totalorder %s9, 3
    %p174 = pnand %p172, %p173
    %p175 = pneg %p174
    // Predicated region
    $region29: #{dorefa_conv_bn_relu.3} parent=5 // pred_check
      _
    $region30: #{dorefa_conv_bn_relu.3} parent=5 // pred_check_branch
      %177 = sbr.rel (%p174) target = $region32
    $region31: #{dorefa_conv_bn_relu.3} parent=5 // pred_region
      %s178 = ssub.s32 %s9, 1
      %s179 = smul.u32 32, %s18
      %p180 = scmp.lt.s32.totalorder %s179, 63
      %s181 = scalar_select %p180, %s179, 63
      %p182 = scmp.lt.s32.totalorder %s19, 0
      %s183 = scalar_select %p182, %s19, 0
      %s184 = sadd.s32 %s183, %s181
      %s185 = smul.addr %s184, 8
      %s186 = scalar_lea.vmem %s0, %s185
      %p187 = pneg %p49
      %p188 = pneg %p46
      %p189 = scmp.lt.s32.totalorder %s19, 0
      %s190 = scalar_select %p189, %s19, 0
      %s191 = scalar_lea.vmem %s1, %s190
      %p192 = pneg %p75
      %p193 = pneg %p72
      %p194 = scmp.lt.s32.totalorder %s19, 0
      %s195 = scalar_select %p194, %s19, 0
      %s196 = scalar_lea.vmem %s2, %s195
      %p197 = pneg %p101
      %p198 = pneg %p98
      %p199 = pneg %p129
      %p200 = pneg %p126
      %s201 = smul.u32 32, %s18
      %p202 = scmp.lt.s32.totalorder %s201, 63
      %s203 = scalar_select %p202, %s201, 63
      %p204 = scmp.lt.s32.totalorder %s19, 0
      %s205 = scalar_select %p204, %s19, 0
      %s206 = sadd.s32 %s205, %s203
      %s207 = smul.addr %s206, 8
      %s208 = scalar_lea.vmem %s3, %s207
      %s209 = smul.u32 32, %s18
      %p210 = scmp.lt.s32.totalorder %s209, 63
      %s211 = scalar_select %p210, %s209, 63
      %p212 = scmp.lt.s32.totalorder %s19, 0
      %s213 = scalar_select %p212, %s19, 0
      %s214 = sadd.s32 %s213, %s211
      %s215 = smul.addr %s214, 8
      %s216 = scalar_lea.vmem %s0, %s215
      %s217 = smul.u32 32, %s18
      %p218 = scmp.lt.s32.totalorder %s19, 0
      %s219 = scalar_select %p218, %s19, 0
      %s220 = scalar_lea.vmem %s1, %s219
      %p221 = scmp.lt.s32.totalorder %s19, 0
      %s222 = scalar_select %p221, %s19, 0
      %s223 = scalar_lea.vmem %s2, %s222
      %s224 = smul.u32 32, %s18
      %p225 = scmp.lt.s32.totalorder %s224, 63
      %s226 = scalar_select %p225, %s224, 63
      %p227 = scmp.lt.s32.totalorder %s19, 0
      %s228 = scalar_select %p227, %s19, 0
      %s229 = sadd.s32 %s228, %s226
      %s230 = smul.addr %s229, 8
      %s231 = scalar_lea.vmem %s3, %s230
      %s232 = smul.u32 32, %s18
      %v233 = vld [vmem:[%s216] sm:$0xff]
      %v234 = vld [vmem:[%s216 + $0x8] sm:$0xff]
      %v235 = vld [vmem:[%s216 + $0x10] sm:$0xff]
      %v236 = vld [vmem:[%s216 + $0x18] sm:$0xff]
      %v237 = vld [vmem:[%s216 + $0x20] sm:$0xff]
      %v238 = vld [vmem:[%s216 + $0x28] sm:$0xff]
      %v239 = vld [vmem:[%s216 + $0x30] sm:$0xff]
      %v240 = vld [vmem:[%s216 + $0x38] sm:$0xff]
      %v241 = vld [vmem:[%s216 + $0x40] sm:$0xff]
      %v242 = vld [vmem:[%s216 + $0x48] sm:$0xff]
      %v243 = vld [vmem:[%s216 + $0x50] sm:$0xff]
      %v244 = vld [vmem:[%s216 + $0x58] sm:$0xff]
      %v245 = vld [vmem:[%s216 + $0x60] sm:$0xff]
      %v246 = vld [vmem:[%s216 + $0x68] sm:$0xff]
      %v247 = vld [vmem:[%s216 + $0x70] sm:$0xff]
      %v248 = vld [vmem:[%s216 + $0x78] sm:$0xff]
      %v249 = vld [vmem:[%s216 + $0x80] sm:$0xff]
      %v250 = vld [vmem:[%s216 + $0x88] sm:$0xff]
      %v251 = vld [vmem:[%s216 + $0x90] sm:$0xff]
      %v252 = vld [vmem:[%s216 + $0x98] sm:$0xff]
      %v253 = vld [vmem:[%s216 + $0xa0] sm:$0xff]
      %v254 = vld [vmem:[%s216 + $0xa8] sm:$0xff]
      %v255 = vld [vmem:[%s216 + $0xb0] sm:$0xff]
      %v256 = vld [vmem:[%s216 + $0xb8] sm:$0xff]
      %v257 = vld [vmem:[%s216 + $0xc0] sm:$0xff]
      %v258 = vld [vmem:[%s216 + $0xc8] sm:$0xff]
      %v259 = vld [vmem:[%s216 + $0xd0] sm:$0xff]
      %v260 = vld [vmem:[%s216 + $0xd8] sm:$0xff]
      %v261 = vld [vmem:[%s216 + $0xe0] sm:$0xff]
      %v262 = vld [vmem:[%s216 + $0xe8] sm:$0xff]
      %v263 = vld [vmem:[%s216 + $0xf0] sm:$0xff]
      %v264 = vld [vmem:[%s216 + $0xf8] sm:$0xff]
      %v265 = vld [vmem:[%s220] sm:$0x1]
      %v267 = vlaneseq
      %v268 = vshrl.u32 %v267, 7
      %v269 = vsub.s32 0, %v268
      %v270 = vrot.slane %v265, %v269
      %v272 = vmul.f32 %v233, %v270
      %v273 = vmul.f32 %v234, %v270
      %v274 = vmul.f32 %v235, %v270
      %v275 = vmul.f32 %v236, %v270
      %v276 = vmul.f32 %v237, %v270
      %v277 = vmul.f32 %v238, %v270
      %v278 = vmul.f32 %v239, %v270
      %v279 = vmul.f32 %v240, %v270
      %v280 = vmul.f32 %v241, %v270
      %v281 = vmul.f32 %v242, %v270
      %v282 = vmul.f32 %v243, %v270
      %v283 = vmul.f32 %v244, %v270
      %v284 = vmul.f32 %v245, %v270
      %v285 = vmul.f32 %v246, %v270
      %v286 = vmul.f32 %v247, %v270
      %v287 = vmul.f32 %v248, %v270
      %v288 = vmul.f32 %v249, %v270
      %v289 = vmul.f32 %v250, %v270
      %v290 = vmul.f32 %v251, %v270
      %v291 = vmul.f32 %v252, %v270
      %v292 = vmul.f32 %v253, %v270
      %v293 = vmul.f32 %v254, %v270
      %v294 = vmul.f32 %v255, %v270
      %v295 = vmul.f32 %v256, %v270
      %v296 = vmul.f32 %v257, %v270
      %v297 = vmul.f32 %v258, %v270
      %v298 = vmul.f32 %v259, %v270
      %v299 = vmul.f32 %v260, %v270
      %v300 = vmul.f32 %v261, %v270
      %v301 = vmul.f32 %v262, %v270
      %v302 = vmul.f32 %v263, %v270
      %v303 = vmul.f32 %v264, %v270
      %v304 = vld [vmem:[%s223] sm:$0x1]
      %v306 = vlaneseq
      %v307 = vshrl.u32 %v306, 7
      %v308 = vsub.s32 0, %v307
      %v309 = vrot.slane %v304, %v308
      %v311 = vadd.f32 %v272, %v309
      %v312 = vadd.f32 %v273, %v309
      %v313 = vadd.f32 %v274, %v309
      %v314 = vadd.f32 %v275, %v309
      %v315 = vadd.f32 %v276, %v309
      %v316 = vadd.f32 %v277, %v309
      %v317 = vadd.f32 %v278, %v309
      %v318 = vadd.f32 %v279, %v309
      %v319 = vadd.f32 %v280, %v309
      %v320 = vadd.f32 %v281, %v309
      %v321 = vadd.f32 %v282, %v309
      %v322 = vadd.f32 %v283, %v309
      %v323 = vadd.f32 %v284, %v309
      %v324 = vadd.f32 %v285, %v309
      %v325 = vadd.f32 %v286, %v309
      %v326 = vadd.f32 %v287, %v309
      %v327 = vadd.f32 %v288, %v309
      %v328 = vadd.f32 %v289, %v309
      %v329 = vadd.f32 %v290, %v309
      %v330 = vadd.f32 %v291, %v309
      %v331 = vadd.f32 %v292, %v309
      %v332 = vadd.f32 %v293, %v309
      %v333 = vadd.f32 %v294, %v309
      %v334 = vadd.f32 %v295, %v309
      %v335 = vadd.f32 %v296, %v309
      %v336 = vadd.f32 %v297, %v309
      %v337 = vadd.f32 %v298, %v309
      %v338 = vadd.f32 %v299, %v309
      %v339 = vadd.f32 %v300, %v309
      %v340 = vadd.f32 %v301, %v309
      %v341 = vadd.f32 %v302, %v309
      %v342 = vadd.f32 %v303, %v309
      %v343 = vmax.f32 %v311, 0.0
      %v344 = vmax.f32 %v312, 0.0
      %v345 = vmax.f32 %v313, 0.0
      %v346 = vmax.f32 %v314, 0.0
      %v347 = vmax.f32 %v315, 0.0
      %v348 = vmax.f32 %v316, 0.0
      %v349 = vmax.f32 %v317, 0.0
      %v350 = vmax.f32 %v318, 0.0
      %v351 = vmax.f32 %v319, 0.0
      %v352 = vmax.f32 %v320, 0.0
      %v353 = vmax.f32 %v321, 0.0
      %v354 = vmax.f32 %v322, 0.0
      %v355 = vmax.f32 %v323, 0.0
      %v356 = vmax.f32 %v324, 0.0
      %v357 = vmax.f32 %v325, 0.0
      %v358 = vmax.f32 %v326, 0.0
      %v359 = vmax.f32 %v327, 0.0
      %v360 = vmax.f32 %v328, 0.0
      %v361 = vmax.f32 %v329, 0.0
      %v362 = vmax.f32 %v330, 0.0
      %v363 = vmax.f32 %v331, 0.0
      %v364 = vmax.f32 %v332, 0.0
      %v365 = vmax.f32 %v333, 0.0
      %v366 = vmax.f32 %v334, 0.0
      %v367 = vmax.f32 %v335, 0.0
      %v368 = vmax.f32 %v336, 0.0
      %v369 = vmax.f32 %v337, 0.0
      %v370 = vmax.f32 %v338, 0.0
      %v371 = vmax.f32 %v339, 0.0
      %v372 = vmax.f32 %v340, 0.0
      %v373 = vmax.f32 %v341, 0.0
      %v374 = vmax.f32 %v342, 0.0
      %375 = vst [vmem:[%s231] sm:$0xff] %v343
      %376 = vst [vmem:[%s231 + $0x8] sm:$0xff] %v344
      %377 = vst [vmem:[%s231 + $0x10] sm:$0xff] %v345
      %378 = vst [vmem:[%s231 + $0x18] sm:$0xff] %v346
      %379 = vst [vmem:[%s231 + $0x20] sm:$0xff] %v347
      %380 = vst [vmem:[%s231 + $0x28] sm:$0xff] %v348
      %381 = vst [vmem:[%s231 + $0x30] sm:$0xff] %v349
      %382 = vst [vmem:[%s231 + $0x38] sm:$0xff] %v350
      %383 = vst [vmem:[%s231 + $0x40] sm:$0xff] %v351
      %384 = vst [vmem:[%s231 + $0x48] sm:$0xff] %v352
      %385 = vst [vmem:[%s231 + $0x50] sm:$0xff] %v353
      %386 = vst [vmem:[%s231 + $0x58] sm:$0xff] %v354
      %387 = vst [vmem:[%s231 + $0x60] sm:$0xff] %v355
      %388 = vst [vmem:[%s231 + $0x68] sm:$0xff] %v356
      %389 = vst [vmem:[%s231 + $0x70] sm:$0xff] %v357
      %390 = vst [vmem:[%s231 + $0x78] sm:$0xff] %v358
      %391 = vst [vmem:[%s231 + $0x80] sm:$0xff] %v359
      %392 = vst [vmem:[%s231 + $0x88] sm:$0xff] %v360
      %393 = vst [vmem:[%s231 + $0x90] sm:$0xff] %v361
      %394 = vst [vmem:[%s231 + $0x98] sm:$0xff] %v362
      %395 = vst [vmem:[%s231 + $0xa0] sm:$0xff] %v363
      %396 = vst [vmem:[%s231 + $0xa8] sm:$0xff] %v364
      %397 = vst [vmem:[%s231 + $0xb0] sm:$0xff] %v365
      %398 = vst [vmem:[%s231 + $0xb8] sm:$0xff] %v366
      %399 = vst [vmem:[%s231 + $0xc0] sm:$0xff] %v367
      %400 = vst [vmem:[%s231 + $0xc8] sm:$0xff] %v368
      %401 = vst [vmem:[%s231 + $0xd0] sm:$0xff] %v369
      %402 = vst [vmem:[%s231 + $0xd8] sm:$0xff] %v370
      %403 = vst [vmem:[%s231 + $0xe0] sm:$0xff] %v371
      %404 = vst [vmem:[%s231 + $0xe8] sm:$0xff] %v372
      %405 = vst [vmem:[%s231 + $0xf0] sm:$0xff] %v373
      %406 = vst [vmem:[%s231 + $0xf8] sm:$0xff] %v374
      %s407 = smul.u32 32, %s18
      %p408 = scmp.lt.s32.totalorder %s407, 63
      %s409 = scalar_select %p408, %s407, 63
      %p410 = scmp.lt.s32.totalorder %s19, 0
      %s411 = scalar_select %p410, %s19, 0
      %s412 = sadd.s32 %s411, %s409
      %s413 = smul.addr %s412, 8
      %s414 = scalar_lea.vmem %s3, %s413
      // Predicated region
      $region33: #{dorefa_conv_bn_relu.3} parent=31 // pred_check
        %p415 = pneg %p126
      $region34: #{dorefa_conv_bn_relu.3} parent=31 // pred_check_branch
        %417 = sbr.rel (%p415) target = $region36
      $region35: #{dorefa_conv_bn_relu.3} parent=31 // pred_region
        %s418 = smul.u32 32, %s18
      $region36: #{dorefa_conv_bn_relu.3} parent=31 // pred_fallthru
        _
    $region32: #{dorefa_conv_bn_relu.3} parent=5 // pred_fallthru
      _
    %p419 = scmp.le.s32.totalorder 2, %s9
    // Predicated region
    $region37: #{dorefa_conv_bn_relu.3} parent=5 // pred_check
      %p420 = pneg %p419
    $region38: #{dorefa_conv_bn_relu.3} parent=5 // pred_check_branch
      %422 = sbr.rel (%p420) target = $region40
    $region39: #{dorefa_conv_bn_relu.3} parent=5 // pred_region
      %s423 = ssub.s32 %s9, 2
      // Predicated region
      $region41: #{dorefa_conv_bn_relu.3} parent=39 // pred_check
        %p424 = pneg %p132
      $region42: #{dorefa_conv_bn_relu.3} parent=39 // pred_check_branch
        %426 = sbr.rel (%p424) target = $region44
      $region43: #{dorefa_conv_bn_relu.3} parent=39 // pred_region
        %s427 = smul.u32 32, %s20
        %p428 = scmp.lt.s32.totalorder %s427, 63
        %s429 = scalar_select %p428, %s427, 63
        %p430 = scmp.lt.s32.totalorder %s21, 0
        %s431 = scalar_select %p430, %s21, 0
        %s432 = sadd.s32 %s431, %s429
        %s433 = smul.addr %s432, 8
        %s434 = scalar_lea.vmem %s3, %s433
      $region44: #{dorefa_conv_bn_relu.3} parent=39 // pred_fallthru
        _
    $region40: #{dorefa_conv_bn_relu.3} parent=5 // pred_fallthru
      _
  $region6: #{dorefa_conv_bn_relu.3} parent=0 // loop_footer
    %s13 = sadd.s32 1, %s9
  $region7: #{dorefa_conv_bn_relu.3} parent=0 // loop_footer_branch
    %8 = sbr.rel target = $region3
  $region8: #{dorefa_conv_bn_relu.3} parent=0 // loop_exit
    _

// kernel: dorefa_conv_bn_relu.2
$region0: #{dorefa_conv_bn_relu.2}
  #allocation0 [shape = 'u32[]', space=smem, size = 0x4, offset = 0x4, fixed_abs, tag = 'smem constant byte address 0x4 - core index']
  #allocation1 [shape = 'u32[144,128]{1,0:T(1,128)}', space=vmem, size = 0x12000, scoped, tag = 'internal scratch']
  %s0 = inlined_call_operand.vmem [shape: f32[2,18,18,4], index: 0, kind: input, shape index: {}]
  %s1 = inlined_call_operand.vmem [shape: bf16[3,3,4,128], index: 1, kind: input, shape index: {}]
  %s2 = inlined_call_operand.vmem [shape: f32[512,128], index: 2, kind: output, shape index: {0}]
  %s3 = inlined_call_operand.vmem [shape: f32[2,1,128], index: 3, kind: output, shape index: {1}]
  %s4 = inlined_call_operand.vmem [shape: f32[2,1,128], index: 4, kind: output, shape index: {2}]
  %5 = xla_tuple %s2, %s3, %s4
  %s6 = sld [smem:[#allocation0]]
  $region57: #{dorefa_conv_bn_relu.2} parent=0
    _
  %s8 = ssub.s32 1, %s6
  %s9 = scalar_select 0, %s8, %s6
  loop: start=0, step=1, limit=4
  $region2: #{dorefa_conv_bn_relu.2} parent=0 // loop_pre_header
    _
  $region3: #{dorefa_conv_bn_relu.2} parent=0 // loop_header
    %s11 = sphi 0, %s15
    %p12 = scmp.ge.s32.totalorder %s11, 4
    %s18 = sphi 0, %s30
    %s19 = sphi 0, %s26
    %s20 = sphi 0, %s18
    %s21 = sphi 0, %s19
    %s22 = sphi 0, %s20
    %s23 = sphi 0, %s21
    %s33 = sphi 0, %s35
    %s36 = sphi 0, %s33
    %s37 = sphi 0, %s36
    %s53 = sphi 0, %s37
    %s59 = sphi 0, %s61
    %s62 = sphi 0, %s59
    %s63 = sphi 0, %s62
    %s79 = sphi 0, %s63
    %s87 = sphi 0, %s89
    %s90 = sphi 0, %s87
    %s91 = sphi 0, %s90
    %s107 = sphi 0, %s91
    %s115 = sphi 0, %s117
    %s118 = sphi 0, %s115
    %s119 = sphi 0, %s118
    %s135 = sphi 0, %s119
    %s143 = sphi 0, %s145
    %s146 = sphi 0, %s143
    %s147 = sphi 0, %s146
    %s163 = sphi 0, %s147
  $region4: #{dorefa_conv_bn_relu.2} parent=0 // loop_header_branch
    %14 = sbr.rel (%p12) target = $region8
  $region5: #{dorefa_conv_bn_relu.2} parent=0 // loop_body
    %s16 = ssub.s32 %s11, 1
    %s17 = ssub.s32 %s11, 2
    %s24 = sadd.s32 1, %s19
    %p25 = scmp.ge.s32.totalorder %s24, 1
    %s26 = scalar_select %p25, 0, %s24
    %s27 = sadd.s32 1, %s18
    %s28 = scalar_select %p25, %s27, %s18
    %p29 = scmp.ge.s32.totalorder %s28, 2
    %s30 = scalar_select %p29, 0, %s28
    %s31 = ssub.s32 %s18, %s30
    %p32 = scmp.eq.s32.totalorder %s31, 0
    %s34 = sadd.s32 %s33, 1
    %s35 = scalar_select %p32, %s33, %s34
    %p38 = pneg %p32
    %p39 = scmp.eq.s32.totalorder %s11, 1
    %p40 = por %p38, %p39
    %p41 = scmp.ne.s32.totalorder %s33, %s36
    %p42 = scmp.eq.s32.totalorder %s11, 0
    %p43 = por %p41, %p42
    %p44 = scmp.ne.s32.totalorder %s33, %s36
    %p45 = scmp.eq.s32.totalorder %s16, 1
    %p46 = por %p44, %p45
    %p47 = scmp.ne.s32.totalorder %s36, %s37
    %p48 = scmp.eq.s32.totalorder %s16, 0
    %p49 = por %p47, %p48
    %p50 = scmp.ne.s32.totalorder %s36, %s37
    %p51 = scmp.eq.s32.totalorder %s17, 1
    %p52 = por %p50, %p51
    %p54 = scmp.ne.s32.totalorder %s37, %s53
    %p55 = scmp.eq.s32.totalorder %s17, 0
    %p56 = por %p54, %p55
    %s57 = ssub.s32 %s19, %s26
    %p58 = scmp.eq.s32.totalorder %s57, 0
    %s60 = sadd.s32 %s59, 1
    %s61 = scalar_select %p58, %s59, %s60
    %p64 = pneg %p58
    %p65 = scmp.eq.s32.totalorder %s11, 1
    %p66 = por %p64, %p65
    %p67 = scmp.ne.s32.totalorder %s59, %s62
    %p68 = scmp.eq.s32.totalorder %s11, 0
    %p69 = por %p67, %p68
    %p70 = scmp.ne.s32.totalorder %s59, %s62
    %p71 = scmp.eq.s32.totalorder %s16, 1
    %p72 = por %p70, %p71
    %p73 = scmp.ne.s32.totalorder %s62, %s63
    %p74 = scmp.eq.s32.totalorder %s16, 0
    %p75 = por %p73, %p74
    %p76 = scmp.ne.s32.totalorder %s62, %s63
    %p77 = scmp.eq.s32.totalorder %s17, 1
    %p78 = por %p76, %p77
    %p80 = scmp.ne.s32.totalorder %s63, %s79
    %p81 = scmp.eq.s32.totalorder %s17, 0
    %p82 = por %p80, %p81
    %s83 = ssub.s32 %s18, %s30
    %s84 = ssub.s32 %s19, %s26
    %s85 = sor.u32 %s83, %s84
    %p86 = scmp.eq.s32.totalorder %s85, 0
    %s88 = sadd.s32 %s87, 1
    %s89 = scalar_select %p86, %s87, %s88
    %p92 = pneg %p86
    %p93 = scmp.eq.s32.totalorder %s11, 1
    %p94 = por %p92, %p93
    %p95 = scmp.ne.s32.totalorder %s87, %s90
    %p96 = scmp.eq.s32.totalorder %s11, 0
    %p97 = por %p95, %p96
    %p98 = scmp.ne.s32.totalorder %s87, %s90
    %p99 = scmp.eq.s32.totalorder %s16, 1
    %p100 = por %p98, %p99
    %p101 = scmp.ne.s32.totalorder %s90, %s91
    %p102 = scmp.eq.s32.totalorder %s16, 0
    %p103 = por %p101, %p102
    %p104 = scmp.ne.s32.totalorder %s90, %s91
    %p105 = scmp.eq.s32.totalorder %s17, 1
    %p106 = por %p104, %p105
    %p108 = scmp.ne.s32.totalorder %s91, %s107
    %p109 = scmp.eq.s32.totalorder %s17, 0
    %p110 = por %p108, %p109
    %s111 = ssub.s32 %s18, %s30
    %s112 = ssub.s32 %s19, %s26
    %s113 = sor.u32 %s111, %s112
    %p114 = scmp.eq.s32.totalorder %s113, 0
    %s116 = sadd.s32 %s115, 1
    %s117 = scalar_select %p114, %s115, %s116
    %p120 = pneg %p114
    %p121 = scmp.eq.s32.totalorder %s11, 1
    %p122 = por %p120, %p121
    %p123 = scmp.ne.s32.totalorder %s115, %s118
    %p124 = scmp.eq.s32.totalorder %s11, 0
    %p125 = por %p123, %p124
    %p126 = scmp.ne.s32.totalorder %s115, %s118
    %p127 = scmp.eq.s32.totalorder %s16, 1
    %p128 = por %p126, %p127
    %p129 = scmp.ne.s32.totalorder %s118, %s119
    %p130 = scmp.eq.s32.totalorder %s16, 0
    %p131 = por %p129, %p130
    %p132 = scmp.ne.s32.totalorder %s118, %s119
    %p133 = scmp.eq.s32.totalorder %s17, 1
    %p134 = por %p132, %p133
    %p136 = scmp.ne.s32.totalorder %s119, %s135
    %p137 = scmp.eq.s32.totalorder %s17, 0
    %p138 = por %p136, %p137
    %s139 = ssub.s32 %s18, %s30
    %s140 = ssub.s32 %s19, %s26
    %s141 = sor.u32 %s139, %s140
    %p142 = scmp.eq.s32.totalorder %s141, 0
    %s144 = sadd.s32 %s143, 1
    %s145 = scalar_select %p142, %s143, %s144
    %p148 = pneg %p142
    %p149 = scmp.eq.s32.totalorder %s11, 1
    %p150 = por %p148, %p149
    %p151 = scmp.ne.s32.totalorder %s143, %s146
    %p152 = scmp.eq.s32.totalorder %s11, 0
    %p153 = por %p151, %p152
    %p154 = scmp.ne.s32.totalorder %s143, %s146
    %p155 = scmp.eq.s32.totalorder %s16, 1
    %p156 = por %p154, %p155
    %p157 = scmp.ne.s32.totalorder %s146, %s147
    %p158 = scmp.eq.s32.totalorder %s16, 0
    %p159 = por %p157, %p158
    %p160 = scmp.ne.s32.totalorder %s146, %s147
    %p161 = scmp.eq.s32.totalorder %s17, 1
    %p162 = por %p160, %p161
    %p164 = scmp.ne.s32.totalorder %s147, %s163
    %p165 = scmp.eq.s32.totalorder %s17, 0
    %p166 = por %p164, %p165
    %p167 = scmp.le.s32.totalorder 1, %s11
    %p168 = scmp.lt.s32.totalorder %s11, 3
    %p169 = pnand %p167, %p168
    %p170 = pneg %p169
    // Predicated region
    $region9: #{dorefa_conv_bn_relu.2} parent=5 // pred_check
      _
    $region10: #{dorefa_conv_bn_relu.2} parent=5 // pred_check_branch
      %172 = sbr.rel (%p169) target = $region12
    $region11: #{dorefa_conv_bn_relu.2} parent=5 // pred_region
      %s173 = ssub.s32 %s11, 1
      // Predicated region
      $region13: #{dorefa_conv_bn_relu.2} parent=11 // pred_check
        %p174 = pneg %p75
      $region14: #{dorefa_conv_bn_relu.2} parent=11 // pred_check_branch
        %176 = sbr.rel (%p174) target = $region16
      $region15: #{dorefa_conv_bn_relu.2} parent=11 // pred_region
        %p177 = scmp.lt.s32.totalorder %s21, 0
        %s178 = scalar_select %p177, %s21, 0
        %s179 = smul.addr %s178, 2
        %s180 = scalar_lea.vmem %s1, %s179
      $region16: #{dorefa_conv_bn_relu.2} parent=11 // pred_fallthru
        _
    $region12: #{dorefa_conv_bn_relu.2} parent=5 // pred_fallthru
      _
    %p181 = scmp.lt.s32.totalorder %s11, 2
    // Predicated region
    $region17: #{dorefa_conv_bn_relu.2} parent=5 // pred_check
      %p182 = pneg %p181
    $region18: #{dorefa_conv_bn_relu.2} parent=5 // pred_check_branch
      %184 = sbr.rel (%p182) target = $region20
    $region19: #{dorefa_conv_bn_relu.2} parent=5 // pred_region
      // Predicated region
      $region21: #{dorefa_conv_bn_relu.2} parent=19 // pred_check
        %p185 = pneg %p43
      $region22: #{dorefa_conv_bn_relu.2} parent=19 // pred_check_branch
        %187 = sbr.rel (%p185) target = $region24
      $region23: #{dorefa_conv_bn_relu.2} parent=19 // pred_region
        %p188 = scmp.lt.s32.totalorder %s18, 1
        %s189 = scalar_select %p188, %s18, 1
        %s190 = smul.addr %s189, 54
        %s191 = smul.addr %s190, 8
        %s192 = scalar_lea.vmem %s0, %s191
      $region24: #{dorefa_conv_bn_relu.2} parent=19 // pred_fallthru
        _
    $region20: #{dorefa_conv_bn_relu.2} parent=5 // pred_fallthru
      _
    %p193 = scmp.le.s32.totalorder 1, %s11
    %p194 = scmp.lt.s32.totalorder %s11, 3
    %p195 = pnand %p193, %p194
    %p196 = pneg %p195
    // Predicated region
    $region25: #{dorefa_conv_bn_relu.2} parent=5 // pred_check
      _
    $region26: #{dorefa_conv_bn_relu.2} parent=5 // pred_check_branch
      %198 = sbr.rel (%p195) target = $region28
    $region27: #{dorefa_conv_bn_relu.2} parent=5 // pred_region
      %s199 = ssub.s32 %s11, 1
      %p200 = scmp.lt.s32.totalorder %s20, 1
      %s201 = scalar_select %p200, %s20, 1
      %s202 = smul.addr %s201, 54
      %s203 = smul.addr %s202, 8
      %s204 = scalar_lea.vmem %s0, %s203
      %p205 = pneg %p49
      %p206 = pneg %p46
      %p207 = scmp.lt.s32.totalorder %s21, 0
      %s208 = scalar_select %p207, %s21, 0
      %s209 = smul.addr %s208, 2
      %s210 = scalar_lea.vmem %s1, %s209
      %p211 = pneg %p75
      %p212 = pneg %p72
      %p213 = pneg %p103
      %p214 = pneg %p100
      %s215 = smul.u32 32, %s20
      %p216 = scmp.lt.s32.totalorder %s215, 63
      %s217 = scalar_select %p216, %s215, 63
      %p218 = scmp.lt.s32.totalorder %s21, 0
      %s219 = scalar_select %p218, %s21, 0
      %s220 = sadd.s32 %s219, %s217
      %s221 = smul.addr %s220, 8
      %s222 = scalar_lea.vmem %s2, %s221
      %p223 = pneg %p131
      %p224 = pneg %p128
      %p225 = scmp.lt.s32.totalorder %s20, 1
      %s226 = scalar_select %p225, %s20, 1
      %p227 = scmp.lt.s32.totalorder %s21, 0
      %s228 = scalar_select %p227, %s21, 0
      %s229 = sadd.s32 %s228, %s226
      %s230 = scalar_lea.vmem %s3, %s229
      %p231 = pneg %p159
      %p232 = pneg %p156
      %p233 = scmp.lt.s32.totalorder %s20, 1
      %s234 = scalar_select %p233, %s20, 1
      %p235 = scmp.lt.s32.totalorder %s21, 0
      %s236 = scalar_select %p235, %s21, 0
      %s237 = sadd.s32 %s236, %s234
      %s238 = scalar_lea.vmem %s4, %s237
      %p239 = scmp.lt.s32.totalorder %s20, 1
      %s240 = scalar_select %p239, %s20, 1
      %s241 = smul.addr %s240, 54
      %s242 = smul.addr %s241, 8
      %s243 = scalar_lea.vmem %s0, %s242
      %p244 = scmp.lt.s32.totalorder %s21, 0
      %s245 = scalar_select %p244, %s21, 0
      %s246 = smul.addr %s245, 2
      %s247 = scalar_lea.vmem %s1, %s246
      %s248 = smul.u32 32, %s20
      %p249 = scmp.lt.s32.totalorder %s248, 63
      %s250 = scalar_select %p249, %s248, 63
      %p251 = scmp.lt.s32.totalorder %s21, 0
      %s252 = scalar_select %p251, %s21, 0
      %s253 = sadd.s32 %s252, %s250
      %s254 = smul.addr %s253, 8
      %s255 = scalar_lea.vmem %s2, %s254
      %s256 = smul.u32 32, %s20
      %p257 = scmp.lt.s32.totalorder %s20, 1
      %s258 = scalar_select %p257, %s20, 1
      %p259 = scmp.lt.s32.totalorder %s21, 0
      %s260 = scalar_select %p259, %s21, 0
      %s261 = sadd.s32 %s260, %s258
      %s262 = scalar_lea.vmem %s3, %s261
      %p263 = scmp.lt.s32.totalorder %s20, 1
      %s264 = scalar_select %p263, %s20, 1
      %p265 = scmp.lt.s32.totalorder %s21, 0
      %s266 = scalar_select %p265, %s21, 0
      %s267 = sadd.s32 %s266, %s264
      %s268 = scalar_lea.vmem %s4, %s267
      %v269 = vld [vmem:[%s243] sm:$0xff]
      %v270 = vld [vmem:[%s243 + $0x8] sm:$0xff]
      %v271 = vld [vmem:[%s243 + $0x18] sm:$0xff]
      %v272 = vld [vmem:[%s243 + $0x20] sm:$0xff]
      %v273 = vld [vmem:[%s243 + $0x30] sm:$0xff]
      %v274 = vld [vmem:[%s243 + $0x38] sm:$0xff]
      %v275 = vld [vmem:[%s243 + $0x48] sm:$0xff]
      %v276 = vld [vmem:[%s243 + $0x50] sm:$0xff]
      %v277 = vld [vmem:[%s243 + $0x60] sm:$0xff]
      %v278 = vld [vmem:[%s243 + $0x68] sm:$0xff]
      %v279 = vld [vmem:[%s243 + $0x78] sm:$0xff]
      %v280 = vld [vmem:[%s243 + $0x80] sm:$0xff]
      %v281 = vld [vmem:[%s243 + $0x90] sm:$0xff]
      %v282 = vld [vmem:[%s243 + $0x98] sm:$0xff]
      %v283 = vld [vmem:[%s243 + $0xa8] sm:$0xff]
      %v284 = vld [vmem:[%s243 + $0xb0] sm:$0xff]
      %v285 = vld [vmem:[%s243 + $0xc0] sm:$0xff]
      %v286 = vld [vmem:[%s243 + $0xc8] sm:$0xff]
      %v287 = vld [vmem:[%s243 + $0xd8] sm:$0xff]
      %v288 = vld [vmem:[%s243 + $0xe0] sm:$0xff]
      %v289 = vld [vmem:[%s243 + $0xf0] sm:$0xff]
      %v290 = vld [vmem:[%s243 + $0xf8] sm:$0xff]
      %v291 = vld [vmem:[%s243 + $0x108] sm:$0xff]
      %v292 = vld [vmem:[%s243 + $0x110] sm:$0xff]
      %v293 = vld [vmem:[%s243 + $0x120] sm:$0xff]
      %v294 = vld [vmem:[%s243 + $0x128] sm:$0xff]
      %v295 = vld [vmem:[%s243 + $0x138] sm:$0xff]
      %v296 = vld [vmem:[%s243 + $0x140] sm:$0xff]
      %v297 = vld [vmem:[%s243 + $0x150] sm:$0xff]
      %v298 = vld [vmem:[%s243 + $0x158] sm:$0xff]
      %v299 = vld [vmem:[%s243 + $0x168] sm:$0xff]
      %v300 = vld [vmem:[%s243 + $0x170] sm:$0xff]
      %v301 = vld [vmem:[%s247] sm:$0x3]
      %v302 = vunpack.c.l.bf16 %v301
      %v303 = vld [vmem:[%s243 + $0x1] sm:$0xff]
      %v304 = vld [vmem:[%s243 + $0x9] sm:$0xff]
      %v305 = vld [vmem:[%s243 + $0x19] sm:$0xff]
      %v306 = vld [vmem:[%s243 + $0x21] sm:$0xff]
      %v307 = vld [vmem:[%s243 + $0x31] sm:$0xff]
      %v308 = vld [vmem:[%s243 + $0x39] sm:$0xff]
      %v309 = vld [vmem:[%s243 + $0x49] sm:$0xff]
      %v310 = vld [vmem:[%s243 + $0x51] sm:$0xff]
      %v311 = vld [vmem:[%s243 + $0x61] sm:$0xff]
      %v312 = vld [vmem:[%s243 + $0x69] sm:$0xff]
      %v313 = vld [vmem:[%s243 + $0x79] sm:$0xff]
      %v314 = vld [vmem:[%s243 + $0x81] sm:$0xff]
      %v315 = vld [vmem:[%s243 + $0x91] sm:$0xff]
      %v316 = vld [vmem:[%s243 + $0x99] sm:$0xff]
      %v317 = vld [vmem:[%s243 + $0xa9] sm:$0xff]
      %v318 = vld [vmem:[%s243 + $0xb1] sm:$0xff]
      %v319 = vld [vmem:[%s243 + $0xc1] sm:$0xff]
      %v320 = vld [vmem:[%s243 + $0xc9] sm:$0xff]
      %v321 = vld [vmem:[%s243 + $0xd9] sm:$0xff]
      %v322 = vld [vmem:[%s243 + $0xe1] sm:$0xff]
      %v323 = vld [vmem:[%s243 + $0xf1] sm:$0xff]
      %v324 = vld [vmem:[%s243 + $0xf9] sm:$0xff]
      %v325 = vld [vmem:[%s243 + $0x109] sm:$0xff]
      %v326 = vld [vmem:[%s243 + $0x111] sm:$0xff]
      %v327 = vld [vmem:[%s243 + $0x121] sm:$0xff]
      %v328 = vld [vmem:[%s243 + $0x129] sm:$0xff]
      %v329 = vld [vmem:[%s243 + $0x139] sm:$0xff]
      %v330 = vld [vmem:[%s243 + $0x141] sm:$0xff]
      %v331 = vld [vmem:[%s243 + $0x151] sm:$0xff]
      %v332 = vld [vmem:[%s243 + $0x159] sm:$0xff]
      %v333 = vld [vmem:[%s243 + $0x169] sm:$0xff]
      %v334 = vld [vmem:[%s243 + $0x171] sm:$0xff]
      %s335 = scalar_lea.vmem %s247, 2
      %v336 = vld [vmem:[%s335] sm:$0x3]
      %v337 = vunpack.c.l.bf16 %v336
      %vm338 = vcmask 31744
      %v340 = vsel %vm338, %v303, 0
      %v343 = vsel %vm338, %v304, 0
      %v346 = vsel %vm338, %v305, 0
      %v349 = vsel %vm338, %v306, 0
      %v352 = vsel %vm338, %v307, 0
      %v355 = vsel %vm338, %v308, 0
      %v358 = vsel %vm338, %v309, 0
      %v361 = vsel %vm338, %v310, 0
      %v364 = vsel %vm338, %v311, 0
      %v367 = vsel %vm338, %v312, 0
      %v370 = vsel %vm338, %v313, 0
      %v373 = vsel %vm338, %v314, 0
      %v376 = vsel %vm338, %v315, 0
      %v379 = vsel %vm338, %v316, 0
      %v382 = vsel %vm338, %v317, 0
      %v385 = vsel %vm338, %v318, 0
      %v388 = vsel %vm338, %v319, 0
      %v391 = vsel %vm338, %v320, 0
      %v394 = vsel %vm338, %v321, 0
      %v397 = vsel %vm338, %v322, 0
      %v400 = vsel %vm338, %v323, 0
      %v403 = vsel %vm338, %v324, 0
      %v406 = vsel %vm338, %v325, 0
      %v409 = vsel %vm338, %v326, 0
      %v412 = vsel %vm338, %v327, 0
      %v415 = vsel %vm338, %v328, 0
      %v418 = vsel %vm338, %v329, 0
      %v421 = vsel %vm338, %v330, 0
      %v424 = vsel %vm338, %v331, 0
      %v427 = vsel %vm338, %v332, 0
      %v430 = vsel %vm338, %v333, 0
      %v433 = vsel %vm338, %v334, 0
      %vm435 = vcmask 1043456
      %v437 = vsel %vm435, %v337, 0
      %439 = vmatprep.subr.mxu0 0.0
      %440 = vmatpush1.msra.mxu0 %v437
      %441 = vmatprep.subr.mxu0 0.0
      %442 = vmatpush1.msra.mxu0 0.0
      %443 = vmatprep.subr.mxu0 0.0
      %444 = vmatpush1.msra.mxu0 0.0
      %445 = vmatprep.subr.mxu0 0.0
      %446 = vmatpush1.msra.mxu0 0.0
      %447 = vmatprep.subr.mxu0 0.0
      %448 = vmatpush1.msra.mxu0 0.0
      %449 = vmatprep.subr.mxu0 0.0
      %450 = vmatpush1.msra.mxu0 0.0
      %451 = vmatprep.subr.mxu0 0.0
      %452 = vmatpush1.msra.mxu0 0.0
      %453 = vmatprep.subr.mxu0 0.0
      %454 = vmatpush1.msra.mxu0 0.0
      %455 = vmatprep.subr.mxu0 0.0
      %456 = vmatpush1.msra.mxu0 0.0
      %457 = vmatprep.subr.mxu0 0.0
      %458 = vmatpush1.msra.mxu0 0.0
      %459 = vmatprep.subr.mxu0 0.0
      %460 = vmatpush1.msra.mxu0 0.0
      %461 = vmatprep.subr.mxu0 0.0
      %462 = vmatpush1.msra.mxu0 0.0
      %463 = vmatprep.subr.mxu0 0.0
      %464 = vmatpush1.msra.mxu0 0.0
      %465 = vmatprep.subr.mxu0 0.0
      %466 = vmatpush1.msra.mxu0 0.0
      %467 = vmatprep.subr.mxu0 0.0
      %468 = vmatpush1.msra.mxu0 0.0
      %469 = vmatprep.subr.mxu0 0.0
      %470 = vmatpush1.msra.mxu0 0.0
      %471 = vmatprep.subr.mxu0 0.0
      %472 = vmatpush1.msra.mxu0 0.0
      %473 = vmatprep.subr.mxu0 0.0
      %474 = vmatpush1.msra.mxu0 0.0
      %475 = vmatprep.subr.mxu0 0.0
      %476 = vmatpush1.msra.mxu0 0.0
      %477 = vmatprep.subr.mxu0 0.0
      %478 = vmatpush1.msra.mxu0 0.0
      %479 = vmatprep.subr.mxu0 0.0
      %480 = vmatpush1.msra.mxu0 0.0
      %481 = vmatprep.subr.mxu0 0.0
      %482 = vmatpush1.msra.mxu0 0.0
      %483 = vmatprep.subr.mxu0 0.0
      %484 = vmatpush1.msra.mxu0 0.0
      %485 = vmatprep.subr.mxu0 0.0
      %486 = vmatpush1.msra.mxu0 0.0
      %487 = vmatprep.subr.mxu0 0.0
      %488 = vmatpush1.msra.mxu0 0.0
      %489 = vmatprep.subr.mxu0 0.0
      %490 = vmatpush1.msra.mxu0 0.0
      %491 = vmatprep.subr.mxu0 0.0
      %492 = vmatpush1.msra.mxu0 0.0
      %493 = vmatprep.subr.mxu0 0.0
      %494 = vmatpush1.msra.mxu0 0.0
      %495 = vmatprep.subr.mxu0 0.0
      %496 = vmatpush1.msra.mxu0 0.0
      %497 = vmatprep.subr.mxu0 0.0
      %498 = vmatpush1.msra.mxu0 0.0
      %499 = vmatprep.subr.mxu0 0.0
      %500 = vmatpush1.msra.mxu0 0.0
      %501 = vmatprep.subr.mxu0 0.0
      %502 = vmatpush1.msra.mxu0 0.0
      %503 = vmatprep.mubr.f32.mxu0 0.0
      %504 = vmatmul.mubr.f32.gmra.mrb[0].mxu0 %v340
      %v505 = vpop.f32.mrb[0].mxu0
      %v506 = vadd.f32 0.0, %v505
      %v507 = vpop.f32.mrb[0].mxu0
      %508 = vmatprep.mubr.f32.mxu0 0.0
      %509 = vmatmul.mubr.f32.gmra.mrb[0].mxu0 %v343
      %v510 = vpop.f32.mrb[0].mxu0
      %v511 = vadd.f32 0.0, %v510
      %v512 = vpop.f32.mrb[0].mxu0
      %513 = vmatprep.mubr.f32.mxu0 0.0
      %514 = vmatmul.mubr.f32.gmra.mrb[0].mxu0 %v346
      %v515 = vpop.f32.mrb[0].mxu0
      %v516 = vadd.f32 0.0, %v515
      %v517 = vpop.f32.mrb[0].mxu0
      %518 = vmatprep.mubr.f32.mxu0 0.0
      %519 = vmatmul.mubr.f32.gmra.mrb[0].mxu0 %v349
      %v520 = vpop.f32.mrb[0].mxu0
      %v521 = vadd.f32 0.0, %v520
      %v522 = vpop.f32.mrb[0].mxu0
      %523 = vmatprep.mubr.f32.mxu0 0.0
      %524 = vmatmul.mubr.f32.gmra.mrb[0].mxu0 %v352
      %v525 = vpop.f32.mrb[0].mxu0
      %v526 = vadd.f32 0.0, %v525
      %v527 = vpop.f32.mrb[0].mxu0
      %528 = vmatprep.mubr.f32.mxu0 0.0
      %529 = vmatmul.mubr.f32.gmra.mrb[0].mxu0 %v355
      %v530 = vpop.f32.mrb[0].mxu0
      %v531 = vadd.f32 0.0, %v530
      %v532 = vpop.f32.mrb[0].mxu0
      %533 = vmatprep.mubr.f32.mxu0 0.0
      %534 = vmatmul.mubr.f32.gmra.mrb[0].mxu0 %v358
      %v535 = vpop.f32.mrb[0].mxu0
      %v536 = vadd.f32 0.0, %v535
      %v537 = vpop.f32.mrb[0].mxu0
      %538 = vmatprep.mubr.f32.mxu0 0.0
      %539 = vmatmul.mubr.f32.gmra.mrb[0].mxu0 %v361
      %v540 = vpop.f32.mrb[0].mxu0
      %v541 = vadd.f32 0.0, %v540
      %v542 = vpop.f32.mrb[0].mxu0
      %543 = vmatprep.mubr.f32.mxu0 0.0
      %544 = vmatmul.mubr.f32.gmra.mrb[0].mxu0 %v364
      %v545 = vpop.f32.mrb[0].mxu0
      %v546 = vadd.f32 0.0, %v545
      %v547 = vpop.f32.mrb[0].mxu0
      %548 = vmatprep.mubr.f32.mxu0 0.0
      %549 = vmatmul.mubr.f32.gmra.mrb[0].mxu0 %v367
      %v550 = vpop.f32.mrb[0].mxu0
      %v551 = vadd.f32 0.0, %v550
      %v552 = vpop.f32.mrb[0].mxu0
      %553 = vmatprep.mubr.f32.mxu0 0.0
      %554 = vmatmul.mubr.f32.gmra.mrb[0].mxu0 %v370
      %v555 = vpop.f32.mrb[0].mxu0
      %v556 = vadd.f32 0.0, %v555
      %v557 = vpop.f32.mrb[0].mxu0
      %558 = vmatprep.mubr.f32.mxu0 0.0
      %559 = vmatmul.mubr.f32.gmra.mrb[0].mxu0 %v373
      %v560 = vpop.f32.mrb[0].mxu0
      %v561 = vadd.f32 0.0, %v560
      %v562 = vpop.f32.mrb[0].mxu0
      %563 = vmatprep.mubr.f32.mxu0 0.0
      %564 = vmatmul.mubr.f32.gmra.mrb[0].mxu0 %v376
      %v565 = vpop.f32.mrb[0].mxu0
      %v566 = vadd.f32 0.0, %v565
      %v567 = vpop.f32.mrb[0].mxu0
      %568 = vmatprep.mubr.f32.mxu0 0.0
      %569 = vmatmul.mubr.f32.gmra.mrb[0].mxu0 %v379
      %v570 = vpop.f32.mrb[0].mxu0
      %v571 = vadd.f32 0.0, %v570
      %v572 = vpop.f32.mrb[0].mxu0
      %573 = vmatprep.mubr.f32.mxu0 0.0
      %574 = vmatmul.mubr.f32.gmra.mrb[0].mxu0 %v382
      %v575 = vpop.f32.mrb[0].mxu0
      %v576 = vadd.f32 0.0, %v575
      %v577 = vpop.f32.mrb[0].mxu0
      %578 = vmatprep.mubr.f32.mxu0 0.0
      %579 = vmatmul.mubr.f32.gmra.mrb[0].mxu0 %v385
      %v580 = vpop.f32.mrb[0].mxu0
      %v581 = vadd.f32 0.0, %v580
      %v582 = vpop.f32.mrb[0].mxu0
      %583 = vmatprep.mubr.f32.mxu0 0.0
      %584 = vmatmul.mubr.f32.gmra.mrb[0].mxu0 %v388
      %v585 = vpop.f32.mrb[0].mxu0
      %v586 = vadd.f32 0.0, %v585
      %v587 = vpop.f32.mrb[0].mxu0
      %588 = vmatprep.mubr.f32.mxu0 0.0
      %589 = vmatmul.mubr.f32.gmra.mrb[0].mxu0 %v391
      %v590 = vpop.f32.mrb[0].mxu0
      %v591 = vadd.f32 0.0, %v590
      %v592 = vpop.f32.mrb[0].mxu0
      %593 = vmatprep.mubr.f32.mxu0 0.0
      %594 = vmatmul.mubr.f32.gmra.mrb[0].mxu0 %v394
      %v595 = vpop.f32.mrb[0].mxu0
      %v596 = vadd.f32 0.0, %v595
      %v597 = vpop.f32.mrb[0].mxu0
      %598 = vmatprep.mubr.f32.mxu0 0.0
      %599 = vmatmul.mubr.f32.gmra.mrb[0].mxu0 %v397
      %v600 = vpop.f32.mrb[0].mxu0
      %v601 = vadd.f32 0.0, %v600
      %v602 = vpop.f32.mrb[0].mxu0
      %603 = vmatprep.mubr.f32.mxu0 0.0
      %604 = vmatmul.mubr.f32.gmra.mrb[0].mxu0 %v400
      %v605 = vpop.f32.mrb[0].mxu0
      %v606 = vadd.f32 0.0, %v605
      %v607 = vpop.f32.mrb[0].mxu0
      %608 = vmatprep.mubr.f32.mxu0 0.0
      %609 = vmatmul.mubr.f32.gmra.mrb[0].mxu0 %v403
      %v610 = vpop.f32.mrb[0].mxu0
      %v611 = vadd.f32 0.0, %v610
      %v612 = vpop.f32.mrb[0].mxu0
      %613 = vmatprep.mubr.f32.mxu0 0.0
      %614 = vmatmul.mubr.f32.gmra.mrb[0].mxu0 %v406
      %v615 = vpop.f32.mrb[0].mxu0
      %v616 = vadd.f32 0.0, %v615
      %v617 = vpop.f32.mrb[0].mxu0
      %618 = vmatprep.mubr.f32.mxu0 0.0
      %619 = vmatmul.mubr.f32.gmra.mrb[0].mxu0 %v409
      %v620 = vpop.f32.mrb[0].mxu0
      %v621 = vadd.f32 0.0, %v620
      %v622 = vpop.f32.mrb[0].mxu0
      %623 = vmatprep.mubr.f32.mxu0 0.0
      %624 = vmatmul.mubr.f32.gmra.mrb[0].mxu0 %v412
      %v625 = vpop.f32.mrb[0].mxu0
      %v626 = vadd.f32 0.0, %v625
      %v627 = vpop.f32.mrb[0].mxu0
      %628 = vmatprep.mubr.f32.mxu0 0.0
      %629 = vmatmul.mubr.f32.gmra.mrb[0].mxu0 %v415
      %v630 = vpop.f32.mrb[0].mxu0
      %v631 = vadd.f32 0.0, %v630
      %v632 = vpop.f32.mrb[0].mxu0
      %633 = vmatprep.mubr.f32.mxu0 0.0
      %634 = vmatmul.mubr.f32.gmra.mrb[0].mxu0 %v418
      %v635 = vpop.f32.mrb[0].mxu0
      %v636 = vadd.f32 0.0, %v635
      %v637 = vpop.f32.mrb[0].mxu0
      %638 = vmatprep.mubr.f32.mxu0 0.0
      %639 = vmatmul.mubr.f32.gmra.mrb[0].mxu0 %v421
      %v640 = vpop.f32.mrb[0].mxu0
      %v641 = vadd.f32 0.0, %v640
      %v642 = vpop.f32.mrb[0].mxu0
      %643 = vmatprep.mubr.f32.mxu0 0.0
      %644 = vmatmul.mubr.f32.gmra.mrb[0].mxu0 %v424
      %v645 = vpop.f32.mrb[0].mxu0
      %v646 = vadd.f32 0.0, %v645
      %v647 = vpop.f32.mrb[0].mxu0
      %648 = vmatprep.mubr.f32.mxu0 0.0
      %649 = vmatmul.mubr.f32.gmra.mrb[0].mxu0 %v427
      %v650 = vpop.f32.mrb[0].mxu0
      %v651 = vadd.f32 0.0, %v650
      %v652 = vpop.f32.mrb[0].mxu0
      %653 = vmatprep.mubr.f32.mxu0 0.0
      %654 = vmatmul.mubr.f32.gmra.mrb[0].mxu0 %v430
      %v655 = vpop.f32.mrb[0].mxu0
      %v656 = vadd.f32 0.0, %v655
      %v657 = vpop.f32.mrb[0].mxu0
      %658 = vmatprep.mubr.f32.mxu0 0.0
      %659 = vmatmul.mubr.f32.gmra.mrb[0].mxu0 %v433
      %v660 = vpop.f32.mrb[0].mxu0
      %v661 = vadd.f32 0.0, %v660
      %v662 = vpop.f32.mrb[0].mxu0
      %663 = vdwg.mxu0
      %v665 = vsel %vm338, %v269, 0
      %v668 = vsel %vm338, %v270, 0
      %v671 = vsel %vm338, %v271, 0
      %v674 = vsel %vm338, %v272, 0
      %v677 = vsel %vm338, %v273, 0
      %v680 = vsel %vm338, %v274, 0
      %v683 = vsel %vm338, %v275, 0
      %v686 = vsel %vm338, %v276, 0
      %v689 = vsel %vm338, %v277, 0
      %v692 = vsel %vm338, %v278, 0
      %v695 = vsel %vm338, %v279, 0
      %v698 = vsel %vm338, %v280, 0
      %v701 = vsel %vm338, %v281, 0
      %v704 = vsel %vm338, %v282, 0
      %v707 = vsel %vm338, %v283, 0
      %v710 = vsel %vm338, %v284, 0
      %v713 = vsel %vm338, %v285, 0
      %v716 = vsel %vm338, %v286, 0
      %v719 = vsel %vm338, %v287, 0
      %v722 = vsel %vm338, %v288, 0
      %v725 = vsel %vm338, %v289, 0
      %v728 = vsel %vm338, %v290, 0
      %v731 = vsel %vm338, %v291, 0
      %v734 = vsel %vm338, %v292, 0
      %v737 = vsel %vm338, %v293, 0
      %v740 = vsel %vm338, %v294, 0
      %v743 = vsel %vm338, %v295, 0
      %v746 = vsel %vm338, %v296, 0
      %v749 = vsel %vm338, %v297, 0
      %v752 = vsel %vm338, %v298, 0
      %v755 = vsel %vm338, %v299, 0
      %v758 = vsel %vm338, %v300, 0
      %v761 = vsel %vm435, %v302, 0
      %763 = vmatprep.subr.mxu0 0.0
      %764 = vmatpush1.msra.mxu0 %v761
      %765 = vmatprep.subr.mxu0 0.0
      %766 = vmatpush1.msra.mxu0 0.0
      %767 = vmatprep.subr.mxu0 0.0
      %768 = vmatpush1.msra.mxu0 0.0
      %769 = vmatprep.subr.mxu0 0.0
      %770 = vmatpush1.msra.mxu0 0.0
      %771 = vmatprep.subr.mxu0 0.0
      %772 = vmatpush1.msra.mxu0 0.0
      %773 = vmatprep.subr.mxu0 0.0
      %774 = vmatpush1.msra.mxu0 0.0
      %775 = vmatprep.subr.mxu0 0.0
      %776 = vmatpush1.msra.mxu0 0.0
      %777 = vmatprep.subr.mxu0 0.0
      %778 = vmatpush1.msra.mxu0 0.0
      %779 = vmatprep.subr.mxu0 0.0
      %780 = vmatpush1.msra.mxu0 0.0
      %781 = vmatprep.subr.mxu0 0.0
      %782 = vmatpush1.msra.mxu0 0.0
      %783 = vmatprep.subr.mxu0 0.0
      %784 = vmatpush1.msra.mxu0 0.0
      %785 = vmatprep.subr.mxu0 0.0
      %786 = vmatpush1.msra.mxu0 0.0
      %787 = vmatprep.subr.mxu0 0.0
      %788 = vmatpush1.msra.mxu0 0.0
      %789 = vmatprep.subr.mxu0 0.0
      %790 = vmatpush1.msra.mxu0 0.0
      %791 = vmatprep.subr.mxu0 0.0
      %792 = vmatpush1.msra.mxu0 0.0
      %793 = vmatprep.subr.mxu0 0.0
      %794 = vmatpush1.msra.mxu0 0.0
      %795 = vmatprep.subr.mxu0 0.0
      %796 = vmatpush1.msra.mxu0 0.0
      %797 = vmatprep.subr.mxu0 0.0
      %798 = vmatpush1.msra.mxu0 0.0
      %799 = vmatprep.subr.mxu0 0.0
      %800 = vmatpush1.msra.mxu0 0.0
      %801 = vmatprep.subr.mxu0 0.0
      %802 = vmatpush1.msra.mxu0 0.0
      %803 = vmatprep.subr.mxu0 0.0
      %804 = vmatpush1.msra.mxu0 0.0
      %805 = vmatprep.subr.mxu0 0.0
      %806 = vmatpush1.msra.mxu0 0.0
      %807 = vmatprep.subr.mxu0 0.0
      %808 = vmatpush1.msra.mxu0 0.0
      %809 = vmatprep.subr.mxu0 0.0
      %810 = vmatpush1.msra.mxu0 0.0
      %811 = vmatprep.subr.mxu0 0.0
      %812 = vmatpush1.msra.mxu0 0.0
      %813 = vmatprep.subr.mxu0 0.0
      %814 = vmatpush1.msra.mxu0 0.0
      %815 = vmatprep.subr.mxu0 0.0
      %816 = vmatpush1.msra.mxu0 0.0
      %817 = vmatprep.subr.mxu0 0.0
      %818 = vmatpush1.msra.mxu0 0.0
      %819 = vmatprep.subr.mxu0 0.0
      %820 = vmatpush1.msra.mxu0 0.0
      %821 = vmatprep.subr.mxu0 0.0
      %822 = vmatpush1.msra.mxu0 0.0
      %823 = vmatprep.subr.mxu0 0.0
      %824 = vmatpush1.msra.mxu0 0.0
      %825 = vmatprep.subr.mxu0 0.0
      %826 = vmatpush1.msra.mxu0 0.0
      %827 = vmatprep.mubr.f32.mxu0 0.0
      %828 = vmatmul.mubr.f32.gmra.mrb[0].mxu0 %v665
      %v829 = vpop.f32.mrb[0].mxu0
      %v830 = vadd.f32 %v506, %v829
      %v831 = vpop.f32.mrb[0].mxu0
      %832 = vmatprep.mubr.f32.mxu0 0.0
      %833 = vmatmul.mubr.f32.gmra.mrb[0].mxu0 %v668
      %v834 = vpop.f32.mrb[0].mxu0
      %v835 = vadd.f32 %v511, %v834
      %v836 = vpop.f32.mrb[0].mxu0
      %837 = vmatprep.mubr.f32.mxu0 0.0
      %838 = vmatmul.mubr.f32.gmra.mrb[0].mxu0 %v671
      %v839 = vpop.f32.mrb[0].mxu0
      %v840 = vadd.f32 %v516, %v839
      %v841 = vpop.f32.mrb[0].mxu0
      %842 = vmatprep.mubr.f32.mxu0 0.0
      %843 = vmatmul.mubr.f32.gmra.mrb[0].mxu0 %v674
      %v844 = vpop.f32.mrb[0].mxu0
      %v845 = vadd.f32 %v521, %v844
      %v846 = vpop.f32.mrb[0].mxu0
      %847 = vmatprep.mubr.f32.mxu0 0.0
      %848 = vmatmul.mubr.f32.gmra.mrb[0].mxu0 %v677
      %v849 = vpop.f32.mrb[0].mxu0
      %v850 = vadd.f32 %v526, %v849
      %v851 = vpop.f32.mrb[0].mxu0
      %852 = vmatprep.mubr.f32.mxu0 0.0
      %853 = vmatmul.mubr.f32.gmra.mrb[0].mxu0 %v680
      %v854 = vpop.f32.mrb[0].mxu0
      %v855 = vadd.f32 %v531, %v854
      %v856 = vpop.f32.mrb[0].mxu0
      %857 = vmatprep.mubr.f32.mxu0 0.0
      %858 = vmatmul.mubr.f32.gmra.mrb[0].mxu0 %v683
      %v859 = vpop.f32.mrb[0].mxu0
      %v860 = vadd.f32 %v536, %v859
      %v861 = vpop.f32.mrb[0].mxu0
      %862 = vmatprep.mubr.f32.mxu0 0.0
      %863 = vmatmul.mubr.f32.gmra.mrb[0].mxu0 %v686
      %v864 = vpop.f32.mrb[0].mxu0
      %v865 = vadd.f32 %v541, %v864
      %v866 = vpop.f32.mrb[0].mxu0
      %867 = vmatprep.mubr.f32.mxu0 0.0
      %868 = vmatmul.mubr.f32.gmra.mrb[0].mxu0 %v689
      %v869 = vpop.f32.mrb[0].mxu0
      %v870 = vadd.f32 %v546, %v869
      %v871 = vpop.f32.mrb[0].mxu0
      %872 = vmatprep.mubr.f32.mxu0 0.0
      %873 = vmatmul.mubr.f32.gmra.mrb[0].mxu0 %v692
      %v874 = vpop.f32.mrb[0].mxu0
      %v875 = vadd.f32 %v551, %v874
      %v876 = vpop.f32.mrb[0].mxu0
      %877 = vmatprep.mubr.f32.mxu0 0.0
      %878 = vmatmul.mubr.f32.gmra.mrb[0].mxu0 %v695
      %v879 = vpop.f32.mrb[0].mxu0
      %v880 = vadd.f32 %v556, %v879
      %v881 = vpop.f32.mrb[0].mxu0
      %882 = vmatprep.mubr.f32.mxu0 0.0
      %883 = vmatmul.mubr.f32.gmra.mrb[0].mxu0 %v698
      %v884 = vpop.f32.mrb[0].mxu0
      %v885 = vadd.f32 %v561, %v884
      %v886 = vpop.f32.mrb[0].mxu0
      %887 = vmatprep.mubr.f32.mxu0 0.0
      %888 = vmatmul.mubr.f32.gmra.mrb[0].mxu0 %v701
      %v889 = vpop.f32.mrb[0].mxu0
      %v890 = vadd.f32 %v566, %v889
      %v891 = vpop.f32.mrb[0].mxu0
      %892 = vmatprep.mubr.f32.mxu0 0.0
      %893 = vmatmul.mubr.f32.gmra.mrb[0].mxu0 %v704
      %v894 = vpop.f32.mrb[0].mxu0
      %v895 = vadd.f32 %v571, %v894
      %v896 = vpop.f32.mrb[0].mxu0
      %897 = vmatprep.mubr.f32.mxu0 0.0
      %898 = vmatmul.mubr.f32.gmra.mrb[0].mxu0 %v707
      %v899 = vpop.f32.mrb[0].mxu0
      %v900 = vadd.f32 %v576, %v899
      %v901 = vpop.f32.mrb[0].mxu0
      %902 = vmatprep.mubr.f32.mxu0 0.0
      %903 = vmatmul.mubr.f32.gmra.mrb[0].mxu0 %v710
      %v904 = vpop.f32.mrb[0].mxu0
      %v905 = vadd.f32 %v581, %v904
      %v906 = vpop.f32.mrb[0].mxu0
      %907 = vmatprep.mubr.f32.mxu0 0.0
      %908 = vmatmul.mubr.f32.gmra.mrb[0].mxu0 %v713
      %v909 = vpop.f32.mrb[0].mxu0
      %v910 = vadd.f32 %v586, %v909
      %v911 = vpop.f32.mrb[0].mxu0
      %912 = vmatprep.mubr.f32.mxu0 0.0
      %913 = vmatmul.mubr.f32.gmra.mrb[0].mxu0 %v716
      %v914 = vpop.f32.mrb[0].mxu0
      %v915 = vadd.f32 %v591, %v914
      %v916 = vpop.f32.mrb[0].mxu0
      %917 = vmatprep.mubr.f32.mxu0 0.0
      %918 = vmatmul.mubr.f32.gmra.mrb[0].mxu0 %v719
      %v919 = vpop.f32.mrb[0].mxu0
      %v920 = vadd.f32 %v596, %v919
      %v921 = vpop.f32.mrb[0].mxu0
      %922 = vmatprep.mubr.f32.mxu0 0.0
      %923 = vmatmul.mubr.f32.gmra.mrb[0].mxu0 %v722
      %v924 = vpop.f32.mrb[0].mxu0
      %v925 = vadd.f32 %v601, %v924
      %v926 = vpop.f32.mrb[0].mxu0
      %927 = vmatprep.mubr.f32.mxu0 0.0
      %928 = vmatmul.mubr.f32.gmra.mrb[0].mxu0 %v725
      %v929 = vpop.f32.mrb[0].mxu0
      %v930 = vadd.f32 %v606, %v929
      %v931 = vpop.f32.mrb[0].mxu0
      %932 = vmatprep.mubr.f32.mxu0 0.0
      %933 = vmatmul.mubr.f32.gmra.mrb[0].mxu0 %v728
      %v934 = vpop.f32.mrb[0].mxu0
      %v935 = vadd.f32 %v611, %v934
      %v936 = vpop.f32.mrb[0].mxu0
      %937 = vmatprep.mubr.f32.mxu0 0.0
      %938 = vmatmul.mubr.f32.gmra.mrb[0].mxu0 %v731
      %v939 = vpop.f32.mrb[0].mxu0
      %v940 = vadd.f32 %v616, %v939
      %v941 = vpop.f32.mrb[0].mxu0
      %942 = vmatprep.mubr.f32.mxu0 0.0
      %943 = vmatmul.mubr.f32.gmra.mrb[0].mxu0 %v734
      %v944 = vpop.f32.mrb[0].mxu0
      %v945 = vadd.f32 %v621, %v944
      %v946 = vpop.f32.mrb[0].mxu0
      %947 = vmatprep.mubr.f32.mxu0 0.0
      %948 = vmatmul.mubr.f32.gmra.mrb[0].mxu0 %v737
      %v949 = vpop.f32.mrb[0].mxu0
      %v950 = vadd.f32 %v626, %v949
      %v951 = vpop.f32.mrb[0].mxu0
      %952 = vmatprep.mubr.f32.mxu0 0.0
      %953 = vmatmul.mubr.f32.gmra.mrb[0].mxu0 %v740
      %v954 = vpop.f32.mrb[0].mxu0
      %v955 = vadd.f32 %v631, %v954
      %v956 = vpop.f32.mrb[0].mxu0
      %957 = vmatprep.mubr.f32.mxu0 0.0
      %958 = vmatmul.mubr.f32.gmra.mrb[0].mxu0 %v743
      %v959 = vpop.f32.mrb[0].mxu0
      %v960 = vadd.f32 %v636, %v959
      %v961 = vpop.f32.mrb[0].mxu0
      %962 = vmatprep.mubr.f32.mxu0 0.0
      %963 = vmatmul.mubr.f32.gmra.mrb[0].mxu0 %v746
      %v964 = vpop.f32.mrb[0].mxu0
      %v965 = vadd.f32 %v641, %v964
      %v966 = vpop.f32.mrb[0].mxu0
      %967 = vmatprep.mubr.f32.mxu0 0.0
      %968 = vmatmul.mubr.f32.gmra.mrb[0].mxu0 %v749
      %v969 = vpop.f32.mrb[0].mxu0
      %v970 = vadd.f32 %v646, %v969
      %v971 = vpop.f32.mrb[0].mxu0
      %972 = vmatprep.mubr.f32.mxu0 0.0
      %973 = vmatmul.mubr.f32.gmra.mrb[0].mxu0 %v752
      %v974 = vpop.f32.mrb[0].mxu0
      %v975 = vadd.f32 %v651, %v974
      %v976 = vpop.f32.mrb[0].mxu0
      %977 = vmatprep.mubr.f32.mxu0 0.0
      %978 = vmatmul.mubr.f32.gmra.mrb[0].mxu0 %v755
      %v979 = vpop.f32.mrb[0].mxu0
      %v980 = vadd.f32 %v656, %v979
      %v981 = vpop.f32.mrb[0].mxu0
      %982 = vmatprep.mubr.f32.mxu0 0.0
      %983 = vmatmul.mubr.f32.gmra.mrb[0].mxu0 %v758
      %v984 = vpop.f32.mrb[0].mxu0
      %v985 = vadd.f32 %v661, %v984
      %v986 = vpop.f32.mrb[0].mxu0
      %987 = vdwg.mxu0
      %v988 = vld [vmem:[%s243 + $0x2] sm:$0xff]
      %v989 = vld [vmem:[%s243 + $0xa] sm:$0xff]
      %v990 = vld [vmem:[%s243 + $0x1a] sm:$0xff]
      %v991 = vld [vmem:[%s243 + $0x22] sm:$0xff]
      %v992 = vld [vmem:[%s243 + $0x32] sm:$0xff]
      %v993 = vld [vmem:[%s243 + $0x3a] sm:$0xff]
      %v994 = vld [vmem:[%s243 + $0x4a] sm:$0xff]
      %v995 = vld [vmem:[%s243 + $0x52] sm:$0xff]
      %v996 = vld [vmem:[%s243 + $0x62] sm:$0xff]
      %v997 = vld [vmem:[%s243 + $0x6a] sm:$0xff]
      %v998 = vld [vmem:[%s243 + $0x7a] sm:$0xff]
      %v999 = vld [vmem:[%s243 + $0x82] sm:$0xff]
      %v1000 = vld [vmem:[%s243 + $0x92] sm:$0xff]
      %v1001 = vld [vmem:[%s243 + $0x9a] sm:$0xff]
      %v1002 = vld [vmem:[%s243 + $0xaa] sm:$0xff]
      %v1003 = vld [vmem:[%s243 + $0xb2] sm:$0xff]
      %v1004 = vld [vmem:[%s243 + $0xc2] sm:$0xff]
      %v1005 = vld [vmem:[%s243 + $0xca] sm:$0xff]
      %v1006 = vld [vmem:[%s243 + $0xda] sm:$0xff]
      %v1007 = vld [vmem:[%s243 + $0xe2] sm:$0xff]
      %v1008 = vld [vmem:[%s243 + $0xf2] sm:$0xff]
      %v1009 = vld [vmem:[%s243 + $0xfa] sm:$0xff]
      %v1010 = vld [vmem:[%s243 + $0x10a] sm:$0xff]
      %v1011 = vld [vmem:[%s243 + $0x112] sm:$0xff]
      %v1012 = vld [vmem:[%s243 + $0x122] sm:$0xff]
      %v1013 = vld [vmem:[%s243 + $0x12a] sm:$0xff]
      %v1014 = vld [vmem:[%s243 + $0x13a] sm:$0xff]
      %v1015 = vld [vmem:[%s243 + $0x142] sm:$0xff]
      %v1016 = vld [vmem:[%s243 + $0x152] sm:$0xff]
      %v1017 = vld [vmem:[%s243 + $0x15a] sm:$0xff]
      %v1018 = vld [vmem:[%s243 + $0x16a] sm:$0xff]
      %v1019 = vld [vmem:[%s243 + $0x172] sm:$0xff]
      %s1020 = scalar_lea.vmem %s247, 4
      %v1021 = vld [vmem:[%s1020] sm:$0x3]
      %v1022 = vunpack.c.l.bf16 %v1021
      %v1024 = vsel %vm338, %v988, 0
      %v1027 = vsel %vm338, %v989, 0
      %v1030 = vsel %vm338, %v990, 0
      %v1033 = vsel %vm338, %v991, 0
      %v1036 = vsel %vm338, %v992, 0
      %v1039 = vsel %vm338, %v993, 0
      %v1042 = vsel %vm338, %v994, 0
      %v1045 = vsel %vm338, %v995, 0
      %v1048 = vsel %vm338, %v996, 0
      %v1051 = vsel %vm338, %v997, 0
      %v1054 = vsel %vm338, %v998, 0
      %v1057 = vsel %vm338, %v999, 0
      %v1060 = vsel %vm338, %v1000, 0
      %v1063 = vsel %vm338, %v1001, 0
      %v1066 = vsel %vm338, %v1002, 0
      %v1069 = vsel %vm338, %v1003, 0
      %v1072 = vsel %vm338, %v1004, 0
      %v1075 = vsel %vm338, %v1005, 0
      %v1078 = vsel %vm338, %v1006, 0
      %v1081 = vsel %vm338, %v1007, 0
      %v1084 = vsel %vm338, %v1008, 0
      %v1087 = vsel %vm338, %v1009, 0
      %v1090 = vsel %vm338, %v1010, 0
      %v1093 = vsel %vm338, %v1011, 0
      %v1096 = vsel %vm338, %v1012, 0
      %v1099 = vsel %vm338, %v1013, 0
      %v1102 = vsel %vm338, %v1014, 0
      %v1105 = vsel %vm338, %v1015, 0
      %v1108 = vsel %vm338, %v1016, 0
      %v1111 = vsel %vm338, %v1017, 0
      %v1114 = vsel %vm338, %v1018, 0
      %v1117 = vsel %vm338, %v1019, 0
      %v1120 = vsel %vm435, %v1022, 0
      %1122 = vmatprep.subr.mxu0 0.0
      %1123 = vmatpush1.msra.mxu0 %v1120
      %1124 = vmatprep.subr.mxu0 0.0
      %1125 = vmatpush1.msra.mxu0 0.0
      %1126 = vmatprep.subr.mxu0 0.0
      %1127 = vmatpush1.msra.mxu0 0.0
      %1128 = vmatprep.subr.mxu0 0.0
      %1129 = vmatpush1.msra.mxu0 0.0
      %1130 = vmatprep.subr.mxu0 0.0
      %1131 = vmatpush1.msra.mxu0 0.0
      %1132 = vmatprep.subr.mxu0 0.0
      %1133 = vmatpush1.msra.mxu0 0.0
      %1134 = vmatprep.subr.mxu0 0.0
      %1135 = vmatpush1.msra.mxu0 0.0
      %1136 = vmatprep.subr.mxu0 0.0
      %1137 = vmatpush1.msra.mxu0 0.0
      %1138 = vmatprep.subr.mxu0 0.0
      %1139 = vmatpush1.msra.mxu0 0.0
      %1140 = vmatprep.subr.mxu0 0.0
      %1141 = vmatpush1.msra.mxu0 0.0
      %1142 = vmatprep.subr.mxu0 0.0
      %1143 = vmatpush1.msra.mxu0 0.0
      %1144 = vmatprep.subr.mxu0 0.0
      %1145 = vmatpush1.msra.mxu0 0.0
      %1146 = vmatprep.subr.mxu0 0.0
      %1147 = vmatpush1.msra.mxu0 0.0
      %1148 = vmatprep.subr.mxu0 0.0
      %1149 = vmatpush1.msra.mxu0 0.0
      %1150 = vmatprep.subr.mxu0 0.0
      %1151 = vmatpush1.msra.mxu0 0.0
      %1152 = vmatprep.subr.mxu0 0.0
      %1153 = vmatpush1.msra.mxu0 0.0
      %1154 = vmatprep.subr.mxu0 0.0
      %1155 = vmatpush1.msra.mxu0 0.0
      %1156 = vmatprep.subr.mxu0 0.0
      %1157 = vmatpush1.msra.mxu0 0.0
      %1158 = vmatprep.subr.mxu0 0.0
      %1159 = vmatpush1.msra.mxu0 0.0
      %1160 = vmatprep.subr.mxu0 0.0
      %1161 = vmatpush1.msra.mxu0 0.0
      %1162 = vmatprep.subr.mxu0 0.0
      %1163 = vmatpush1.msra.mxu0 0.0
      %1164 = vmatprep.subr.mxu0 0.0
      %1165 = vmatpush1.msra.mxu0 0.0
      %1166 = vmatprep.subr.mxu0 0.0
      %1167 = vmatpush1.msra.mxu0 0.0
      %1168 = vmatprep.subr.mxu0 0.0
      %1169 = vmatpush1.msra.mxu0 0.0
      %1170 = vmatprep.subr.mxu0 0.0
      %1171 = vmatpush1.msra.mxu0 0.0
      %1172 = vmatprep.subr.mxu0 0.0
      %1173 = vmatpush1.msra.mxu0 0.0
      %1174 = vmatprep.subr.mxu0 0.0
      %1175 = vmatpush1.msra.mxu0 0.0
      %1176 = vmatprep.subr.mxu0 0.0
      %1177 = vmatpush1.msra.mxu0 0.0
      %1178 = vmatprep.subr.mxu0 0.0
      %1179 = vmatpush1.msra.mxu0 0.0
      %1180 = vmatprep.subr.mxu0 0.0
      %1181 = vmatpush1.msra.mxu0 0.0
      %1182 = vmatprep.subr.mxu0 0.0
      %1183 = vmatpush1.msra.mxu0 0.0
      %1184 = vmatprep.subr.mxu0 0.0
      %1185 = vmatpush1.msra.mxu0 0.0
      %1186 = vmatprep.mubr.f32.mxu0 0.0
      %1187 = vmatmul.mubr.f32.gmra.mrb[0].mxu0 %v1024
      %v1188 = vpop.f32.mrb[0].mxu0
      %v1189 = vadd.f32 0.0, %v1188
      %v1190 = vpop.f32.mrb[0].mxu0
      %1191 = vmatprep.mubr.f32.mxu0 0.0
      %1192 = vmatmul.mubr.f32.gmra.mrb[0].mxu0 %v1027
      %v1193 = vpop.f32.mrb[0].mxu0
      %v1194 = vadd.f32 0.0, %v1193
      %v1195 = vpop.f32.mrb[0].mxu0
      %1196 = vmatprep.mubr.f32.mxu0 0.0
      %1197 = vmatmul.mubr.f32.gmra.mrb[0].mxu0 %v1030
      %v1198 = vpop.f32.mrb[0].mxu0
      %v1199 = vadd.f32 0.0, %v1198
      %v1200 = vpop.f32.mrb[0].mxu0
      %1201 = vmatprep.mubr.f32.mxu0 0.0
      %1202 = vmatmul.mubr.f32.gmra.mrb[0].mxu0 %v1033
      %v1203 = vpop.f32.mrb[0].mxu0
      %v1204 = vadd.f32 0.0, %v1203
      %v1205 = vpop.f32.mrb[0].mxu0
      %1206 = vmatprep.mubr.f32.mxu0 0.0
      %1207 = vmatmul.mubr.f32.gmra.mrb[0].mxu0 %v1036
      %v1208 = vpop.f32.mrb[0].mxu0
      %v1209 = vadd.f32 0.0, %v1208
      %v1210 = vpop.f32.mrb[0].mxu0
      %1211 = vmatprep.mubr.f32.mxu0 0.0
      %1212 = vmatmul.mubr.f32.gmra.mrb[0].mxu0 %v1039
      %v1213 = vpop.f32.mrb[0].mxu0
      %v1214 = vadd.f32 0.0, %v1213
      %v1215 = vpop.f32.mrb[0].mxu0
      %1216 = vmatprep.mubr.f32.mxu0 0.0
      %1217 = vmatmul.mubr.f32.gmra.mrb[0].mxu0 %v1042
      %v1218 = vpop.f32.mrb[0].mxu0
      %v1219 = vadd.f32 0.0, %v1218
      %v1220 = vpop.f32.mrb[0].mxu0
      %1221 = vmatprep.mubr.f32.mxu0 0.0
      %1222 = vmatmul.mubr.f32.gmra.mrb[0].mxu0 %v1045
      %v1223 = vpop.f32.mrb[0].mxu0
      %v1224 = vadd.f32 0.0, %v1223
      %v1225 = vpop.f32.mrb[0].mxu0
      %1226 = vmatprep.mubr.f32.mxu0 0.0
      %1227 = vmatmul.mubr.f32.gmra.mrb[0].mxu0 %v1048
      %v1228 = vpop.f32.mrb[0].mxu0
      %v1229 = vadd.f32 0.0, %v1228
      %v1230 = vpop.f32.mrb[0].mxu0
      %1231 = vmatprep.mubr.f32.mxu0 0.0
      %1232 = vmatmul.mubr.f32.gmra.mrb[0].mxu0 %v1051
      %v1233 = vpop.f32.mrb[0].mxu0
      %v1234 = vadd.f32 0.0, %v1233
      %v1235 = vpop.f32.mrb[0].mxu0
      %1236 = vmatprep.mubr.f32.mxu0 0.0
      %1237 = vmatmul.mubr.f32.gmra.mrb[0].mxu0 %v1054
      %v1238 = vpop.f32.mrb[0].mxu0
      %v1239 = vadd.f32 0.0, %v1238
      %v1240 = vpop.f32.mrb[0].mxu0
      %1241 = vmatprep.mubr.f32.mxu0 0.0
      %1242 = vmatmul.mubr.f32.gmra.mrb[0].mxu0 %v1057
      %v1243 = vpop.f32.mrb[0].mxu0
      %v1244 = vadd.f32 0.0, %v1243
      %v1245 = vpop.f32.mrb[0].mxu0
      %1246 = vmatprep.mubr.f32.mxu0 0.0
      %1247 = vmatmul.mubr.f32.gmra.mrb[0].mxu0 %v1060
      %v1248 = vpop.f32.mrb[0].mxu0
      %v1249 = vadd.f32 0.0, %v1248
      %v1250 = vpop.f32.mrb[0].mxu0
      %1251 = vmatprep.mubr.f32.mxu0 0.0
      %1252 = vmatmul.mubr.f32.gmra.mrb[0].mxu0 %v1063
      %v1253 = vpop.f32.mrb[0].mxu0
      %v1254 = vadd.f32 0.0, %v1253
      %v1255 = vpop.f32.mrb[0].mxu0
      %1256 = vmatprep.mubr.f32.mxu0 0.0
      %1257 = vmatmul.mubr.f32.gmra.mrb[0].mxu0 %v1066
      %v1258 = vpop.f32.mrb[0].mxu0
      %v1259 = vadd.f32 0.0, %v1258
      %v1260 = vpop.f32.mrb[0].mxu0
      %1261 = vmatprep.mubr.f32.mxu0 0.0
      %1262 = vmatmul.mubr.f32.gmra.mrb[0].mxu0 %v1069
      %v1263 = vpop.f32.mrb[0].mxu0
      %v1264 = vadd.f32 0.0, %v1263
      %v1265 = vpop.f32.mrb[0].mxu0
      %1266 = vmatprep.mubr.f32.mxu0 0.0
      %1267 = vmatmul.mubr.f32.gmra.mrb[0].mxu0 %v1072
      %v1268 = vpop.f32.mrb[0].mxu0
      %v1269 = vadd.f32 0.0, %v1268
      %v1270 = vpop.f32.mrb[0].mxu0
      %1271 = vmatprep.mubr.f32.mxu0 0.0
      %1272 = vmatmul.mubr.f32.gmra.mrb[0].mxu0 %v1075
      %v1273 = vpop.f32.mrb[0].mxu0
      %v1274 = vadd.f32 0.0, %v1273
      %v1275 = vpop.f32.mrb[0].mxu0
      %1276 = vmatprep.mubr.f32.mxu0 0.0
      %1277 = vmatmul.mubr.f32.gmra.mrb[0].mxu0 %v1078
      %v1278 = vpop.f32.mrb[0].mxu0
      %v1279 = vadd.f32 0.0, %v1278
      %v1280 = vpop.f32.mrb[0].mxu0
      %1281 = vmatprep.mubr.f32.mxu0 0.0
      %1282 = vmatmul.mubr.f32.gmra.mrb[0].mxu0 %v1081
      %v1283 = vpop.f32.mrb[0].mxu0
      %v1284 = vadd.f32 0.0, %v1283
      %v1285 = vpop.f32.mrb[0].mxu0
      %1286 = vmatprep.mubr.f32.mxu0 0.0
      %1287 = vmatmul.mubr.f32.gmra.mrb[0].mxu0 %v1084
      %v1288 = vpop.f32.mrb[0].mxu0
      %v1289 = vadd.f32 0.0, %v1288
      %v1290 = vpop.f32.mrb[0].mxu0
      %1291 = vmatprep.mubr.f32.mxu0 0.0
      %1292 = vmatmul.mubr.f32.gmra.mrb[0].mxu0 %v1087
      %v1293 = vpop.f32.mrb[0].mxu0
      %v1294 = vadd.f32 0.0, %v1293
      %v1295 = vpop.f32.mrb[0].mxu0
      %1296 = vmatprep.mubr.f32.mxu0 0.0
      %1297 = vmatmul.mubr.f32.gmra.mrb[0].mxu0 %v1090
      %v1298 = vpop.f32.mrb[0].mxu0
      %v1299 = vadd.f32 0.0, %v1298
      %v1300 = vpop.f32.mrb[0].mxu0
      %1301 = vmatprep.mubr.f32.mxu0 0.0
      %1302 = vmatmul.mubr.f32.gmra.mrb[0].mxu0 %v1093
      %v1303 = vpop.f32.mrb[0].mxu0
      %v1304 = vadd.f32 0.0, %v1303
      %v1305 = vpop.f32.mrb[0].mxu0
      %1306 = vmatprep.mubr.f32.mxu0 0.0
      %1307 = vmatmul.mubr.f32.gmra.mrb[0].mxu0 %v1096
      %v1308 = vpop.f32.mrb[0].mxu0
      %v1309 = vadd.f32 0.0, %v1308
      %v1310 = vpop.f32.mrb[0].mxu0
      %1311 = vmatprep.mubr.f32.mxu0 0.0
      %1312 = vmatmul.mubr.f32.gmra.mrb[0].mxu0 %v1099
      %v1313 = vpop.f32.mrb[0].mxu0
      %v1314 = vadd.f32 0.0, %v1313
      %v1315 = vpop.f32.mrb[0].mxu0
      %1316 = vmatprep.mubr.f32.mxu0 0.0
      %1317 = vmatmul.mubr.f32.gmra.mrb[0].mxu0 %v1102
      %v1318 = vpop.f32.mrb[0].mxu0
      %v1319 = vadd.f32 0.0, %v1318
      %v1320 = vpop.f32.mrb[0].mxu0
      %1321 = vmatprep.mubr.f32.mxu0 0.0
      %1322 = vmatmul.mubr.f32.gmra.mrb[0].mxu0 %v1105
      %v1323 = vpop.f32.mrb[0].mxu0
      %v1324 = vadd.f32 0.0, %v1323
      %v1325 = vpop.f32.mrb[0].mxu0
      %1326 = vmatprep.mubr.f32.mxu0 0.0
      %1327 = vmatmul.mubr.f32.gmra.mrb[0].mxu0 %v1108
      %v1328 = vpop.f32.mrb[0].mxu0
      %v1329 = vadd.f32 0.0, %v1328
      %v1330 = vpop.f32.mrb[0].mxu0
      %1331 = vmatprep.mubr.f32.mxu0 0.0
      %1332 = vmatmul.mubr.f32.gmra.mrb[0].mxu0 %v1111
      %v1333 = vpop.f32.mrb[0].mxu0
      %v1334 = vadd.f32 0.0, %v1333
      %v1335 = vpop.f32.mrb[0].mxu0
      %1336 = vmatprep.mubr.f32.mxu0 0.0
      %1337 = vmatmul.mubr.f32.gmra.mrb[0].mxu0 %v1114
      %v1338 = vpop.f32.mrb[0].mxu0
      %v1339 = vadd.f32 0.0, %v1338
      %v1340 = vpop.f32.mrb[0].mxu0
      %1341 = vmatprep.mubr.f32.mxu0 0.0
      %1342 = vmatmul.mubr.f32.gmra.mrb[0].mxu0 %v1117
      %v1343 = vpop.f32.mrb[0].mxu0
      %v1344 = vadd.f32 0.0, %v1343
      %v1345 = vpop.f32.mrb[0].mxu0
      %1346 = vdwg.mxu0
      %v1347 = vadd.f32 %v830, %v1189
      %v1348 = vadd.f32 %v835, %v1194
      %v1349 = vadd.f32 %v840, %v1199
      %v1350 = vadd.f32 %v845, %v1204
      %v1351 = vadd.f32 %v850, %v1209
      %v1352 = vadd.f32 %v855, %v1214
      %v1353 = vadd.f32 %v860, %v1219
      %v1354 = vadd.f32 %v865, %v1224
      %v1355 = vadd.f32 %v870, %v1229
      %v1356 = vadd.f32 %v875, %v1234
      %v1357 = vadd.f32 %v880, %v1239
      %v1358 = vadd.f32 %v885, %v1244
      %v1359 = vadd.f32 %v890, %v1249
      %v1360 = vadd.f32 %v895, %v1254
      %v1361 = vadd.f32 %v900, %v1259
      %v1362 = vadd.f32 %v905, %v1264
      %v1363 = vadd.f32 %v910, %v1269
      %v1364 = vadd.f32 %v915, %v1274
      %v1365 = vadd.f32 %v920, %v1279
      %v1366 = vadd.f32 %v925, %v1284
      %v1367 = vadd.f32 %v930, %v1289
      %v1368 = vadd.f32 %v935, %v1294
      %v1369 = vadd.f32 %v940, %v1299
      %v1370 = vadd.f32 %v945, %v1304
      %v1371 = vadd.f32 %v950, %v1309
      %v1372 = vadd.f32 %v955, %v1314
      %v1373 = vadd.f32 %v960, %v1319
      %v1374 = vadd.f32 %v965, %v1324
      %v1375 = vadd.f32 %v970, %v1329
      %v1376 = vadd.f32 %v975, %v1334
      %v1377 = vadd.f32 %v980, %v1339
      %v1378 = vadd.f32 %v985, %v1344
      %s1379 = scalar_lea.vmem %s243, 24
      %v1380 = vld [vmem:[%s1379] sm:$0xff]
      %v1381 = vld [vmem:[%s1379 + $0x8] sm:$0xff]
      %v1382 = vld [vmem:[%s1379 + $0x18] sm:$0xff]
      %v1383 = vld [vmem:[%s1379 + $0x20] sm:$0xff]
      %v1384 = vld [vmem:[%s1379 + $0x30] sm:$0xff]
      %v1385 = vld [vmem:[%s1379 + $0x38] sm:$0xff]
      %v1386 = vld [vmem:[%s1379 + $0x48] sm:$0xff]
      %v1387 = vld [vmem:[%s1379 + $0x50] sm:$0xff]
      %v1388 = vld [vmem:[%s1379 + $0x60] sm:$0xff]
      %v1389 = vld [vmem:[%s1379 + $0x68] sm:$0xff]
      %v1390 = vld [vmem:[%s1379 + $0x78] sm:$0xff]
      %v1391 = vld [vmem:[%s1379 + $0x80] sm:$0xff]
      %v1392 = vld [vmem:[%s1379 + $0x90] sm:$0xff]
      %v1393 = vld [vmem:[%s1379 + $0x98] sm:$0xff]
      %v1394 = vld [vmem:[%s1379 + $0xa8] sm:$0xff]
      %v1395 = vld [vmem:[%s1379 + $0xb0] sm:$0xff]
      %v1396 = vld [vmem:[%s1379 + $0xc0] sm:$0xff]
      %v1397 = vld [vmem:[%s1379 + $0xc8] sm:$0xff]
      %v1398 = vld [vmem:[%s1379 + $0xd8] sm:$0xff]
      %v1399 = vld [vmem:[%s1379 + $0xe0] sm:$0xff]
      %v1400 = vld [vmem:[%s1379 + $0xf0] sm:$0xff]
      %v1401 = vld [vmem:[%s1379 + $0xf8] sm:$0xff]
      %v1402 = vld [vmem:[%s1379 + $0x108] sm:$0xff]
      %v1403 = vld [vmem:[%s1379 + $0x110] sm:$0xff]
      %v1404 = vld [vmem:[%s1379 + $0x120] sm:$0xff]
      %v1405 = vld [vmem:[%s1379 + $0x128] sm:$0xff]
      %v1406 = vld [vmem:[%s1379 + $0x138] sm:$0xff]
      %v1407 = vld [vmem:[%s1379 + $0x140] sm:$0xff]
      %v1408 = vld [vmem:[%s1379 + $0x150] sm:$0xff]
      %v1409 = vld [vmem:[%s1379 + $0x158] sm:$0xff]
      %v1410 = vld [vmem:[%s1379 + $0x168] sm:$0xff]
      %v1411 = vld [vmem:[%s1379 + $0x170] sm:$0xff]
      %s1412 = scalar_lea.vmem %s247, 6
      %v1413 = vld [vmem:[%s1412] sm:$0x3]
      %v1414 = vunpack.c.l.bf16 %v1413
      %v1416 = vsel %vm338, %v1380, 0
      %v1419 = vsel %vm338, %v1381, 0
      %v1422 = vsel %vm338, %v1382, 0
      %v1425 = vsel %vm338, %v1383, 0
      %v1428 = vsel %vm338, %v1384, 0
      %v1431 = vsel %vm338, %v1385, 0
      %v1434 = vsel %vm338, %v1386, 0
      %v1437 = vsel %vm338, %v1387, 0
      %v1440 = vsel %vm338, %v1388, 0
      %v1443 = vsel %vm338, %v1389, 0
      %v1446 = vsel %vm338, %v1390, 0
      %v1449 = vsel %vm338, %v1391, 0
      %v1452 = vsel %vm338, %v1392, 0
      %v1455 = vsel %vm338, %v1393, 0
      %v1458 = vsel %vm338, %v1394, 0
      %v1461 = vsel %vm338, %v1395, 0
      %v1464 = vsel %vm338, %v1396, 0
      %v1467 = vsel %vm338, %v1397, 0
      %v1470 = vsel %vm338, %v1398, 0
      %v1473 = vsel %vm338, %v1399, 0
      %v1476 = vsel %vm338, %v1400, 0
      %v1479 = vsel %vm338, %v1401, 0
      %v1482 = vsel %vm338, %v1402, 0
      %v1485 = vsel %vm338, %v1403, 0
      %v1488 = vsel %vm338, %v1404, 0
      %v1491 = vsel %vm338, %v1405, 0
      %v1494 = vsel %vm338, %v1406, 0
      %v1497 = vsel %vm338, %v1407, 0
      %v1500 = vsel %vm338, %v1408, 0
      %v1503 = vsel %vm338, %v1409, 0
      %v1506 = vsel %vm338, %v1410, 0
      %v1509 = vsel %vm338, %v1411, 0
      %v1512 = vsel %vm435, %v1414, 0
      %1514 = vmatprep.subr.mxu0 0.0
      %1515 = vmatpush1.msra.mxu0 %v1512
      %1516 = vmatprep.subr.mxu0 0.0
      %1517 = vmatpush1.msra.mxu0 0.0
      %1518 = vmatprep.subr.mxu0 0.0
      %1519 = vmatpush1.msra.mxu0 0.0
      %1520 = vmatprep.subr.mxu0 0.0
      %1521 = vmatpush1.msra.mxu0 0.0
      %1522 = vmatprep.subr.mxu0 0.0
      %1523 = vmatpush1.msra.mxu0 0.0
      %1524 = vmatprep.subr.mxu0 0.0
      %1525 = vmatpush1.msra.mxu0 0.0
      %1526 = vmatprep.subr.mxu0 0.0
      %1527 = vmatpush1.msra.mxu0 0.0
      %1528 = vmatprep.subr.mxu0 0.0
      %1529 = vmatpush1.msra.mxu0 0.0
      %1530 = vmatprep.subr.mxu0 0.0
      %1531 = vmatpush1.msra.mxu0 0.0
      %1532 = vmatprep.subr.mxu0 0.0
      %1533 = vmatpush1.msra.mxu0 0.0
      %1534 = vmatprep.subr.mxu0 0.0
      %1535 = vmatpush1.msra.mxu0 0.0
      %1536 = vmatprep.subr.mxu0 0.0
      %1537 = vmatpush1.msra.mxu0 0.0
      %1538 = vmatprep.subr.mxu0 0.0
      %1539 = vmatpush1.msra.mxu0 0.0
      %1540 = vmatprep.subr.mxu0 0.0
      %1541 = vmatpush1.msra.mxu0 0.0
      %1542 = vmatprep.subr.mxu0 0.0
      %1543 = vmatpush1.msra.mxu0 0.0
      %1544 = vmatprep.subr.mxu0 0.0
      %1545 = vmatpush1.msra.mxu0 0.0
      %1546 = vmatprep.subr.mxu0 0.0
      %1547 = vmatpush1.msra.mxu0 0.0
      %1548 = vmatprep.subr.mxu0 0.0
      %1549 = vmatpush1.msra.mxu0 0.0
      %1550 = vmatprep.subr.mxu0 0.0
      %1551 = vmatpush1.msra.mxu0 0.0
      %1552 = vmatprep.subr.mxu0 0.0
      %1553 = vmatpush1.msra.mxu0 0.0
      %1554 = vmatprep.subr.mxu0 0.0
      %1555 = vmatpush1.msra.mxu0 0.0
      %1556 = vmatprep.subr.mxu0 0.0
      %1557 = vmatpush1.msra.mxu0 0.0
      %1558 = vmatprep.subr.mxu0 0.0
      %1559 = vmatpush1.msra.mxu0 0.0
      %1560 = vmatprep.subr.mxu0 0.0
      %1561 = vmatpush1.msra.mxu0 0.0
      %1562 = vmatprep.subr.mxu0 0.0
      %1563 = vmatpush1.msra.mxu0 0.0
      %1564 = vmatprep.subr.mxu0 0.0
      %1565 = vmatpush1.msra.mxu0 0.0
      %1566 = vmatprep.subr.mxu0 0.0
      %1567 = vmatpush1.msra.mxu0 0.0
      %1568 = vmatprep.subr.mxu0 0.0
      %1569 = vmatpush1.msra.mxu0 0.0
      %1570 = vmatprep.subr.mxu0 0.0
      %1571 = vmatpush1.msra.mxu0 0.0
      %1572 = vmatprep.subr.mxu0 0.0
      %1573 = vmatpush1.msra.mxu0 0.0
      %1574 = vmatprep.subr.mxu0 0.0
      %1575 = vmatpush1.msra.mxu0 0.0
      %1576 = vmatprep.subr.mxu0 0.0
      %1577 = vmatpush1.msra.mxu0 0.0
      %1578 = vmatprep.mubr.f32.mxu0 0.0
      %1579 = vmatmul.mubr.f32.gmra.mrb[0].mxu0 %v1416
      %v1580 = vpop.f32.mrb[0].mxu0
      %v1581 = vadd.f32 0.0, %v1580
      %v1582 = vpop.f32.mrb[0].mxu0
      %1583 = vmatprep.mubr.f32.mxu0 0.0
      %1584 = vmatmul.mubr.f32.gmra.mrb[0].mxu0 %v1419
      %v1585 = vpop.f32.mrb[0].mxu0
      %v1586 = vadd.f32 0.0, %v1585
      %v1587 = vpop.f32.mrb[0].mxu0
      %1588 = vmatprep.mubr.f32.mxu0 0.0
      %1589 = vmatmul.mubr.f32.gmra.mrb[0].mxu0 %v1422
      %v1590 = vpop.f32.mrb[0].mxu0
      %v1591 = vadd.f32 0.0, %v1590
      %v1592 = vpop.f32.mrb[0].mxu0
      %1593 = vmatprep.mubr.f32.mxu0 0.0
      %1594 = vmatmul.mubr.f32.gmra.mrb[0].mxu0 %v1425
      %v1595 = vpop.f32.mrb[0].mxu0
      %v1596 = vadd.f32 0.0, %v1595
      %v1597 = vpop.f32.mrb[0].mxu0
      %1598 = vmatprep.mubr.f32.mxu0 0.0
      %1599 = vmatmul.mubr.f32.gmra.mrb[0].mxu0 %v1428
      %v1600 = vpop.f32.mrb[0].mxu0
      %v1601 = vadd.f32 0.0, %v1600
      %v1602 = vpop.f32.mrb[0].mxu0
      %1603 = vmatprep.mubr.f32.mxu0 0.0
      %1604 = vmatmul.mubr.f32.gmra.mrb[0].mxu0 %v1431
      %v1605 = vpop.f32.mrb[0].mxu0
      %v1606 = vadd.f32 0.0, %v1605
      %v1607 = vpop.f32.mrb[0].mxu0
      %1608 = vmatprep.mubr.f32.mxu0 0.0
      %1609 = vmatmul.mubr.f32.gmra.mrb[0].mxu0 %v1434
      %v1610 = vpop.f32.mrb[0].mxu0
      %v1611 = vadd.f32 0.0, %v1610
      %v1612 = vpop.f32.mrb[0].mxu0
      %1613 = vmatprep.mubr.f32.mxu0 0.0
      %1614 = vmatmul.mubr.f32.gmra.mrb[0].mxu0 %v1437
      %v1615 = vpop.f32.mrb[0].mxu0
      %v1616 = vadd.f32 0.0, %v1615
      %v1617 = vpop.f32.mrb[0].mxu0
      %1618 = vmatprep.mubr.f32.mxu0 0.0
      %1619 = vmatmul.mubr.f32.gmra.mrb[0].mxu0 %v1440
      %v1620 = vpop.f32.mrb[0].mxu0
      %v1621 = vadd.f32 0.0, %v1620
      %v1622 = vpop.f32.mrb[0].mxu0
      %1623 = vmatprep.mubr.f32.mxu0 0.0
      %1624 = vmatmul.mubr.f32.gmra.mrb[0].mxu0 %v1443
      %v1625 = vpop.f32.mrb[0].mxu0
      %v1626 = vadd.f32 0.0, %v1625
      %v1627 = vpop.f32.mrb[0].mxu0
      %1628 = vmatprep.mubr.f32.mxu0 0.0
      %1629 = vmatmul.mubr.f32.gmra.mrb[0].mxu0 %v1446
      %v1630 = vpop.f32.mrb[0].mxu0
      %v1631 = vadd.f32 0.0, %v1630
      %v1632 = vpop.f32.mrb[0].mxu0
      %1633 = vmatprep.mubr.f32.mxu0 0.0
      %1634 = vmatmul.mubr.f32.gmra.mrb[0].mxu0 %v1449
      %v1635 = vpop.f32.mrb[0].mxu0
      %v1636 = vadd.f32 0.0, %v1635
      %v1637 = vpop.f32.mrb[0].mxu0
      %1638 = vmatprep.mubr.f32.mxu0 0.0
      %1639 = vmatmul.mubr.f32.gmra.mrb[0].mxu0 %v1452
      %v1640 = vpop.f32.mrb[0].mxu0
      %v1641 = vadd.f32 0.0, %v1640
      %v1642 = vpop.f32.mrb[0].mxu0
      %1643 = vmatprep.mubr.f32.mxu0 0.0
      %1644 = vmatmul.mubr.f32.gmra.mrb[0].mxu0 %v1455
      %v1645 = vpop.f32.mrb[0].mxu0
      %v1646 = vadd.f32 0.0, %v1645
      %v1647 = vpop.f32.mrb[0].mxu0
      %1648 = vmatprep.mubr.f32.mxu0 0.0
      %1649 = vmatmul.mubr.f32.gmra.mrb[0].mxu0 %v1458
      %v1650 = vpop.f32.mrb[0].mxu0
      %v1651 = vadd.f32 0.0, %v1650
      %v1652 = vpop.f32.mrb[0].mxu0
      %1653 = vmatprep.mubr.f32.mxu0 0.0
      %1654 = vmatmul.mubr.f32.gmra.mrb[0].mxu0 %v1461
      %v1655 = vpop.f32.mrb[0].mxu0
      %v1656 = vadd.f32 0.0, %v1655
      %v1657 = vpop.f32.mrb[0].mxu0
      %1658 = vmatprep.mubr.f32.mxu0 0.0
      %1659 = vmatmul.mubr.f32.gmra.mrb[0].mxu0 %v1464
      %v1660 = vpop.f32.mrb[0].mxu0
      %v1661 = vadd.f32 0.0, %v1660
      %v1662 = vpop.f32.mrb[0].mxu0
      %1663 = vmatprep.mubr.f32.mxu0 0.0
      %1664 = vmatmul.mubr.f32.gmra.mrb[0].mxu0 %v1467
      %v1665 = vpop.f32.mrb[0].mxu0
      %v1666 = vadd.f32 0.0, %v1665
      %v1667 = vpop.f32.mrb[0].mxu0
      %1668 = vmatprep.mubr.f32.mxu0 0.0
      %1669 = vmatmul.mubr.f32.gmra.mrb[0].mxu0 %v1470
      %v1670 = vpop.f32.mrb[0].mxu0
      %v1671 = vadd.f32 0.0, %v1670
      %v1672 = vpop.f32.mrb[0].mxu0
      %1673 = vmatprep.mubr.f32.mxu0 0.0
      %1674 = vmatmul.mubr.f32.gmra.mrb[0].mxu0 %v1473
      %v1675 = vpop.f32.mrb[0].mxu0
      %v1676 = vadd.f32 0.0, %v1675
      %v1677 = vpop.f32.mrb[0].mxu0
      %1678 = vmatprep.mubr.f32.mxu0 0.0
      %1679 = vmatmul.mubr.f32.gmra.mrb[0].mxu0 %v1476
      %v1680 = vpop.f32.mrb[0].mxu0
      %v1681 = vadd.f32 0.0, %v1680
      %v1682 = vpop.f32.mrb[0].mxu0
      %1683 = vmatprep.mubr.f32.mxu0 0.0
      %1684 = vmatmul.mubr.f32.gmra.mrb[0].mxu0 %v1479
      %v1685 = vpop.f32.mrb[0].mxu0
      %v1686 = vadd.f32 0.0, %v1685
      %v1687 = vpop.f32.mrb[0].mxu0
      %1688 = vmatprep.mubr.f32.mxu0 0.0
      %1689 = vmatmul.mubr.f32.gmra.mrb[0].mxu0 %v1482
      %v1690 = vpop.f32.mrb[0].mxu0
      %v1691 = vadd.f32 0.0, %v1690
      %v1692 = vpop.f32.mrb[0].mxu0
      %1693 = vmatprep.mubr.f32.mxu0 0.0
      %1694 = vmatmul.mubr.f32.gmra.mrb[0].mxu0 %v1485
      %v1695 = vpop.f32.mrb[0].mxu0
      %v1696 = vadd.f32 0.0, %v1695
      %v1697 = vpop.f32.mrb[0].mxu0
      %1698 = vmatprep.mubr.f32.mxu0 0.0
      %1699 = vmatmul.mubr.f32.gmra.mrb[0].mxu0 %v1488
      %v1700 = vpop.f32.mrb[0].mxu0
      %v1701 = vadd.f32 0.0, %v1700
      %v1702 = vpop.f32.mrb[0].mxu0
      %1703 = vmatprep.mubr.f32.mxu0 0.0
      %1704 = vmatmul.mubr.f32.gmra.mrb[0].mxu0 %v1491
      %v1705 = vpop.f32.mrb[0].mxu0
      %v1706 = vadd.f32 0.0, %v1705
      %v1707 = vpop.f32.mrb[0].mxu0
      %1708 = vmatprep.mubr.f32.mxu0 0.0
      %1709 = vmatmul.mubr.f32.gmra.mrb[0].mxu0 %v1494
      %v1710 = vpop.f32.mrb[0].mxu0
      %v1711 = vadd.f32 0.0, %v1710
      %v1712 = vpop.f32.mrb[0].mxu0
      %1713 = vmatprep.mubr.f32.mxu0 0.0
      %1714 = vmatmul.mubr.f32.gmra.mrb[0].mxu0 %v1497
      %v1715 = vpop.f32.mrb[0].mxu0
      %v1716 = vadd.f32 0.0, %v1715
      %v1717 = vpop.f32.mrb[0].mxu0
      %1718 = vmatprep.mubr.f32.mxu0 0.0
      %1719 = vmatmul.mubr.f32.gmra.mrb[0].mxu0 %v1500
      %v1720 = vpop.f32.mrb[0].mxu0
      %v1721 = vadd.f32 0.0, %v1720
      %v1722 = vpop.f32.mrb[0].mxu0
      %1723 = vmatprep.mubr.f32.mxu0 0.0
      %1724 = vmatmul.mubr.f32.gmra.mrb[0].mxu0 %v1503
      %v1725 = vpop.f32.mrb[0].mxu0
      %v1726 = vadd.f32 0.0, %v1725
      %v1727 = vpop.f32.mrb[0].mxu0
      %1728 = vmatprep.mubr.f32.mxu0 0.0
      %1729 = vmatmul.mubr.f32.gmra.mrb[0].mxu0 %v1506
      %v1730 = vpop.f32.mrb[0].mxu0
      %v1731 = vadd.f32 0.0, %v1730
      %v1732 = vpop.f32.mrb[0].mxu0
      %1733 = vmatprep.mubr.f32.mxu0 0.0
      %1734 = vmatmul.mubr.f32.gmra.mrb[0].mxu0 %v1509
      %v1735 = vpop.f32.mrb[0].mxu0
      %v1736 = vadd.f32 0.0, %v1735
      %v1737 = vpop.f32.mrb[0].mxu0
      %1738 = vdwg.mxu0
      %v1739 = vadd.f32 %v1347, %v1581
      %v1740 = vadd.f32 %v1348, %v1586
      %v1741 = vadd.f32 %v1349, %v1591
      %v1742 = vadd.f32 %v1350, %v1596
      %v1743 = vadd.f32 %v1351, %v1601
      %v1744 = vadd.f32 %v1352, %v1606
      %v1745 = vadd.f32 %v1353, %v1611
      %v1746 = vadd.f32 %v1354, %v1616
      %v1747 = vadd.f32 %v1355, %v1621
      %v1748 = vadd.f32 %v1356, %v1626
      %v1749 = vadd.f32 %v1357, %v1631
      %v1750 = vadd.f32 %v1358, %v1636
      %v1751 = vadd.f32 %v1359, %v1641
      %v1752 = vadd.f32 %v1360, %v1646
      %v1753 = vadd.f32 %v1361, %v1651
      %v1754 = vadd.f32 %v1362, %v1656
      %v1755 = vadd.f32 %v1363, %v1661
      %v1756 = vadd.f32 %v1364, %v1666
      %v1757 = vadd.f32 %v1365, %v1671
      %v1758 = vadd.f32 %v1366, %v1676
      %v1759 = vadd.f32 %v1367, %v1681
      %v1760 = vadd.f32 %v1368, %v1686
      %v1761 = vadd.f32 %v1369, %v1691
      %v1762 = vadd.f32 %v1370, %v1696
      %v1763 = vadd.f32 %v1371, %v1701
      %v1764 = vadd.f32 %v1372, %v1706
      %v1765 = vadd.f32 %v1373, %v1711
      %v1766 = vadd.f32 %v1374, %v1716
      %v1767 = vadd.f32 %v1375, %v1721
      %v1768 = vadd.f32 %v1376, %v1726
      %v1769 = vadd.f32 %v1377, %v1731
      %v1770 = vadd.f32 %v1378, %v1736
      %v1771 = vld [vmem:[%s1379 + $0x1] sm:$0xff]
      %v1772 = vld [vmem:[%s1379 + $0x9] sm:$0xff]
      %v1773 = vld [vmem:[%s1379 + $0x19] sm:$0xff]
      %v1774 = vld [vmem:[%s1379 + $0x21] sm:$0xff]
      %v1775 = vld [vmem:[%s1379 + $0x31] sm:$0xff]
      %v1776 = vld [vmem:[%s1379 + $0x39] sm:$0xff]
      %v1777 = vld [vmem:[%s1379 + $0x49] sm:$0xff]
      %v1778 = vld [vmem:[%s1379 + $0x51] sm:$0xff]
      %v1779 = vld [vmem:[%s1379 + $0x61] sm:$0xff]
      %v1780 = vld [vmem:[%s1379 + $0x69] sm:$0xff]
      %v1781 = vld [vmem:[%s1379 + $0x79] sm:$0xff]
      %v1782 = vld [vmem:[%s1379 + $0x81] sm:$0xff]
      %v1783 = vld [vmem:[%s1379 + $0x91] sm:$0xff]
      %v1784 = vld [vmem:[%s1379 + $0x99] sm:$0xff]
      %v1785 = vld [vmem:[%s1379 + $0xa9] sm:$0xff]
      %v1786 = vld [vmem:[%s1379 + $0xb1] sm:$0xff]
      %v1787 = vld [vmem:[%s1379 + $0xc1] sm:$0xff]
      %v1788 = vld [vmem:[%s1379 + $0xc9] sm:$0xff]
      %v1789 = vld [vmem:[%s1379 + $0xd9] sm:$0xff]
      %v1790 = vld [vmem:[%s1379 + $0xe1] sm:$0xff]
      %v1791 = vld [vmem:[%s1379 + $0xf1] sm:$0xff]
      %v1792 = vld [vmem:[%s1379 + $0xf9] sm:$0xff]
      %v1793 = vld [vmem:[%s1379 + $0x109] sm:$0xff]
      %v1794 = vld [vmem:[%s1379 + $0x111] sm:$0xff]
      %v1795 = vld [vmem:[%s1379 + $0x121] sm:$0xff]
      %v1796 = vld [vmem:[%s1379 + $0x129] sm:$0xff]
      %v1797 = vld [vmem:[%s1379 + $0x139] sm:$0xff]
      %v1798 = vld [vmem:[%s1379 + $0x141] sm:$0xff]
      %v1799 = vld [vmem:[%s1379 + $0x151] sm:$0xff]
      %v1800 = vld [vmem:[%s1379 + $0x159] sm:$0xff]
      %v1801 = vld [vmem:[%s1379 + $0x169] sm:$0xff]
      %v1802 = vld [vmem:[%s1379 + $0x171] sm:$0xff]
      %s1803 = scalar_lea.vmem %s247, 8
      %v1804 = vld [vmem:[%s1803] sm:$0x3]
      %v1805 = vunpack.c.l.bf16 %v1804
      %v1807 = vsel %vm338, %v1771, 0
      %v1810 = vsel %vm338, %v1772, 0
      %v1813 = vsel %vm338, %v1773, 0
      %v1816 = vsel %vm338, %v1774, 0
      %v1819 = vsel %vm338, %v1775, 0
      %v1822 = vsel %vm338, %v1776, 0
      %v1825 = vsel %vm338, %v1777, 0
      %v1828 = vsel %vm338, %v1778, 0
      %v1831 = vsel %vm338, %v1779, 0
      %v1834 = vsel %vm338, %v1780, 0
      %v1837 = vsel %vm338, %v1781, 0
      %v1840 = vsel %vm338, %v1782, 0
      %v1843 = vsel %vm338, %v1783, 0
      %v1846 = vsel %vm338, %v1784, 0
      %v1849 = vsel %vm338, %v1785, 0
      %v1852 = vsel %vm338, %v1786, 0
      %v1855 = vsel %vm338, %v1787, 0
      %v1858 = vsel %vm338, %v1788, 0
      %v1861 = vsel %vm338, %v1789, 0
      %v1864 = vsel %vm338, %v1790, 0
      %v1867 = vsel %vm338, %v1791, 0
      %v1870 = vsel %vm338, %v1792, 0
      %v1873 = vsel %vm338, %v1793, 0
      %v1876 = vsel %vm338, %v1794, 0
      %v1879 = vsel %vm338, %v1795, 0
      %v1882 = vsel %vm338, %v1796, 0
      %v1885 = vsel %vm338, %v1797, 0
      %v1888 = vsel %vm338, %v1798, 0
      %v1891 = vsel %vm338, %v1799, 0
      %v1894 = vsel %vm338, %v1800, 0
      %v1897 = vsel %vm338, %v1801, 0
      %v1900 = vsel %vm338, %v1802, 0
      %v1903 = vsel %vm435, %v1805, 0
      %1905 = vmatprep.subr.mxu0 0.0
      %1906 = vmatpush1.msra.mxu0 %v1903
      %1907 = vmatprep.subr.mxu0 0.0
      %1908 = vmatpush1.msra.mxu0 0.0
      %1909 = vmatprep.subr.mxu0 0.0
      %1910 = vmatpush1.msra.mxu0 0.0
      %1911 = vmatprep.subr.mxu0 0.0
      %1912 = vmatpush1.msra.mxu0 0.0
      %1913 = vmatprep.subr.mxu0 0.0
      %1914 = vmatpush1.msra.mxu0 0.0
      %1915 = vmatprep.subr.mxu0 0.0
      %1916 = vmatpush1.msra.mxu0 0.0
      %1917 = vmatprep.subr.mxu0 0.0
      %1918 = vmatpush1.msra.mxu0 0.0
      %1919 = vmatprep.subr.mxu0 0.0
      %1920 = vmatpush1.msra.mxu0 0.0
      %1921 = vmatprep.subr.mxu0 0.0
      %1922 = vmatpush1.msra.mxu0 0.0
      %1923 = vmatprep.subr.mxu0 0.0
      %1924 = vmatpush1.msra.mxu0 0.0
      %1925 = vmatprep.subr.mxu0 0.0
      %1926 = vmatpush1.msra.mxu0 0.0
      %1927 = vmatprep.subr.mxu0 0.0
      %1928 = vmatpush1.msra.mxu0 0.0
      %1929 = vmatprep.subr.mxu0 0.0
      %1930 = vmatpush1.msra.mxu0 0.0
      %1931 = vmatprep.subr.mxu0 0.0
      %1932 = vmatpush1.msra.mxu0 0.0
      %1933 = vmatprep.subr.mxu0 0.0
      %1934 = vmatpush1.msra.mxu0 0.0
      %1935 = vmatprep.subr.mxu0 0.0
      %1936 = vmatpush1.msra.mxu0 0.0
      %1937 = vmatprep.subr.mxu0 0.0
      %1938 = vmatpush1.msra.mxu0 0.0
      %1939 = vmatprep.subr.mxu0 0.0
      %1940 = vmatpush1.msra.mxu0 0.0
      %1941 = vmatprep.subr.mxu0 0.0
      %1942 = vmatpush1.msra.mxu0 0.0
      %1943 = vmatprep.subr.mxu0 0.0
      %1944 = vmatpush1.msra.mxu0 0.0
      %1945 = vmatprep.subr.mxu0 0.0
      %1946 = vmatpush1.msra.mxu0 0.0
      %1947 = vmatprep.subr.mxu0 0.0
      %1948 = vmatpush1.msra.mxu0 0.0
      %1949 = vmatprep.subr.mxu0 0.0
      %1950 = vmatpush1.msra.mxu0 0.0
      %1951 = vmatprep.subr.mxu0 0.0
      %1952 = vmatpush1.msra.mxu0 0.0
      %1953 = vmatprep.subr.mxu0 0.0
      %1954 = vmatpush1.msra.mxu0 0.0
      %1955 = vmatprep.subr.mxu0 0.0
      %1956 = vmatpush1.msra.mxu0 0.0
      %1957 = vmatprep.subr.mxu0 0.0
      %1958 = vmatpush1.msra.mxu0 0.0
      %1959 = vmatprep.subr.mxu0 0.0
      %1960 = vmatpush1.msra.mxu0 0.0
      %1961 = vmatprep.subr.mxu0 0.0
      %1962 = vmatpush1.msra.mxu0 0.0
      %1963 = vmatprep.subr.mxu0 0.0
      %1964 = vmatpush1.msra.mxu0 0.0
      %1965 = vmatprep.subr.mxu0 0.0
      %1966 = vmatpush1.msra.mxu0 0.0
      %1967 = vmatprep.subr.mxu0 0.0
      %1968 = vmatpush1.msra.mxu0 0.0
      %1969 = vmatprep.mubr.f32.mxu0 0.0
      %1970 = vmatmul.mubr.f32.gmra.mrb[0].mxu0 %v1807
      %v1971 = vpop.f32.mrb[0].mxu0
      %v1972 = vadd.f32 0.0, %v1971
      %v1973 = vpop.f32.mrb[0].mxu0
      %1974 = vmatprep.mubr.f32.mxu0 0.0
      %1975 = vmatmul.mubr.f32.gmra.mrb[0].mxu0 %v1810
      %v1976 = vpop.f32.mrb[0].mxu0
      %v1977 = vadd.f32 0.0, %v1976
      %v1978 = vpop.f32.mrb[0].mxu0
      %1979 = vmatprep.mubr.f32.mxu0 0.0
      %1980 = vmatmul.mubr.f32.gmra.mrb[0].mxu0 %v1813
      %v1981 = vpop.f32.mrb[0].mxu0
      %v1982 = vadd.f32 0.0, %v1981
      %v1983 = vpop.f32.mrb[0].mxu0
      %1984 = vmatprep.mubr.f32.mxu0 0.0
      %1985 = vmatmul.mubr.f32.gmra.mrb[0].mxu0 %v1816
      %v1986 = vpop.f32.mrb[0].mxu0
      %v1987 = vadd.f32 0.0, %v1986
      %v1988 = vpop.f32.mrb[0].mxu0
      %1989 = vmatprep.mubr.f32.mxu0 0.0
      %1990 = vmatmul.mubr.f32.gmra.mrb[0].mxu0 %v1819
      %v1991 = vpop.f32.mrb[0].mxu0
      %v1992 = vadd.f32 0.0, %v1991
      %v1993 = vpop.f32.mrb[0].mxu0
      %1994 = vmatprep.mubr.f32.mxu0 0.0
      %1995 = vmatmul.mubr.f32.gmra.mrb[0].mxu0 %v1822
      %v1996 = vpop.f32.mrb[0].mxu0
      %v1997 = vadd.f32 0.0, %v1996
      %v1998 = vpop.f32.mrb[0].mxu0
      %1999 = vmatprep.mubr.f32.mxu0 0.0
      %2000 = vmatmul.mubr.f32.gmra.mrb[0].mxu0 %v1825
      %v2001 = vpop.f32.mrb[0].mxu0
      %v2002 = vadd.f32 0.0, %v2001
      %v2003 = vpop.f32.mrb[0].mxu0
      %2004 = vmatprep.mubr.f32.mxu0 0.0
      %2005 = vmatmul.mubr.f32.gmra.mrb[0].mxu0 %v1828
      %v2006 = vpop.f32.mrb[0].mxu0
      %v2007 = vadd.f32 0.0, %v2006
      %v2008 = vpop.f32.mrb[0].mxu0
      %2009 = vmatprep.mubr.f32.mxu0 0.0
      %2010 = vmatmul.mubr.f32.gmra.mrb[0].mxu0 %v1831
      %v2011 = vpop.f32.mrb[0].mxu0
      %v2012 = vadd.f32 0.0, %v2011
      %v2013 = vpop.f32.mrb[0].mxu0
      %2014 = vmatprep.mubr.f32.mxu0 0.0
      %2015 = vmatmul.mubr.f32.gmra.mrb[0].mxu0 %v1834
      %v2016 = vpop.f32.mrb[0].mxu0
      %v2017 = vadd.f32 0.0, %v2016
      %v2018 = vpop.f32.mrb[0].mxu0
      %2019 = vmatprep.mubr.f32.mxu0 0.0
      %2020 = vmatmul.mubr.f32.gmra.mrb[0].mxu0 %v1837
      %v2021 = vpop.f32.mrb[0].mxu0
      %v2022 = vadd.f32 0.0, %v2021
      %v2023 = vpop.f32.mrb[0].mxu0
      %2024 = vmatprep.mubr.f32.mxu0 0.0
      %2025 = vmatmul.mubr.f32.gmra.mrb[0].mxu0 %v1840
      %v2026 = vpop.f32.mrb[0].mxu0
      %v2027 = vadd.f32 0.0, %v2026
      %v2028 = vpop.f32.mrb[0].mxu0
      %2029 = vmatprep.mubr.f32.mxu0 0.0
      %2030 = vmatmul.mubr.f32.gmra.mrb[0].mxu0 %v1843
      %v2031 = vpop.f32.mrb[0].mxu0
      %v2032 = vadd.f32 0.0, %v2031
      %v2033 = vpop.f32.mrb[0].mxu0
      %2034 = vmatprep.mubr.f32.mxu0 0.0
      %2035 = vmatmul.mubr.f32.gmra.mrb[0].mxu0 %v1846
      %v2036 = vpop.f32.mrb[0].mxu0
      %v2037 = vadd.f32 0.0, %v2036
      %v2038 = vpop.f32.mrb[0].mxu0
      %2039 = vmatprep.mubr.f32.mxu0 0.0
      %2040 = vmatmul.mubr.f32.gmra.mrb[0].mxu0 %v1849
      %v2041 = vpop.f32.mrb[0].mxu0
      %v2042 = vadd.f32 0.0, %v2041
      %v2043 = vpop.f32.mrb[0].mxu0
      %2044 = vmatprep.mubr.f32.mxu0 0.0
      %2045 = vmatmul.mubr.f32.gmra.mrb[0].mxu0 %v1852
      %v2046 = vpop.f32.mrb[0].mxu0
      %v2047 = vadd.f32 0.0, %v2046
      %v2048 = vpop.f32.mrb[0].mxu0
      %2049 = vmatprep.mubr.f32.mxu0 0.0
      %2050 = vmatmul.mubr.f32.gmra.mrb[0].mxu0 %v1855
      %v2051 = vpop.f32.mrb[0].mxu0
      %v2052 = vadd.f32 0.0, %v2051
      %v2053 = vpop.f32.mrb[0].mxu0
      %2054 = vmatprep.mubr.f32.mxu0 0.0
      %2055 = vmatmul.mubr.f32.gmra.mrb[0].mxu0 %v1858
      %v2056 = vpop.f32.mrb[0].mxu0
      %v2057 = vadd.f32 0.0, %v2056
      %v2058 = vpop.f32.mrb[0].mxu0
      %2059 = vmatprep.mubr.f32.mxu0 0.0
      %2060 = vmatmul.mubr.f32.gmra.mrb[0].mxu0 %v1861
      %v2061 = vpop.f32.mrb[0].mxu0
      %v2062 = vadd.f32 0.0, %v2061
      %v2063 = vpop.f32.mrb[0].mxu0
      %2064 = vmatprep.mubr.f32.mxu0 0.0
      %2065 = vmatmul.mubr.f32.gmra.mrb[0].mxu0 %v1864
      %v2066 = vpop.f32.mrb[0].mxu0
      %v2067 = vadd.f32 0.0, %v2066
      %v2068 = vpop.f32.mrb[0].mxu0
      %2069 = vmatprep.mubr.f32.mxu0 0.0
      %2070 = vmatmul.mubr.f32.gmra.mrb[0].mxu0 %v1867
      %v2071 = vpop.f32.mrb[0].mxu0
      %v2072 = vadd.f32 0.0, %v2071
      %v2073 = vpop.f32.mrb[0].mxu0
      %2074 = vmatprep.mubr.f32.mxu0 0.0
      %2075 = vmatmul.mubr.f32.gmra.mrb[0].mxu0 %v1870
      %v2076 = vpop.f32.mrb[0].mxu0
      %v2077 = vadd.f32 0.0, %v2076
      %v2078 = vpop.f32.mrb[0].mxu0
      %2079 = vmatprep.mubr.f32.mxu0 0.0
      %2080 = vmatmul.mubr.f32.gmra.mrb[0].mxu0 %v1873
      %v2081 = vpop.f32.mrb[0].mxu0
      %v2082 = vadd.f32 0.0, %v2081
      %v2083 = vpop.f32.mrb[0].mxu0
      %2084 = vmatprep.mubr.f32.mxu0 0.0
      %2085 = vmatmul.mubr.f32.gmra.mrb[0].mxu0 %v1876
      %v2086 = vpop.f32.mrb[0].mxu0
      %v2087 = vadd.f32 0.0, %v2086
      %v2088 = vpop.f32.mrb[0].mxu0
      %2089 = vmatprep.mubr.f32.mxu0 0.0
      %2090 = vmatmul.mubr.f32.gmra.mrb[0].mxu0 %v1879
      %v2091 = vpop.f32.mrb[0].mxu0
      %v2092 = vadd.f32 0.0, %v2091
      %v2093 = vpop.f32.mrb[0].mxu0
      %2094 = vmatprep.mubr.f32.mxu0 0.0
      %2095 = vmatmul.mubr.f32.gmra.mrb[0].mxu0 %v1882
      %v2096 = vpop.f32.mrb[0].mxu0
      %v2097 = vadd.f32 0.0, %v2096
      %v2098 = vpop.f32.mrb[0].mxu0
      %2099 = vmatprep.mubr.f32.mxu0 0.0
      %2100 = vmatmul.mubr.f32.gmra.mrb[0].mxu0 %v1885
      %v2101 = vpop.f32.mrb[0].mxu0
      %v2102 = vadd.f32 0.0, %v2101
      %v2103 = vpop.f32.mrb[0].mxu0
      %2104 = vmatprep.mubr.f32.mxu0 0.0
      %2105 = vmatmul.mubr.f32.gmra.mrb[0].mxu0 %v1888
      %v2106 = vpop.f32.mrb[0].mxu0
      %v2107 = vadd.f32 0.0, %v2106
      %v2108 = vpop.f32.mrb[0].mxu0
      %2109 = vmatprep.mubr.f32.mxu0 0.0
      %2110 = vmatmul.mubr.f32.gmra.mrb[0].mxu0 %v1891
      %v2111 = vpop.f32.mrb[0].mxu0
      %v2112 = vadd.f32 0.0, %v2111
      %v2113 = vpop.f32.mrb[0].mxu0
      %2114 = vmatprep.mubr.f32.mxu0 0.0
      %2115 = vmatmul.mubr.f32.gmra.mrb[0].mxu0 %v1894
      %v2116 = vpop.f32.mrb[0].mxu0
      %v2117 = vadd.f32 0.0, %v2116
      %v2118 = vpop.f32.mrb[0].mxu0
      %2119 = vmatprep.mubr.f32.mxu0 0.0
      %2120 = vmatmul.mubr.f32.gmra.mrb[0].mxu0 %v1897
      %v2121 = vpop.f32.mrb[0].mxu0
      %v2122 = vadd.f32 0.0, %v2121
      %v2123 = vpop.f32.mrb[0].mxu0
      %2124 = vmatprep.mubr.f32.mxu0 0.0
      %2125 = vmatmul.mubr.f32.gmra.mrb[0].mxu0 %v1900
      %v2126 = vpop.f32.mrb[0].mxu0
      %v2127 = vadd.f32 0.0, %v2126
      %v2128 = vpop.f32.mrb[0].mxu0
      %2129 = vdwg.mxu0
      %v2130 = vadd.f32 %v1739, %v1972
      %v2131 = vadd.f32 %v1740, %v1977
      %v2132 = vadd.f32 %v1741, %v1982
      %v2133 = vadd.f32 %v1742, %v1987
      %v2134 = vadd.f32 %v1743, %v1992
      %v2135 = vadd.f32 %v1744, %v1997
      %v2136 = vadd.f32 %v1745, %v2002
      %v2137 = vadd.f32 %v1746, %v2007
      %v2138 = vadd.f32 %v1747, %v2012
      %v2139 = vadd.f32 %v1748, %v2017
      %v2140 = vadd.f32 %v1749, %v2022
      %v2141 = vadd.f32 %v1750, %v2027
      %v2142 = vadd.f32 %v1751, %v2032
      %v2143 = vadd.f32 %v1752, %v2037
      %v2144 = vadd.f32 %v1753, %v2042
      %v2145 = vadd.f32 %v1754, %v2047
      %v2146 = vadd.f32 %v1755, %v2052
      %v2147 = vadd.f32 %v1756, %v2057
      %v2148 = vadd.f32 %v1757, %v2062
      %v2149 = vadd.f32 %v1758, %v2067
      %v2150 = vadd.f32 %v1759, %v2072
      %v2151 = vadd.f32 %v1760, %v2077
      %v2152 = vadd.f32 %v1761, %v2082
      %v2153 = vadd.f32 %v1762, %v2087
      %v2154 = vadd.f32 %v1763, %v2092
      %v2155 = vadd.f32 %v1764, %v2097
      %v2156 = vadd.f32 %v1765, %v2102
      %v2157 = vadd.f32 %v1766, %v2107
      %v2158 = vadd.f32 %v1767, %v2112
      %v2159 = vadd.f32 %v1768, %v2117
      %v2160 = vadd.f32 %v1769, %v2122
      %v2161 = vadd.f32 %v1770, %v2127
      %v2162 = vld [vmem:[%s1379 + $0x2] sm:$0xff]
      %v2163 = vld [vmem:[%s1379 + $0xa] sm:$0xff]
      %v2164 = vld [vmem:[%s1379 + $0x1a] sm:$0xff]
      %v2165 = vld [vmem:[%s1379 + $0x22] sm:$0xff]
      %v2166 = vld [vmem:[%s1379 + $0x32] sm:$0xff]
      %v2167 = vld [vmem:[%s1379 + $0x3a] sm:$0xff]
      %v2168 = vld [vmem:[%s1379 + $0x4a] sm:$0xff]
      %v2169 = vld [vmem:[%s1379 + $0x52] sm:$0xff]
      %v2170 = vld [vmem:[%s1379 + $0x62] sm:$0xff]
      %v2171 = vld [vmem:[%s1379 + $0x6a] sm:$0xff]
      %v2172 = vld [vmem:[%s1379 + $0x7a] sm:$0xff]
      %v2173 = vld [vmem:[%s1379 + $0x82] sm:$0xff]
      %v2174 = vld [vmem:[%s1379 + $0x92] sm:$0xff]
      %v2175 = vld [vmem:[%s1379 + $0x9a] sm:$0xff]
      %v2176 = vld [vmem:[%s1379 + $0xaa] sm:$0xff]
      %v2177 = vld [vmem:[%s1379 + $0xb2] sm:$0xff]
      %v2178 = vld [vmem:[%s1379 + $0xc2] sm:$0xff]
      %v2179 = vld [vmem:[%s1379 + $0xca] sm:$0xff]
      %v2180 = vld [vmem:[%s1379 + $0xda] sm:$0xff]
      %v2181 = vld [vmem:[%s1379 + $0xe2] sm:$0xff]
      %v2182 = vld [vmem:[%s1379 + $0xf2] sm:$0xff]
      %v2183 = vld [vmem:[%s1379 + $0xfa] sm:$0xff]
      %v2184 = vld [vmem:[%s1379 + $0x10a] sm:$0xff]
      %v2185 = vld [vmem:[%s1379 + $0x112] sm:$0xff]
      %v2186 = vld [vmem:[%s1379 + $0x122] sm:$0xff]
      %v2187 = vld [vmem:[%s1379 + $0x12a] sm:$0xff]
      %v2188 = vld [vmem:[%s1379 + $0x13a] sm:$0xff]
      %v2189 = vld [vmem:[%s1379 + $0x142] sm:$0xff]
      %v2190 = vld [vmem:[%s1379 + $0x152] sm:$0xff]
      %v2191 = vld [vmem:[%s1379 + $0x15a] sm:$0xff]
      %v2192 = vld [vmem:[%s1379 + $0x16a] sm:$0xff]
      %v2193 = vld [vmem:[%s1379 + $0x172] sm:$0xff]
      %s2194 = scalar_lea.vmem %s247, 10
      %v2195 = vld [vmem:[%s2194] sm:$0x3]
      %v2196 = vunpack.c.l.bf16 %v2195
      %v2198 = vsel %vm338, %v2162, 0
      %v2201 = vsel %vm338, %v2163, 0
      %v2204 = vsel %vm338, %v2164, 0
      %v2207 = vsel %vm338, %v2165, 0
      %v2210 = vsel %vm338, %v2166, 0
      %v2213 = vsel %vm338, %v2167, 0
      %v2216 = vsel %vm338, %v2168, 0
      %v2219 = vsel %vm338, %v2169, 0
      %v2222 = vsel %vm338, %v2170, 0
      %v2225 = vsel %vm338, %v2171, 0
      %v2228 = vsel %vm338, %v2172, 0
      %v2231 = vsel %vm338, %v2173, 0
      %v2234 = vsel %vm338, %v2174, 0
      %v2237 = vsel %vm338, %v2175, 0
      %v2240 = vsel %vm338, %v2176, 0
      %v2243 = vsel %vm338, %v2177, 0
      %v2246 = vsel %vm338, %v2178, 0
      %v2249 = vsel %vm338, %v2179, 0
      %v2252 = vsel %vm338, %v2180, 0
      %v2255 = vsel %vm338, %v2181, 0
      %v2258 = vsel %vm338, %v2182, 0
      %v2261 = vsel %vm338, %v2183, 0
      %v2264 = vsel %vm338, %v2184, 0
      %v2267 = vsel %vm338, %v2185, 0
      %v2270 = vsel %vm338, %v2186, 0
      %v2273 = vsel %vm338, %v2187, 0
      %v2276 = vsel %vm338, %v2188, 0
      %v2279 = vsel %vm338, %v2189, 0
      %v2282 = vsel %vm338, %v2190, 0
      %v2285 = vsel %vm338, %v2191, 0
      %v2288 = vsel %vm338, %v2192, 0
      %v2291 = vsel %vm338, %v2193, 0
      %v2294 = vsel %vm435, %v2196, 0
      %2296 = vmatprep.subr.mxu0 0.0
      %2297 = vmatpush1.msra.mxu0 %v2294
      %2298 = vmatprep.subr.mxu0 0.0
      %2299 = vmatpush1.msra.mxu0 0.0
      %2300 = vmatprep.subr.mxu0 0.0
      %2301 = vmatpush1.msra.mxu0 0.0
      %2302 = vmatprep.subr.mxu0 0.0
      %2303 = vmatpush1.msra.mxu0 0.0
      %2304 = vmatprep.subr.mxu0 0.0
      %2305 = vmatpush1.msra.mxu0 0.0
      %2306 = vmatprep.subr.mxu0 0.0
      %2307 = vmatpush1.msra.mxu0 0.0
      %2308 = vmatprep.subr.mxu0 0.0
      %2309 = vmatpush1.msra.mxu0 0.0
      %2310 = vmatprep.subr.mxu0 0.0
      %2311 = vmatpush1.msra.mxu0 0.0
      %2312 = vmatprep.subr.mxu0 0.0
      %2313 = vmatpush1.msra.mxu0 0.0
      %2314 = vmatprep.subr.mxu0 0.0
      %2315 = vmatpush1.msra.mxu0 0.0
      %2316 = vmatprep.subr.mxu0 0.0
      %2317 = vmatpush1.msra.mxu0 0.0
      %2318 = vmatprep.subr.mxu0 0.0
      %2319 = vmatpush1.msra.mxu0 0.0
      %2320 = vmatprep.subr.mxu0 0.0
      %2321 = vmatpush1.msra.mxu0 0.0
      %2322 = vmatprep.subr.mxu0 0.0
      %2323 = vmatpush1.msra.mxu0 0.0
      %2324 = vmatprep.subr.mxu0 0.0
      %2325 = vmatpush1.msra.mxu0 0.0
      %2326 = vmatprep.subr.mxu0 0.0
      %2327 = vmatpush1.msra.mxu0 0.0
      %2328 = vmatprep.subr.mxu0 0.0
      %2329 = vmatpush1.msra.mxu0 0.0
      %2330 = vmatprep.subr.mxu0 0.0
      %2331 = vmatpush1.msra.mxu0 0.0
      %2332 = vmatprep.subr.mxu0 0.0
      %2333 = vmatpush1.msra.mxu0 0.0
      %2334 = vmatprep.subr.mxu0 0.0
      %2335 = vmatpush1.msra.mxu0 0.0
      %2336 = vmatprep.subr.mxu0 0.0
      %2337 = vmatpush1.msra.mxu0 0.0
      %2338 = vmatprep.subr.mxu0 0.0
      %2339 = vmatpush1.msra.mxu0 0.0
      %2340 = vmatprep.subr.mxu0 0.0
      %2341 = vmatpush1.msra.mxu0 0.0
      %2342 = vmatprep.subr.mxu0 0.0
      %2343 = vmatpush1.msra.mxu0 0.0
      %2344 = vmatprep.subr.mxu0 0.0
      %2345 = vmatpush1.msra.mxu0 0.0
      %2346 = vmatprep.subr.mxu0 0.0
      %2347 = vmatpush1.msra.mxu0 0.0
      %2348 = vmatprep.subr.mxu0 0.0
      %2349 = vmatpush1.msra.mxu0 0.0
      %2350 = vmatprep.subr.mxu0 0.0
      %2351 = vmatpush1.msra.mxu0 0.0
      %2352 = vmatprep.subr.mxu0 0.0
      %2353 = vmatpush1.msra.mxu0 0.0
      %2354 = vmatprep.subr.mxu0 0.0
      %2355 = vmatpush1.msra.mxu0 0.0
      %2356 = vmatprep.subr.mxu0 0.0
      %2357 = vmatpush1.msra.mxu0 0.0
      %2358 = vmatprep.subr.mxu0 0.0
      %2359 = vmatpush1.msra.mxu0 0.0
      %2360 = vmatprep.mubr.f32.mxu0 0.0
      %2361 = vmatmul.mubr.f32.gmra.mrb[0].mxu0 %v2198
      %v2362 = vpop.f32.mrb[0].mxu0
      %v2363 = vadd.f32 0.0, %v2362
      %v2364 = vpop.f32.mrb[0].mxu0
      %2365 = vmatprep.mubr.f32.mxu0 0.0
      %2366 = vmatmul.mubr.f32.gmra.mrb[0].mxu0 %v2201
      %v2367 = vpop.f32.mrb[0].mxu0
      %v2368 = vadd.f32 0.0, %v2367
      %v2369 = vpop.f32.mrb[0].mxu0
      %2370 = vmatprep.mubr.f32.mxu0 0.0
      %2371 = vmatmul.mubr.f32.gmra.mrb[0].mxu0 %v2204
      %v2372 = vpop.f32.mrb[0].mxu0
      %v2373 = vadd.f32 0.0, %v2372
      %v2374 = vpop.f32.mrb[0].mxu0
      %2375 = vmatprep.mubr.f32.mxu0 0.0
      %2376 = vmatmul.mubr.f32.gmra.mrb[0].mxu0 %v2207
      %v2377 = vpop.f32.mrb[0].mxu0
      %v2378 = vadd.f32 0.0, %v2377
      %v2379 = vpop.f32.mrb[0].mxu0
      %2380 = vmatprep.mubr.f32.mxu0 0.0
      %2381 = vmatmul.mubr.f32.gmra.mrb[0].mxu0 %v2210
      %v2382 = vpop.f32.mrb[0].mxu0
      %v2383 = vadd.f32 0.0, %v2382
      %v2384 = vpop.f32.mrb[0].mxu0
      %2385 = vmatprep.mubr.f32.mxu0 0.0
      %2386 = vmatmul.mubr.f32.gmra.mrb[0].mxu0 %v2213
      %v2387 = vpop.f32.mrb[0].mxu0
      %v2388 = vadd.f32 0.0, %v2387
      %v2389 = vpop.f32.mrb[0].mxu0
      %2390 = vmatprep.mubr.f32.mxu0 0.0
      %2391 = vmatmul.mubr.f32.gmra.mrb[0].mxu0 %v2216
      %v2392 = vpop.f32.mrb[0].mxu0
      %v2393 = vadd.f32 0.0, %v2392
      %v2394 = vpop.f32.mrb[0].mxu0
      %2395 = vmatprep.mubr.f32.mxu0 0.0
      %2396 = vmatmul.mubr.f32.gmra.mrb[0].mxu0 %v2219
      %v2397 = vpop.f32.mrb[0].mxu0
      %v2398 = vadd.f32 0.0, %v2397
      %v2399 = vpop.f32.mrb[0].mxu0
      %2400 = vmatprep.mubr.f32.mxu0 0.0
      %2401 = vmatmul.mubr.f32.gmra.mrb[0].mxu0 %v2222
      %v2402 = vpop.f32.mrb[0].mxu0
      %v2403 = vadd.f32 0.0, %v2402
      %v2404 = vpop.f32.mrb[0].mxu0
      %2405 = vmatprep.mubr.f32.mxu0 0.0
      %2406 = vmatmul.mubr.f32.gmra.mrb[0].mxu0 %v2225
      %v2407 = vpop.f32.mrb[0].mxu0
      %v2408 = vadd.f32 0.0, %v2407
      %v2409 = vpop.f32.mrb[0].mxu0
      %2410 = vmatprep.mubr.f32.mxu0 0.0
      %2411 = vmatmul.mubr.f32.gmra.mrb[0].mxu0 %v2228
      %v2412 = vpop.f32.mrb[0].mxu0
      %v2413 = vadd.f32 0.0, %v2412
      %v2414 = vpop.f32.mrb[0].mxu0
      %2415 = vmatprep.mubr.f32.mxu0 0.0
      %2416 = vmatmul.mubr.f32.gmra.mrb[0].mxu0 %v2231
      %v2417 = vpop.f32.mrb[0].mxu0
      %v2418 = vadd.f32 0.0, %v2417
      %v2419 = vpop.f32.mrb[0].mxu0
      %2420 = vmatprep.mubr.f32.mxu0 0.0
      %2421 = vmatmul.mubr.f32.gmra.mrb[0].mxu0 %v2234
      %v2422 = vpop.f32.mrb[0].mxu0
      %v2423 = vadd.f32 0.0, %v2422
      %v2424 = vpop.f32.mrb[0].mxu0
      %2425 = vmatprep.mubr.f32.mxu0 0.0
      %2426 = vmatmul.mubr.f32.gmra.mrb[0].mxu0 %v2237
      %v2427 = vpop.f32.mrb[0].mxu0
      %v2428 = vadd.f32 0.0, %v2427
      %v2429 = vpop.f32.mrb[0].mxu0
      %2430 = vmatprep.mubr.f32.mxu0 0.0
      %2431 = vmatmul.mubr.f32.gmra.mrb[0].mxu0 %v2240
      %v2432 = vpop.f32.mrb[0].mxu0
      %v2433 = vadd.f32 0.0, %v2432
      %v2434 = vpop.f32.mrb[0].mxu0
      %2435 = vmatprep.mubr.f32.mxu0 0.0
      %2436 = vmatmul.mubr.f32.gmra.mrb[0].mxu0 %v2243
      %v2437 = vpop.f32.mrb[0].mxu0
      %v2438 = vadd.f32 0.0, %v2437
      %v2439 = vpop.f32.mrb[0].mxu0
      %2440 = vmatprep.mubr.f32.mxu0 0.0
      %2441 = vmatmul.mubr.f32.gmra.mrb[0].mxu0 %v2246
      %v2442 = vpop.f32.mrb[0].mxu0
      %v2443 = vadd.f32 0.0, %v2442
      %v2444 = vpop.f32.mrb[0].mxu0
      %2445 = vmatprep.mubr.f32.mxu0 0.0
      %2446 = vmatmul.mubr.f32.gmra.mrb[0].mxu0 %v2249
      %v2447 = vpop.f32.mrb[0].mxu0
      %v2448 = vadd.f32 0.0, %v2447
      %v2449 = vpop.f32.mrb[0].mxu0
      %2450 = vmatprep.mubr.f32.mxu0 0.0
      %2451 = vmatmul.mubr.f32.gmra.mrb[0].mxu0 %v2252
      %v2452 = vpop.f32.mrb[0].mxu0
      %v2453 = vadd.f32 0.0, %v2452
      %v2454 = vpop.f32.mrb[0].mxu0
      %2455 = vmatprep.mubr.f32.mxu0 0.0
      %2456 = vmatmul.mubr.f32.gmra.mrb[0].mxu0 %v2255
      %v2457 = vpop.f32.mrb[0].mxu0
      %v2458 = vadd.f32 0.0, %v2457
      %v2459 = vpop.f32.mrb[0].mxu0
      %2460 = vmatprep.mubr.f32.mxu0 0.0
      %2461 = vmatmul.mubr.f32.gmra.mrb[0].mxu0 %v2258
      %v2462 = vpop.f32.mrb[0].mxu0
      %v2463 = vadd.f32 0.0, %v2462
      %v2464 = vpop.f32.mrb[0].mxu0
      %2465 = vmatprep.mubr.f32.mxu0 0.0
      %2466 = vmatmul.mubr.f32.gmra.mrb[0].mxu0 %v2261
      %v2467 = vpop.f32.mrb[0].mxu0
      %v2468 = vadd.f32 0.0, %v2467
      %v2469 = vpop.f32.mrb[0].mxu0
      %2470 = vmatprep.mubr.f32.mxu0 0.0
      %2471 = vmatmul.mubr.f32.gmra.mrb[0].mxu0 %v2264
      %v2472 = vpop.f32.mrb[0].mxu0
      %v2473 = vadd.f32 0.0, %v2472
      %v2474 = vpop.f32.mrb[0].mxu0
      %2475 = vmatprep.mubr.f32.mxu0 0.0
      %2476 = vmatmul.mubr.f32.gmra.mrb[0].mxu0 %v2267
      %v2477 = vpop.f32.mrb[0].mxu0
      %v2478 = vadd.f32 0.0, %v2477
      %v2479 = vpop.f32.mrb[0].mxu0
      %2480 = vmatprep.mubr.f32.mxu0 0.0
      %2481 = vmatmul.mubr.f32.gmra.mrb[0].mxu0 %v2270
      %v2482 = vpop.f32.mrb[0].mxu0
      %v2483 = vadd.f32 0.0, %v2482
      %v2484 = vpop.f32.mrb[0].mxu0
      %2485 = vmatprep.mubr.f32.mxu0 0.0
      %2486 = vmatmul.mubr.f32.gmra.mrb[0].mxu0 %v2273
      %v2487 = vpop.f32.mrb[0].mxu0
      %v2488 = vadd.f32 0.0, %v2487
      %v2489 = vpop.f32.mrb[0].mxu0
      %2490 = vmatprep.mubr.f32.mxu0 0.0
      %2491 = vmatmul.mubr.f32.gmra.mrb[0].mxu0 %v2276
      %v2492 = vpop.f32.mrb[0].mxu0
      %v2493 = vadd.f32 0.0, %v2492
      %v2494 = vpop.f32.mrb[0].mxu0
      %2495 = vmatprep.mubr.f32.mxu0 0.0
      %2496 = vmatmul.mubr.f32.gmra.mrb[0].mxu0 %v2279
      %v2497 = vpop.f32.mrb[0].mxu0
      %v2498 = vadd.f32 0.0, %v2497
      %v2499 = vpop.f32.mrb[0].mxu0
      %2500 = vmatprep.mubr.f32.mxu0 0.0
      %2501 = vmatmul.mubr.f32.gmra.mrb[0].mxu0 %v2282
      %v2502 = vpop.f32.mrb[0].mxu0
      %v2503 = vadd.f32 0.0, %v2502
      %v2504 = vpop.f32.mrb[0].mxu0
      %2505 = vmatprep.mubr.f32.mxu0 0.0
      %2506 = vmatmul.mubr.f32.gmra.mrb[0].mxu0 %v2285
      %v2507 = vpop.f32.mrb[0].mxu0
      %v2508 = vadd.f32 0.0, %v2507
      %v2509 = vpop.f32.mrb[0].mxu0
      %2510 = vmatprep.mubr.f32.mxu0 0.0
      %2511 = vmatmul.mubr.f32.gmra.mrb[0].mxu0 %v2288
      %v2512 = vpop.f32.mrb[0].mxu0
      %v2513 = vadd.f32 0.0, %v2512
      %v2514 = vpop.f32.mrb[0].mxu0
      %2515 = vmatprep.mubr.f32.mxu0 0.0
      %2516 = vmatmul.mubr.f32.gmra.mrb[0].mxu0 %v2291
      %v2517 = vpop.f32.mrb[0].mxu0
      %v2518 = vadd.f32 0.0, %v2517
      %v2519 = vpop.f32.mrb[0].mxu0
      %2520 = vdwg.mxu0
      %v2521 = vadd.f32 %v2130, %v2363
      %v2522 = vadd.f32 %v2131, %v2368
      %v2523 = vadd.f32 %v2132, %v2373
      %v2524 = vadd.f32 %v2133, %v2378
      %v2525 = vadd.f32 %v2134, %v2383
      %v2526 = vadd.f32 %v2135, %v2388
      %v2527 = vadd.f32 %v2136, %v2393
      %v2528 = vadd.f32 %v2137, %v2398
      %v2529 = vadd.f32 %v2138, %v2403
      %v2530 = vadd.f32 %v2139, %v2408
      %v2531 = vadd.f32 %v2140, %v2413
      %v2532 = vadd.f32 %v2141, %v2418
      %v2533 = vadd.f32 %v2142, %v2423
      %v2534 = vadd.f32 %v2143, %v2428
      %v2535 = vadd.f32 %v2144, %v2433
      %v2536 = vadd.f32 %v2145, %v2438
      %v2537 = vadd.f32 %v2146, %v2443
      %v2538 = vadd.f32 %v2147, %v2448
      %v2539 = vadd.f32 %v2148, %v2453
      %v2540 = vadd.f32 %v2149, %v2458
      %v2541 = vadd.f32 %v2150, %v2463
      %v2542 = vadd.f32 %v2151, %v2468
      %v2543 = vadd.f32 %v2152, %v2473
      %v2544 = vadd.f32 %v2153, %v2478
      %v2545 = vadd.f32 %v2154, %v2483
      %v2546 = vadd.f32 %v2155, %v2488
      %v2547 = vadd.f32 %v2156, %v2493
      %v2548 = vadd.f32 %v2157, %v2498
      %v2549 = vadd.f32 %v2158, %v2503
      %v2550 = vadd.f32 %v2159, %v2508
      %v2551 = vadd.f32 %v2160, %v2513
      %v2552 = vadd.f32 %v2161, %v2518
      %s2553 = scalar_lea.vmem %s243, 48
      %v2554 = vld [vmem:[%s2553] sm:$0xff]
      %v2555 = vld [vmem:[%s2553 + $0x8] sm:$0xff]
      %v2556 = vld [vmem:[%s2553 + $0x18] sm:$0xff]
      %v2557 = vld [vmem:[%s2553 + $0x20] sm:$0xff]
      %v2558 = vld [vmem:[%s2553 + $0x30] sm:$0xff]
      %v2559 = vld [vmem:[%s2553 + $0x38] sm:$0xff]
      %v2560 = vld [vmem:[%s2553 + $0x48] sm:$0xff]
      %v2561 = vld [vmem:[%s2553 + $0x50] sm:$0xff]
      %v2562 = vld [vmem:[%s2553 + $0x60] sm:$0xff]
      %v2563 = vld [vmem:[%s2553 + $0x68] sm:$0xff]
      %v2564 = vld [vmem:[%s2553 + $0x78] sm:$0xff]
      %v2565 = vld [vmem:[%s2553 + $0x80] sm:$0xff]
      %v2566 = vld [vmem:[%s2553 + $0x90] sm:$0xff]
      %v2567 = vld [vmem:[%s2553 + $0x98] sm:$0xff]
      %v2568 = vld [vmem:[%s2553 + $0xa8] sm:$0xff]
      %v2569 = vld [vmem:[%s2553 + $0xb0] sm:$0xff]
      %v2570 = vld [vmem:[%s2553 + $0xc0] sm:$0xff]
      %v2571 = vld [vmem:[%s2553 + $0xc8] sm:$0xff]
      %v2572 = vld [vmem:[%s2553 + $0xd8] sm:$0xff]
      %v2573 = vld [vmem:[%s2553 + $0xe0] sm:$0xff]
      %v2574 = vld [vmem:[%s2553 + $0xf0] sm:$0xff]
      %v2575 = vld [vmem:[%s2553 + $0xf8] sm:$0xff]
      %v2576 = vld [vmem:[%s2553 + $0x108] sm:$0xff]
      %v2577 = vld [vmem:[%s2553 + $0x110] sm:$0xff]
      %v2578 = vld [vmem:[%s2553 + $0x120] sm:$0xff]
      %v2579 = vld [vmem:[%s2553 + $0x128] sm:$0xff]
      %v2580 = vld [vmem:[%s2553 + $0x138] sm:$0xff]
      %v2581 = vld [vmem:[%s2553 + $0x140] sm:$0xff]
      %v2582 = vld [vmem:[%s2553 + $0x150] sm:$0xff]
      %v2583 = vld [vmem:[%s2553 + $0x158] sm:$0xff]
      %v2584 = vld [vmem:[%s2553 + $0x168] sm:$0xff]
      %v2585 = vld [vmem:[%s2553 + $0x170] sm:$0xff]
      %s2586 = scalar_lea.vmem %s247, 12
      %v2587 = vld [vmem:[%s2586] sm:$0x3]
      %v2588 = vunpack.c.l.bf16 %v2587
      %v2590 = vsel %vm338, %v2554, 0
      %v2593 = vsel %vm338, %v2555, 0
      %v2596 = vsel %vm338, %v2556, 0
      %v2599 = vsel %vm338, %v2557, 0
      %v2602 = vsel %vm338, %v2558, 0
      %v2605 = vsel %vm338, %v2559, 0
      %v2608 = vsel %vm338, %v2560, 0
      %v2611 = vsel %vm338, %v2561, 0
      %v2614 = vsel %vm338, %v2562, 0
      %v2617 = vsel %vm338, %v2563, 0
      %v2620 = vsel %vm338, %v2564, 0
      %v2623 = vsel %vm338, %v2565, 0
      %v2626 = vsel %vm338, %v2566, 0
      %v2629 = vsel %vm338, %v2567, 0
      %v2632 = vsel %vm338, %v2568, 0
      %v2635 = vsel %vm338, %v2569, 0
      %v2638 = vsel %vm338, %v2570, 0
      %v2641 = vsel %vm338, %v2571, 0
      %v2644 = vsel %vm338, %v2572, 0
      %v2647 = vsel %vm338, %v2573, 0
      %v2650 = vsel %vm338, %v2574, 0
      %v2653 = vsel %vm338, %v2575, 0
      %v2656 = vsel %vm338, %v2576, 0
      %v2659 = vsel %vm338, %v2577, 0
      %v2662 = vsel %vm338, %v2578, 0
      %v2665 = vsel %vm338, %v2579, 0
      %v2668 = vsel %vm338, %v2580, 0
      %v2671 = vsel %vm338, %v2581, 0
      %v2674 = vsel %vm338, %v2582, 0
      %v2677 = vsel %vm338, %v2583, 0
      %v2680 = vsel %vm338, %v2584, 0
      %v2683 = vsel %vm338, %v2585, 0
      %v2686 = vsel %vm435, %v2588, 0
      %2688 = vmatprep.subr.mxu0 0.0
      %2689 = vmatpush1.msra.mxu0 %v2686
      %2690 = vmatprep.subr.mxu0 0.0
      %2691 = vmatpush1.msra.mxu0 0.0
      %2692 = vmatprep.subr.mxu0 0.0
      %2693 = vmatpush1.msra.mxu0 0.0
      %2694 = vmatprep.subr.mxu0 0.0
      %2695 = vmatpush1.msra.mxu0 0.0
      %2696 = vmatprep.subr.mxu0 0.0
      %2697 = vmatpush1.msra.mxu0 0.0
      %2698 = vmatprep.subr.mxu0 0.0
      %2699 = vmatpush1.msra.mxu0 0.0
      %2700 = vmatprep.subr.mxu0 0.0
      %2701 = vmatpush1.msra.mxu0 0.0
      %2702 = vmatprep.subr.mxu0 0.0
      %2703 = vmatpush1.msra.mxu0 0.0
      %2704 = vmatprep.subr.mxu0 0.0
      %2705 = vmatpush1.msra.mxu0 0.0
      %2706 = vmatprep.subr.mxu0 0.0
      %2707 = vmatpush1.msra.mxu0 0.0
      %2708 = vmatprep.subr.mxu0 0.0
      %2709 = vmatpush1.msra.mxu0 0.0
      %2710 = vmatprep.subr.mxu0 0.0
      %2711 = vmatpush1.msra.mxu0 0.0
      %2712 = vmatprep.subr.mxu0 0.0
      %2713 = vmatpush1.msra.mxu0 0.0
      %2714 = vmatprep.subr.mxu0 0.0
      %2715 = vmatpush1.msra.mxu0 0.0
      %2716 = vmatprep.subr.mxu0 0.0
      %2717 = vmatpush1.msra.mxu0 0.0
      %2718 = vmatprep.subr.mxu0 0.0
      %2719 = vmatpush1.msra.mxu0 0.0
      %2720 = vmatprep.subr.mxu0 0.0
      %2721 = vmatpush1.msra.mxu0 0.0
      %2722 = vmatprep.subr.mxu0 0.0
      %2723 = vmatpush1.msra.mxu0 0.0
      %2724 = vmatprep.subr.mxu0 0.0
      %2725 = vmatpush1.msra.mxu0 0.0
      %2726 = vmatprep.subr.mxu0 0.0
      %2727 = vmatpush1.msra.mxu0 0.0
      %2728 = vmatprep.subr.mxu0 0.0
      %2729 = vmatpush1.msra.mxu0 0.0
      %2730 = vmatprep.subr.mxu0 0.0
      %2731 = vmatpush1.msra.mxu0 0.0
      %2732 = vmatprep.subr.mxu0 0.0
      %2733 = vmatpush1.msra.mxu0 0.0
      %2734 = vmatprep.subr.mxu0 0.0
      %2735 = vmatpush1.msra.mxu0 0.0
      %2736 = vmatprep.subr.mxu0 0.0
      %2737 = vmatpush1.msra.mxu0 0.0
      %2738 = vmatprep.subr.mxu0 0.0
      %2739 = vmatpush1.msra.mxu0 0.0
      %2740 = vmatprep.subr.mxu0 0.0
      %2741 = vmatpush1.msra.mxu0 0.0
      %2742 = vmatprep.subr.mxu0 0.0
      %2743 = vmatpush1.msra.mxu0 0.0
      %2744 = vmatprep.subr.mxu0 0.0
      %2745 = vmatpush1.msra.mxu0 0.0
      %2746 = vmatprep.subr.mxu0 0.0
      %2747 = vmatpush1.msra.mxu0 0.0
      %2748 = vmatprep.subr.mxu0 0.0
      %2749 = vmatpush1.msra.mxu0 0.0
      %2750 = vmatprep.subr.mxu0 0.0
      %2751 = vmatpush1.msra.mxu0 0.0
      %2752 = vmatprep.mubr.f32.mxu0 0.0
      %2753 = vmatmul.mubr.f32.gmra.mrb[0].mxu0 %v2590
      %v2754 = vpop.f32.mrb[0].mxu0
      %v2755 = vadd.f32 0.0, %v2754
      %v2756 = vpop.f32.mrb[0].mxu0
      %2757 = vmatprep.mubr.f32.mxu0 0.0
      %2758 = vmatmul.mubr.f32.gmra.mrb[0].mxu0 %v2593
      %v2759 = vpop.f32.mrb[0].mxu0
      %v2760 = vadd.f32 0.0, %v2759
      %v2761 = vpop.f32.mrb[0].mxu0
      %2762 = vmatprep.mubr.f32.mxu0 0.0
      %2763 = vmatmul.mubr.f32.gmra.mrb[0].mxu0 %v2596
      %v2764 = vpop.f32.mrb[0].mxu0
      %v2765 = vadd.f32 0.0, %v2764
      %v2766 = vpop.f32.mrb[0].mxu0
      %2767 = vmatprep.mubr.f32.mxu0 0.0
      %2768 = vmatmul.mubr.f32.gmra.mrb[0].mxu0 %v2599
      %v2769 = vpop.f32.mrb[0].mxu0
      %v2770 = vadd.f32 0.0, %v2769
      %v2771 = vpop.f32.mrb[0].mxu0
      %2772 = vmatprep.mubr.f32.mxu0 0.0
      %2773 = vmatmul.mubr.f32.gmra.mrb[0].mxu0 %v2602
      %v2774 = vpop.f32.mrb[0].mxu0
      %v2775 = vadd.f32 0.0, %v2774
      %v2776 = vpop.f32.mrb[0].mxu0
      %2777 = vmatprep.mubr.f32.mxu0 0.0
      %2778 = vmatmul.mubr.f32.gmra.mrb[0].mxu0 %v2605
      %v2779 = vpop.f32.mrb[0].mxu0
      %v2780 = vadd.f32 0.0, %v2779
      %v2781 = vpop.f32.mrb[0].mxu0
      %2782 = vmatprep.mubr.f32.mxu0 0.0
      %2783 = vmatmul.mubr.f32.gmra.mrb[0].mxu0 %v2608
      %v2784 = vpop.f32.mrb[0].mxu0
      %v2785 = vadd.f32 0.0, %v2784
      %v2786 = vpop.f32.mrb[0].mxu0
      %2787 = vmatprep.mubr.f32.mxu0 0.0
      %2788 = vmatmul.mubr.f32.gmra.mrb[0].mxu0 %v2611
      %v2789 = vpop.f32.mrb[0].mxu0
      %v2790 = vadd.f32 0.0, %v2789
      %v2791 = vpop.f32.mrb[0].mxu0
      %2792 = vmatprep.mubr.f32.mxu0 0.0
      %2793 = vmatmul.mubr.f32.gmra.mrb[0].mxu0 %v2614
      %v2794 = vpop.f32.mrb[0].mxu0
      %v2795 = vadd.f32 0.0, %v2794
      %v2796 = vpop.f32.mrb[0].mxu0
      %2797 = vmatprep.mubr.f32.mxu0 0.0
      %2798 = vmatmul.mubr.f32.gmra.mrb[0].mxu0 %v2617
      %v2799 = vpop.f32.mrb[0].mxu0
      %v2800 = vadd.f32 0.0, %v2799
      %v2801 = vpop.f32.mrb[0].mxu0
      %2802 = vmatprep.mubr.f32.mxu0 0.0
      %2803 = vmatmul.mubr.f32.gmra.mrb[0].mxu0 %v2620
      %v2804 = vpop.f32.mrb[0].mxu0
      %v2805 = vadd.f32 0.0, %v2804
      %v2806 = vpop.f32.mrb[0].mxu0
      %2807 = vmatprep.mubr.f32.mxu0 0.0
      %2808 = vmatmul.mubr.f32.gmra.mrb[0].mxu0 %v2623
      %v2809 = vpop.f32.mrb[0].mxu0
      %v2810 = vadd.f32 0.0, %v2809
      %v2811 = vpop.f32.mrb[0].mxu0
      %2812 = vmatprep.mubr.f32.mxu0 0.0
      %2813 = vmatmul.mubr.f32.gmra.mrb[0].mxu0 %v2626
      %v2814 = vpop.f32.mrb[0].mxu0
      %v2815 = vadd.f32 0.0, %v2814
      %v2816 = vpop.f32.mrb[0].mxu0
      %2817 = vmatprep.mubr.f32.mxu0 0.0
      %2818 = vmatmul.mubr.f32.gmra.mrb[0].mxu0 %v2629
      %v2819 = vpop.f32.mrb[0].mxu0
      %v2820 = vadd.f32 0.0, %v2819
      %v2821 = vpop.f32.mrb[0].mxu0
      %2822 = vmatprep.mubr.f32.mxu0 0.0
      %2823 = vmatmul.mubr.f32.gmra.mrb[0].mxu0 %v2632
      %v2824 = vpop.f32.mrb[0].mxu0
      %v2825 = vadd.f32 0.0, %v2824
      %v2826 = vpop.f32.mrb[0].mxu0
      %2827 = vmatprep.mubr.f32.mxu0 0.0
      %2828 = vmatmul.mubr.f32.gmra.mrb[0].mxu0 %v2635
      %v2829 = vpop.f32.mrb[0].mxu0
      %v2830 = vadd.f32 0.0, %v2829
      %v2831 = vpop.f32.mrb[0].mxu0
      %2832 = vmatprep.mubr.f32.mxu0 0.0
      %2833 = vmatmul.mubr.f32.gmra.mrb[0].mxu0 %v2638
      %v2834 = vpop.f32.mrb[0].mxu0
      %v2835 = vadd.f32 0.0, %v2834
      %v2836 = vpop.f32.mrb[0].mxu0
      %2837 = vmatprep.mubr.f32.mxu0 0.0
      %2838 = vmatmul.mubr.f32.gmra.mrb[0].mxu0 %v2641
      %v2839 = vpop.f32.mrb[0].mxu0
      %v2840 = vadd.f32 0.0, %v2839
      %v2841 = vpop.f32.mrb[0].mxu0
      %2842 = vmatprep.mubr.f32.mxu0 0.0
      %2843 = vmatmul.mubr.f32.gmra.mrb[0].mxu0 %v2644
      %v2844 = vpop.f32.mrb[0].mxu0
      %v2845 = vadd.f32 0.0, %v2844
      %v2846 = vpop.f32.mrb[0].mxu0
      %2847 = vmatprep.mubr.f32.mxu0 0.0
      %2848 = vmatmul.mubr.f32.gmra.mrb[0].mxu0 %v2647
      %v2849 = vpop.f32.mrb[0].mxu0
      %v2850 = vadd.f32 0.0, %v2849
      %v2851 = vpop.f32.mrb[0].mxu0
      %2852 = vmatprep.mubr.f32.mxu0 0.0
      %2853 = vmatmul.mubr.f32.gmra.mrb[0].mxu0 %v2650
      %v2854 = vpop.f32.mrb[0].mxu0
      %v2855 = vadd.f32 0.0, %v2854
      %v2856 = vpop.f32.mrb[0].mxu0
      %2857 = vmatprep.mubr.f32.mxu0 0.0
      %2858 = vmatmul.mubr.f32.gmra.mrb[0].mxu0 %v2653
      %v2859 = vpop.f32.mrb[0].mxu0
      %v2860 = vadd.f32 0.0, %v2859
      %v2861 = vpop.f32.mrb[0].mxu0
      %2862 = vmatprep.mubr.f32.mxu0 0.0
      %2863 = vmatmul.mubr.f32.gmra.mrb[0].mxu0 %v2656
      %v2864 = vpop.f32.mrb[0].mxu0
      %v2865 = vadd.f32 0.0, %v2864
      %v2866 = vpop.f32.mrb[0].mxu0
      %2867 = vmatprep.mubr.f32.mxu0 0.0
      %2868 = vmatmul.mubr.f32.gmra.mrb[0].mxu0 %v2659
      %v2869 = vpop.f32.mrb[0].mxu0
      %v2870 = vadd.f32 0.0, %v2869
      %v2871 = vpop.f32.mrb[0].mxu0
      %2872 = vmatprep.mubr.f32.mxu0 0.0
      %2873 = vmatmul.mubr.f32.gmra.mrb[0].mxu0 %v2662
      %v2874 = vpop.f32.mrb[0].mxu0
      %v2875 = vadd.f32 0.0, %v2874
      %v2876 = vpop.f32.mrb[0].mxu0
      %2877 = vmatprep.mubr.f32.mxu0 0.0
      %2878 = vmatmul.mubr.f32.gmra.mrb[0].mxu0 %v2665
      %v2879 = vpop.f32.mrb[0].mxu0
      %v2880 = vadd.f32 0.0, %v2879
      %v2881 = vpop.f32.mrb[0].mxu0
      %2882 = vmatprep.mubr.f32.mxu0 0.0
      %2883 = vmatmul.mubr.f32.gmra.mrb[0].mxu0 %v2668
      %v2884 = vpop.f32.mrb[0].mxu0
      %v2885 = vadd.f32 0.0, %v2884
      %v2886 = vpop.f32.mrb[0].mxu0
      %2887 = vmatprep.mubr.f32.mxu0 0.0
      %2888 = vmatmul.mubr.f32.gmra.mrb[0].mxu0 %v2671
      %v2889 = vpop.f32.mrb[0].mxu0
      %v2890 = vadd.f32 0.0, %v2889
      %v2891 = vpop.f32.mrb[0].mxu0
      %2892 = vmatprep.mubr.f32.mxu0 0.0
      %2893 = vmatmul.mubr.f32.gmra.mrb[0].mxu0 %v2674
      %v2894 = vpop.f32.mrb[0].mxu0
      %v2895 = vadd.f32 0.0, %v2894
      %v2896 = vpop.f32.mrb[0].mxu0
      %2897 = vmatprep.mubr.f32.mxu0 0.0
      %2898 = vmatmul.mubr.f32.gmra.mrb[0].mxu0 %v2677
      %v2899 = vpop.f32.mrb[0].mxu0
      %v2900 = vadd.f32 0.0, %v2899
      %v2901 = vpop.f32.mrb[0].mxu0
      %2902 = vmatprep.mubr.f32.mxu0 0.0
      %2903 = vmatmul.mubr.f32.gmra.mrb[0].mxu0 %v2680
      %v2904 = vpop.f32.mrb[0].mxu0
      %v2905 = vadd.f32 0.0, %v2904
      %v2906 = vpop.f32.mrb[0].mxu0
      %2907 = vmatprep.mubr.f32.mxu0 0.0
      %2908 = vmatmul.mubr.f32.gmra.mrb[0].mxu0 %v2683
      %v2909 = vpop.f32.mrb[0].mxu0
      %v2910 = vadd.f32 0.0, %v2909
      %v2911 = vpop.f32.mrb[0].mxu0
      %2912 = vdwg.mxu0
      %v2913 = vadd.f32 %v2521, %v2755
      %v2914 = vadd.f32 %v2522, %v2760
      %v2915 = vadd.f32 %v2523, %v2765
      %v2916 = vadd.f32 %v2524, %v2770
      %v2917 = vadd.f32 %v2525, %v2775
      %v2918 = vadd.f32 %v2526, %v2780
      %v2919 = vadd.f32 %v2527, %v2785
      %v2920 = vadd.f32 %v2528, %v2790
      %v2921 = vadd.f32 %v2529, %v2795
      %v2922 = vadd.f32 %v2530, %v2800
      %v2923 = vadd.f32 %v2531, %v2805
      %v2924 = vadd.f32 %v2532, %v2810
      %v2925 = vadd.f32 %v2533, %v2815
      %v2926 = vadd.f32 %v2534, %v2820
      %v2927 = vadd.f32 %v2535, %v2825
      %v2928 = vadd.f32 %v2536, %v2830
      %v2929 = vadd.f32 %v2537, %v2835
      %v2930 = vadd.f32 %v2538, %v2840
      %v2931 = vadd.f32 %v2539, %v2845
      %v2932 = vadd.f32 %v2540, %v2850
      %v2933 = vadd.f32 %v2541, %v2855
      %v2934 = vadd.f32 %v2542, %v2860
      %v2935 = vadd.f32 %v2543, %v2865
      %v2936 = vadd.f32 %v2544, %v2870
      %v2937 = vadd.f32 %v2545, %v2875
      %v2938 = vadd.f32 %v2546, %v2880
      %v2939 = vadd.f32 %v2547, %v2885
      %v2940 = vadd.f32 %v2548, %v2890
      %v2941 = vadd.f32 %v2549, %v2895
      %v2942 = vadd.f32 %v2550, %v2900
      %v2943 = vadd.f32 %v2551, %v2905
      %v2944 = vadd.f32 %v2552, %v2910
      %v2945 = vld [vmem:[%s2553 + $0x1] sm:$0xff]
      %v2946 = vld [vmem:[%s2553 + $0x9] sm:$0xff]
      %v2947 = vld [vmem:[%s2553 + $0x19] sm:$0xff]
      %v2948 = vld [vmem:[%s2553 + $0x21] sm:$0xff]
      %v2949 = vld [vmem:[%s2553 + $0x31] sm:$0xff]
      %v2950 = vld [vmem:[%s2553 + $0x39] sm:$0xff]
      %v2951 = vld [vmem:[%s2553 + $0x49] sm:$0xff]
      %v2952 = vld [vmem:[%s2553 + $0x51] sm:$0xff]
      %v2953 = vld [vmem:[%s2553 + $0x61] sm:$0xff]
      %v2954 = vld [vmem:[%s2553 + $0x69] sm:$0xff]
      %v2955 = vld [vmem:[%s2553 + $0x79] sm:$0xff]
      %v2956 = vld [vmem:[%s2553 + $0x81] sm:$0xff]
      %v2957 = vld [vmem:[%s2553 + $0x91] sm:$0xff]
      %v2958 = vld [vmem:[%s2553 + $0x99] sm:$0xff]
      %v2959 = vld [vmem:[%s2553 + $0xa9] sm:$0xff]
      %v2960 = vld [vmem:[%s2553 + $0xb1] sm:$0xff]
      %v2961 = vld [vmem:[%s2553 + $0xc1] sm:$0xff]
      %v2962 = vld [vmem:[%s2553 + $0xc9] sm:$0xff]
      %v2963 = vld [vmem:[%s2553 + $0xd9] sm:$0xff]
      %v2964 = vld [vmem:[%s2553 + $0xe1] sm:$0xff]
      %v2965 = vld [vmem:[%s2553 + $0xf1] sm:$0xff]
      %v2966 = vld [vmem:[%s2553 + $0xf9] sm:$0xff]
      %v2967 = vld [vmem:[%s2553 + $0x109] sm:$0xff]
      %v2968 = vld [vmem:[%s2553 + $0x111] sm:$0xff]
      %v2969 = vld [vmem:[%s2553 + $0x121] sm:$0xff]
      %v2970 = vld [vmem:[%s2553 + $0x129] sm:$0xff]
      %v2971 = vld [vmem:[%s2553 + $0x139] sm:$0xff]
      %v2972 = vld [vmem:[%s2553 + $0x141] sm:$0xff]
      %v2973 = vld [vmem:[%s2553 + $0x151] sm:$0xff]
      %v2974 = vld [vmem:[%s2553 + $0x159] sm:$0xff]
      %v2975 = vld [vmem:[%s2553 + $0x169] sm:$0xff]
      %v2976 = vld [vmem:[%s2553 + $0x171] sm:$0xff]
      %s2977 = scalar_lea.vmem %s247, 14
      %v2978 = vld [vmem:[%s2977] sm:$0x3]
      %v2979 = vunpack.c.l.bf16 %v2978
      %v2981 = vsel %vm338, %v2945, 0
      %v2984 = vsel %vm338, %v2946, 0
      %v2987 = vsel %vm338, %v2947, 0
      %v2990 = vsel %vm338, %v2948, 0
      %v2993 = vsel %vm338, %v2949, 0
      %v2996 = vsel %vm338, %v2950, 0
      %v2999 = vsel %vm338, %v2951, 0
      %v3002 = vsel %vm338, %v2952, 0
      %v3005 = vsel %vm338, %v2953, 0
      %v3008 = vsel %vm338, %v2954, 0
      %v3011 = vsel %vm338, %v2955, 0
      %v3014 = vsel %vm338, %v2956, 0
      %v3017 = vsel %vm338, %v2957, 0
      %v3020 = vsel %vm338, %v2958, 0
      %v3023 = vsel %vm338, %v2959, 0
      %v3026 = vsel %vm338, %v2960, 0
      %v3029 = vsel %vm338, %v2961, 0
      %v3032 = vsel %vm338, %v2962, 0
      %v3035 = vsel %vm338, %v2963, 0
      %v3038 = vsel %vm338, %v2964, 0
      %v3041 = vsel %vm338, %v2965, 0
      %v3044 = vsel %vm338, %v2966, 0
      %v3047 = vsel %vm338, %v2967, 0
      %v3050 = vsel %vm338, %v2968, 0
      %v3053 = vsel %vm338, %v2969, 0
      %v3056 = vsel %vm338, %v2970, 0
      %v3059 = vsel %vm338, %v2971, 0
      %v3062 = vsel %vm338, %v2972, 0
      %v3065 = vsel %vm338, %v2973, 0
      %v3068 = vsel %vm338, %v2974, 0
      %v3071 = vsel %vm338, %v2975, 0
      %v3074 = vsel %vm338, %v2976, 0
      %v3077 = vsel %vm435, %v2979, 0
      %3079 = vmatprep.subr.mxu0 0.0
      %3080 = vmatpush1.msra.mxu0 %v3077
      %3081 = vmatprep.subr.mxu0 0.0
      %3082 = vmatpush1.msra.mxu0 0.0
      %3083 = vmatprep.subr.mxu0 0.0
      %3084 = vmatpush1.msra.mxu0 0.0
      %3085 = vmatprep.subr.mxu0 0.0
      %3086 = vmatpush1.msra.mxu0 0.0
      %3087 = vmatprep.subr.mxu0 0.0
      %3088 = vmatpush1.msra.mxu0 0.0
      %3089 = vmatprep.subr.mxu0 0.0
      %3090 = vmatpush1.msra.mxu0 0.0
      %3091 = vmatprep.subr.mxu0 0.0
      %3092 = vmatpush1.msra.mxu0 0.0
      %3093 = vmatprep.subr.mxu0 0.0
      %3094 = vmatpush1.msra.mxu0 0.0
      %3095 = vmatprep.subr.mxu0 0.0
      %3096 = vmatpush1.msra.mxu0 0.0
      %3097 = vmatprep.subr.mxu0 0.0
      %3098 = vmatpush1.msra.mxu0 0.0
      %3099 = vmatprep.subr.mxu0 0.0
      %3100 = vmatpush1.msra.mxu0 0.0
      %3101 = vmatprep.subr.mxu0 0.0
      %3102 = vmatpush1.msra.mxu0 0.0
      %3103 = vmatprep.subr.mxu0 0.0
      %3104 = vmatpush1.msra.mxu0 0.0
      %3105 = vmatprep.subr.mxu0 0.0
      %3106 = vmatpush1.msra.mxu0 0.0
      %3107 = vmatprep.subr.mxu0 0.0
      %3108 = vmatpush1.msra.mxu0 0.0
      %3109 = vmatprep.subr.mxu0 0.0
      %3110 = vmatpush1.msra.mxu0 0.0
      %3111 = vmatprep.subr.mxu0 0.0
      %3112 = vmatpush1.msra.mxu0 0.0
      %3113 = vmatprep.subr.mxu0 0.0
      %3114 = vmatpush1.msra.mxu0 0.0
      %3115 = vmatprep.subr.mxu0 0.0
      %3116 = vmatpush1.msra.mxu0 0.0
      %3117 = vmatprep.subr.mxu0 0.0
      %3118 = vmatpush1.msra.mxu0 0.0
      %3119 = vmatprep.subr.mxu0 0.0
      %3120 = vmatpush1.msra.mxu0 0.0
      %3121 = vmatprep.subr.mxu0 0.0
      %3122 = vmatpush1.msra.mxu0 0.0
      %3123 = vmatprep.subr.mxu0 0.0
      %3124 = vmatpush1.msra.mxu0 0.0
      %3125 = vmatprep.subr.mxu0 0.0
      %3126 = vmatpush1.msra.mxu0 0.0
      %3127 = vmatprep.subr.mxu0 0.0
      %3128 = vmatpush1.msra.mxu0 0.0
      %3129 = vmatprep.subr.mxu0 0.0
      %3130 = vmatpush1.msra.mxu0 0.0
      %3131 = vmatprep.subr.mxu0 0.0
      %3132 = vmatpush1.msra.mxu0 0.0
      %3133 = vmatprep.subr.mxu0 0.0
      %3134 = vmatpush1.msra.mxu0 0.0
      %3135 = vmatprep.subr.mxu0 0.0
      %3136 = vmatpush1.msra.mxu0 0.0
      %3137 = vmatprep.subr.mxu0 0.0
      %3138 = vmatpush1.msra.mxu0 0.0
      %3139 = vmatprep.subr.mxu0 0.0
      %3140 = vmatpush1.msra.mxu0 0.0
      %3141 = vmatprep.subr.mxu0 0.0
      %3142 = vmatpush1.msra.mxu0 0.0
      %3143 = vmatprep.mubr.f32.mxu0 0.0
      %3144 = vmatmul.mubr.f32.gmra.mrb[0].mxu0 %v2981
      %v3145 = vpop.f32.mrb[0].mxu0
      %v3146 = vadd.f32 0.0, %v3145
      %v3147 = vpop.f32.mrb[0].mxu0
      %3148 = vmatprep.mubr.f32.mxu0 0.0
      %3149 = vmatmul.mubr.f32.gmra.mrb[0].mxu0 %v2984
      %v3150 = vpop.f32.mrb[0].mxu0
      %v3151 = vadd.f32 0.0, %v3150
      %v3152 = vpop.f32.mrb[0].mxu0
      %3153 = vmatprep.mubr.f32.mxu0 0.0
      %3154 = vmatmul.mubr.f32.gmra.mrb[0].mxu0 %v2987
      %v3155 = vpop.f32.mrb[0].mxu0
      %v3156 = vadd.f32 0.0, %v3155
      %v3157 = vpop.f32.mrb[0].mxu0
      %3158 = vmatprep.mubr.f32.mxu0 0.0
      %3159 = vmatmul.mubr.f32.gmra.mrb[0].mxu0 %v2990
      %v3160 = vpop.f32.mrb[0].mxu0
      %v3161 = vadd.f32 0.0, %v3160
      %v3162 = vpop.f32.mrb[0].mxu0
      %3163 = vmatprep.mubr.f32.mxu0 0.0
      %3164 = vmatmul.mubr.f32.gmra.mrb[0].mxu0 %v2993
      %v3165 = vpop.f32.mrb[0].mxu0
      %v3166 = vadd.f32 0.0, %v3165
      %v3167 = vpop.f32.mrb[0].mxu0
      %3168 = vmatprep.mubr.f32.mxu0 0.0
      %3169 = vmatmul.mubr.f32.gmra.mrb[0].mxu0 %v2996
      %v3170 = vpop.f32.mrb[0].mxu0
      %v3171 = vadd.f32 0.0, %v3170
      %v3172 = vpop.f32.mrb[0].mxu0
      %3173 = vmatprep.mubr.f32.mxu0 0.0
      %3174 = vmatmul.mubr.f32.gmra.mrb[0].mxu0 %v2999
      %v3175 = vpop.f32.mrb[0].mxu0
      %v3176 = vadd.f32 0.0, %v3175
      %v3177 = vpop.f32.mrb[0].mxu0
      %3178 = vmatprep.mubr.f32.mxu0 0.0
      %3179 = vmatmul.mubr.f32.gmra.mrb[0].mxu0 %v3002
      %v3180 = vpop.f32.mrb[0].mxu0
      %v3181 = vadd.f32 0.0, %v3180
      %v3182 = vpop.f32.mrb[0].mxu0
      %3183 = vmatprep.mubr.f32.mxu0 0.0
      %3184 = vmatmul.mubr.f32.gmra.mrb[0].mxu0 %v3005
      %v3185 = vpop.f32.mrb[0].mxu0
      %v3186 = vadd.f32 0.0, %v3185
      %v3187 = vpop.f32.mrb[0].mxu0
      %3188 = vmatprep.mubr.f32.mxu0 0.0
      %3189 = vmatmul.mubr.f32.gmra.mrb[0].mxu0 %v3008
      %v3190 = vpop.f32.mrb[0].mxu0
      %v3191 = vadd.f32 0.0, %v3190
      %v3192 = vpop.f32.mrb[0].mxu0
      %3193 = vmatprep.mubr.f32.mxu0 0.0
      %3194 = vmatmul.mubr.f32.gmra.mrb[0].mxu0 %v3011
      %v3195 = vpop.f32.mrb[0].mxu0
      %v3196 = vadd.f32 0.0, %v3195
      %v3197 = vpop.f32.mrb[0].mxu0
      %3198 = vmatprep.mubr.f32.mxu0 0.0
      %3199 = vmatmul.mubr.f32.gmra.mrb[0].mxu0 %v3014
      %v3200 = vpop.f32.mrb[0].mxu0
      %v3201 = vadd.f32 0.0, %v3200
      %v3202 = vpop.f32.mrb[0].mxu0
      %3203 = vmatprep.mubr.f32.mxu0 0.0
      %3204 = vmatmul.mubr.f32.gmra.mrb[0].mxu0 %v3017
      %v3205 = vpop.f32.mrb[0].mxu0
      %v3206 = vadd.f32 0.0, %v3205
      %v3207 = vpop.f32.mrb[0].mxu0
      %3208 = vmatprep.mubr.f32.mxu0 0.0
      %3209 = vmatmul.mubr.f32.gmra.mrb[0].mxu0 %v3020
      %v3210 = vpop.f32.mrb[0].mxu0
      %v3211 = vadd.f32 0.0, %v3210
      %v3212 = vpop.f32.mrb[0].mxu0
      %3213 = vmatprep.mubr.f32.mxu0 0.0
      %3214 = vmatmul.mubr.f32.gmra.mrb[0].mxu0 %v3023
      %v3215 = vpop.f32.mrb[0].mxu0
      %v3216 = vadd.f32 0.0, %v3215
      %v3217 = vpop.f32.mrb[0].mxu0
      %3218 = vmatprep.mubr.f32.mxu0 0.0
      %3219 = vmatmul.mubr.f32.gmra.mrb[0].mxu0 %v3026
      %v3220 = vpop.f32.mrb[0].mxu0
      %v3221 = vadd.f32 0.0, %v3220
      %v3222 = vpop.f32.mrb[0].mxu0
      %3223 = vmatprep.mubr.f32.mxu0 0.0
      %3224 = vmatmul.mubr.f32.gmra.mrb[0].mxu0 %v3029
      %v3225 = vpop.f32.mrb[0].mxu0
      %v3226 = vadd.f32 0.0, %v3225
      %v3227 = vpop.f32.mrb[0].mxu0
      %3228 = vmatprep.mubr.f32.mxu0 0.0
      %3229 = vmatmul.mubr.f32.gmra.mrb[0].mxu0 %v3032
      %v3230 = vpop.f32.mrb[0].mxu0
      %v3231 = vadd.f32 0.0, %v3230
      %v3232 = vpop.f32.mrb[0].mxu0
      %3233 = vmatprep.mubr.f32.mxu0 0.0
      %3234 = vmatmul.mubr.f32.gmra.mrb[0].mxu0 %v3035
      %v3235 = vpop.f32.mrb[0].mxu0
      %v3236 = vadd.f32 0.0, %v3235
      %v3237 = vpop.f32.mrb[0].mxu0
      %3238 = vmatprep.mubr.f32.mxu0 0.0
      %3239 = vmatmul.mubr.f32.gmra.mrb[0].mxu0 %v3038
      %v3240 = vpop.f32.mrb[0].mxu0
      %v3241 = vadd.f32 0.0, %v3240
      %v3242 = vpop.f32.mrb[0].mxu0
      %3243 = vmatprep.mubr.f32.mxu0 0.0
      %3244 = vmatmul.mubr.f32.gmra.mrb[0].mxu0 %v3041
      %v3245 = vpop.f32.mrb[0].mxu0
      %v3246 = vadd.f32 0.0, %v3245
      %v3247 = vpop.f32.mrb[0].mxu0
      %3248 = vmatprep.mubr.f32.mxu0 0.0
      %3249 = vmatmul.mubr.f32.gmra.mrb[0].mxu0 %v3044
      %v3250 = vpop.f32.mrb[0].mxu0
      %v3251 = vadd.f32 0.0, %v3250
      %v3252 = vpop.f32.mrb[0].mxu0
      %3253 = vmatprep.mubr.f32.mxu0 0.0
      %3254 = vmatmul.mubr.f32.gmra.mrb[0].mxu0 %v3047
      %v3255 = vpop.f32.mrb[0].mxu0
      %v3256 = vadd.f32 0.0, %v3255
      %v3257 = vpop.f32.mrb[0].mxu0
      %3258 = vmatprep.mubr.f32.mxu0 0.0
      %3259 = vmatmul.mubr.f32.gmra.mrb[0].mxu0 %v3050
      %v3260 = vpop.f32.mrb[0].mxu0
      %v3261 = vadd.f32 0.0, %v3260
      %v3262 = vpop.f32.mrb[0].mxu0
      %3263 = vmatprep.mubr.f32.mxu0 0.0
      %3264 = vmatmul.mubr.f32.gmra.mrb[0].mxu0 %v3053
      %v3265 = vpop.f32.mrb[0].mxu0
      %v3266 = vadd.f32 0.0, %v3265
      %v3267 = vpop.f32.mrb[0].mxu0
      %3268 = vmatprep.mubr.f32.mxu0 0.0
      %3269 = vmatmul.mubr.f32.gmra.mrb[0].mxu0 %v3056
      %v3270 = vpop.f32.mrb[0].mxu0
      %v3271 = vadd.f32 0.0, %v3270
      %v3272 = vpop.f32.mrb[0].mxu0
      %3273 = vmatprep.mubr.f32.mxu0 0.0
      %3274 = vmatmul.mubr.f32.gmra.mrb[0].mxu0 %v3059
      %v3275 = vpop.f32.mrb[0].mxu0
      %v3276 = vadd.f32 0.0, %v3275
      %v3277 = vpop.f32.mrb[0].mxu0
      %3278 = vmatprep.mubr.f32.mxu0 0.0
      %3279 = vmatmul.mubr.f32.gmra.mrb[0].mxu0 %v3062
      %v3280 = vpop.f32.mrb[0].mxu0
      %v3281 = vadd.f32 0.0, %v3280
      %v3282 = vpop.f32.mrb[0].mxu0
      %3283 = vmatprep.mubr.f32.mxu0 0.0
      %3284 = vmatmul.mubr.f32.gmra.mrb[0].mxu0 %v3065
      %v3285 = vpop.f32.mrb[0].mxu0
      %v3286 = vadd.f32 0.0, %v3285
      %v3287 = vpop.f32.mrb[0].mxu0
      %3288 = vmatprep.mubr.f32.mxu0 0.0
      %3289 = vmatmul.mubr.f32.gmra.mrb[0].mxu0 %v3068
      %v3290 = vpop.f32.mrb[0].mxu0
      %v3291 = vadd.f32 0.0, %v3290
      %v3292 = vpop.f32.mrb[0].mxu0
      %3293 = vmatprep.mubr.f32.mxu0 0.0
      %3294 = vmatmul.mubr.f32.gmra.mrb[0].mxu0 %v3071
      %v3295 = vpop.f32.mrb[0].mxu0
      %v3296 = vadd.f32 0.0, %v3295
      %v3297 = vpop.f32.mrb[0].mxu0
      %3298 = vmatprep.mubr.f32.mxu0 0.0
      %3299 = vmatmul.mubr.f32.gmra.mrb[0].mxu0 %v3074
      %v3300 = vpop.f32.mrb[0].mxu0
      %v3301 = vadd.f32 0.0, %v3300
      %v3302 = vpop.f32.mrb[0].mxu0
      %3303 = vdwg.mxu0
      %v3304 = vadd.f32 %v2913, %v3146
      %v3305 = vadd.f32 %v2914, %v3151
      %v3306 = vadd.f32 %v2915, %v3156
      %v3307 = vadd.f32 %v2916, %v3161
      %v3308 = vadd.f32 %v2917, %v3166
      %v3309 = vadd.f32 %v2918, %v3171
      %v3310 = vadd.f32 %v2919, %v3176
      %v3311 = vadd.f32 %v2920, %v3181
      %v3312 = vadd.f32 %v2921, %v3186
      %v3313 = vadd.f32 %v2922, %v3191
      %v3314 = vadd.f32 %v2923, %v3196
      %v3315 = vadd.f32 %v2924, %v3201
      %v3316 = vadd.f32 %v2925, %v3206
      %v3317 = vadd.f32 %v2926, %v3211
      %v3318 = vadd.f32 %v2927, %v3216
      %v3319 = vadd.f32 %v2928, %v3221
      %v3320 = vadd.f32 %v2929, %v3226
      %v3321 = vadd.f32 %v2930, %v3231
      %v3322 = vadd.f32 %v2931, %v3236
      %v3323 = vadd.f32 %v2932, %v3241
      %v3324 = vadd.f32 %v2933, %v3246
      %v3325 = vadd.f32 %v2934, %v3251
      %v3326 = vadd.f32 %v2935, %v3256
      %v3327 = vadd.f32 %v2936, %v3261
      %v3328 = vadd.f32 %v2937, %v3266
      %v3329 = vadd.f32 %v2938, %v3271
      %v3330 = vadd.f32 %v2939, %v3276
      %v3331 = vadd.f32 %v2940, %v3281
      %v3332 = vadd.f32 %v2941, %v3286
      %v3333 = vadd.f32 %v2942, %v3291
      %v3334 = vadd.f32 %v2943, %v3296
      %v3335 = vadd.f32 %v2944, %v3301
      %v3336 = vld [vmem:[%s2553 + $0x2] sm:$0xff]
      %v3337 = vld [vmem:[%s2553 + $0xa] sm:$0xff]
      %v3338 = vld [vmem:[%s2553 + $0x1a] sm:$0xff]
      %v3339 = vld [vmem:[%s2553 + $0x22] sm:$0xff]
      %v3340 = vld [vmem:[%s2553 + $0x32] sm:$0xff]
      %v3341 = vld [vmem:[%s2553 + $0x3a] sm:$0xff]
      %v3342 = vld [vmem:[%s2553 + $0x4a] sm:$0xff]
      %v3343 = vld [vmem:[%s2553 + $0x52] sm:$0xff]
      %v3344 = vld [vmem:[%s2553 + $0x62] sm:$0xff]
      %v3345 = vld [vmem:[%s2553 + $0x6a] sm:$0xff]
      %v3346 = vld [vmem:[%s2553 + $0x7a] sm:$0xff]
      %v3347 = vld [vmem:[%s2553 + $0x82] sm:$0xff]
      %v3348 = vld [vmem:[%s2553 + $0x92] sm:$0xff]
      %v3349 = vld [vmem:[%s2553 + $0x9a] sm:$0xff]
      %v3350 = vld [vmem:[%s2553 + $0xaa] sm:$0xff]
      %v3351 = vld [vmem:[%s2553 + $0xb2] sm:$0xff]
      %v3352 = vld [vmem:[%s2553 + $0xc2] sm:$0xff]
      %v3353 = vld [vmem:[%s2553 + $0xca] sm:$0xff]
      %v3354 = vld [vmem:[%s2553 + $0xda] sm:$0xff]
      %v3355 = vld [vmem:[%s2553 + $0xe2] sm:$0xff]
      %v3356 = vld [vmem:[%s2553 + $0xf2] sm:$0xff]
      %v3357 = vld [vmem:[%s2553 + $0xfa] sm:$0xff]
      %v3358 = vld [vmem:[%s2553 + $0x10a] sm:$0xff]
      %v3359 = vld [vmem:[%s2553 + $0x112] sm:$0xff]
      %v3360 = vld [vmem:[%s2553 + $0x122] sm:$0xff]
      %v3361 = vld [vmem:[%s2553 + $0x12a] sm:$0xff]
      %v3362 = vld [vmem:[%s2553 + $0x13a] sm:$0xff]
      %v3363 = vld [vmem:[%s2553 + $0x142] sm:$0xff]
      %v3364 = vld [vmem:[%s2553 + $0x152] sm:$0xff]
      %v3365 = vld [vmem:[%s2553 + $0x15a] sm:$0xff]
      %v3366 = vld [vmem:[%s2553 + $0x16a] sm:$0xff]
      %v3367 = vld [vmem:[%s2553 + $0x172] sm:$0xff]
      %s3368 = scalar_lea.vmem %s247, 16
      %v3369 = vld [vmem:[%s3368] sm:$0x3]
      %v3370 = vunpack.c.l.bf16 %v3369
      %v3372 = vsel %vm338, %v3336, 0
      %v3375 = vsel %vm338, %v3337, 0
      %v3378 = vsel %vm338, %v3338, 0
      %v3381 = vsel %vm338, %v3339, 0
      %v3384 = vsel %vm338, %v3340, 0
      %v3387 = vsel %vm338, %v3341, 0
      %v3390 = vsel %vm338, %v3342, 0
      %v3393 = vsel %vm338, %v3343, 0
      %v3396 = vsel %vm338, %v3344, 0
      %v3399 = vsel %vm338, %v3345, 0
      %v3402 = vsel %vm338, %v3346, 0
      %v3405 = vsel %vm338, %v3347, 0
      %v3408 = vsel %vm338, %v3348, 0
      %v3411 = vsel %vm338, %v3349, 0
      %v3414 = vsel %vm338, %v3350, 0
      %v3417 = vsel %vm338, %v3351, 0
      %v3420 = vsel %vm338, %v3352, 0
      %v3423 = vsel %vm338, %v3353, 0
      %v3426 = vsel %vm338, %v3354, 0
      %v3429 = vsel %vm338, %v3355, 0
      %v3432 = vsel %vm338, %v3356, 0
      %v3435 = vsel %vm338, %v3357, 0
      %v3438 = vsel %vm338, %v3358, 0
      %v3441 = vsel %vm338, %v3359, 0
      %v3444 = vsel %vm338, %v3360, 0
      %v3447 = vsel %vm338, %v3361, 0
      %v3450 = vsel %vm338, %v3362, 0
      %v3453 = vsel %vm338, %v3363, 0
      %v3456 = vsel %vm338, %v3364, 0
      %v3459 = vsel %vm338, %v3365, 0
      %v3462 = vsel %vm338, %v3366, 0
      %v3465 = vsel %vm338, %v3367, 0
      %v3468 = vsel %vm435, %v3370, 0
      %3470 = vmatprep.subr.mxu0 0.0
      %3471 = vmatpush1.msra.mxu0 %v3468
      %3472 = vmatprep.subr.mxu0 0.0
      %3473 = vmatpush1.msra.mxu0 0.0
      %3474 = vmatprep.subr.mxu0 0.0
      %3475 = vmatpush1.msra.mxu0 0.0
      %3476 = vmatprep.subr.mxu0 0.0
      %3477 = vmatpush1.msra.mxu0 0.0
      %3478 = vmatprep.subr.mxu0 0.0
      %3479 = vmatpush1.msra.mxu0 0.0
      %3480 = vmatprep.subr.mxu0 0.0
      %3481 = vmatpush1.msra.mxu0 0.0
      %3482 = vmatprep.subr.mxu0 0.0
      %3483 = vmatpush1.msra.mxu0 0.0
      %3484 = vmatprep.subr.mxu0 0.0
      %3485 = vmatpush1.msra.mxu0 0.0
      %3486 = vmatprep.subr.mxu0 0.0
      %3487 = vmatpush1.msra.mxu0 0.0
      %3488 = vmatprep.subr.mxu0 0.0
      %3489 = vmatpush1.msra.mxu0 0.0
      %3490 = vmatprep.subr.mxu0 0.0
      %3491 = vmatpush1.msra.mxu0 0.0
      %3492 = vmatprep.subr.mxu0 0.0
      %3493 = vmatpush1.msra.mxu0 0.0
      %3494 = vmatprep.subr.mxu0 0.0
      %3495 = vmatpush1.msra.mxu0 0.0
      %3496 = vmatprep.subr.mxu0 0.0
      %3497 = vmatpush1.msra.mxu0 0.0
      %3498 = vmatprep.subr.mxu0 0.0
      %3499 = vmatpush1.msra.mxu0 0.0
      %3500 = vmatprep.subr.mxu0 0.0
      %3501 = vmatpush1.msra.mxu0 0.0
      %3502 = vmatprep.subr.mxu0 0.0
      %3503 = vmatpush1.msra.mxu0 0.0
      %3504 = vmatprep.subr.mxu0 0.0
      %3505 = vmatpush1.msra.mxu0 0.0
      %3506 = vmatprep.subr.mxu0 0.0
      %3507 = vmatpush1.msra.mxu0 0.0
      %3508 = vmatprep.subr.mxu0 0.0
      %3509 = vmatpush1.msra.mxu0 0.0
      %3510 = vmatprep.subr.mxu0 0.0
      %3511 = vmatpush1.msra.mxu0 0.0
      %3512 = vmatprep.subr.mxu0 0.0
      %3513 = vmatpush1.msra.mxu0 0.0
      %3514 = vmatprep.subr.mxu0 0.0
      %3515 = vmatpush1.msra.mxu0 0.0
      %3516 = vmatprep.subr.mxu0 0.0
      %3517 = vmatpush1.msra.mxu0 0.0
      %3518 = vmatprep.subr.mxu0 0.0
      %3519 = vmatpush1.msra.mxu0 0.0
      %3520 = vmatprep.subr.mxu0 0.0
      %3521 = vmatpush1.msra.mxu0 0.0
      %3522 = vmatprep.subr.mxu0 0.0
      %3523 = vmatpush1.msra.mxu0 0.0
      %3524 = vmatprep.subr.mxu0 0.0
      %3525 = vmatpush1.msra.mxu0 0.0
      %3526 = vmatprep.subr.mxu0 0.0
      %3527 = vmatpush1.msra.mxu0 0.0
      %3528 = vmatprep.subr.mxu0 0.0
      %3529 = vmatpush1.msra.mxu0 0.0
      %3530 = vmatprep.subr.mxu0 0.0
      %3531 = vmatpush1.msra.mxu0 0.0
      %3532 = vmatprep.subr.mxu0 0.0
      %3533 = vmatpush1.msra.mxu0 0.0
      %3534 = vmatprep.mubr.f32.mxu0 0.0
      %3535 = vmatmul.mubr.f32.gmra.mrb[0].mxu0 %v3372
      %v3536 = vpop.f32.mrb[0].mxu0
      %v3537 = vadd.f32 0.0, %v3536
      %v3538 = vpop.f32.mrb[0].mxu0
      %3539 = vmatprep.mubr.f32.mxu0 0.0
      %3540 = vmatmul.mubr.f32.gmra.mrb[0].mxu0 %v3375
      %v3541 = vpop.f32.mrb[0].mxu0
      %v3542 = vadd.f32 0.0, %v3541
      %v3543 = vpop.f32.mrb[0].mxu0
      %3544 = vmatprep.mubr.f32.mxu0 0.0
      %3545 = vmatmul.mubr.f32.gmra.mrb[0].mxu0 %v3378
      %v3546 = vpop.f32.mrb[0].mxu0
      %v3547 = vadd.f32 0.0, %v3546
      %v3548 = vpop.f32.mrb[0].mxu0
      %3549 = vmatprep.mubr.f32.mxu0 0.0
      %3550 = vmatmul.mubr.f32.gmra.mrb[0].mxu0 %v3381
      %v3551 = vpop.f32.mrb[0].mxu0
      %v3552 = vadd.f32 0.0, %v3551
      %v3553 = vpop.f32.mrb[0].mxu0
      %3554 = vmatprep.mubr.f32.mxu0 0.0
      %3555 = vmatmul.mubr.f32.gmra.mrb[0].mxu0 %v3384
      %v3556 = vpop.f32.mrb[0].mxu0
      %v3557 = vadd.f32 0.0, %v3556
      %v3558 = vpop.f32.mrb[0].mxu0
      %3559 = vmatprep.mubr.f32.mxu0 0.0
      %3560 = vmatmul.mubr.f32.gmra.mrb[0].mxu0 %v3387
      %v3561 = vpop.f32.mrb[0].mxu0
      %v3562 = vadd.f32 0.0, %v3561
      %v3563 = vpop.f32.mrb[0].mxu0
      %3564 = vmatprep.mubr.f32.mxu0 0.0
      %3565 = vmatmul.mubr.f32.gmra.mrb[0].mxu0 %v3390
      %v3566 = vpop.f32.mrb[0].mxu0
      %v3567 = vadd.f32 0.0, %v3566
      %v3568 = vpop.f32.mrb[0].mxu0
      %3569 = vmatprep.mubr.f32.mxu0 0.0
      %3570 = vmatmul.mubr.f32.gmra.mrb[0].mxu0 %v3393
      %v3571 = vpop.f32.mrb[0].mxu0
      %v3572 = vadd.f32 0.0, %v3571
      %v3573 = vpop.f32.mrb[0].mxu0
      %3574 = vmatprep.mubr.f32.mxu0 0.0
      %3575 = vmatmul.mubr.f32.gmra.mrb[0].mxu0 %v3396
      %v3576 = vpop.f32.mrb[0].mxu0
      %v3577 = vadd.f32 0.0, %v3576
      %v3578 = vpop.f32.mrb[0].mxu0
      %3579 = vmatprep.mubr.f32.mxu0 0.0
      %3580 = vmatmul.mubr.f32.gmra.mrb[0].mxu0 %v3399
      %v3581 = vpop.f32.mrb[0].mxu0
      %v3582 = vadd.f32 0.0, %v3581
      %v3583 = vpop.f32.mrb[0].mxu0
      %3584 = vmatprep.mubr.f32.mxu0 0.0
      %3585 = vmatmul.mubr.f32.gmra.mrb[0].mxu0 %v3402
      %v3586 = vpop.f32.mrb[0].mxu0
      %v3587 = vadd.f32 0.0, %v3586
      %v3588 = vpop.f32.mrb[0].mxu0
      %3589 = vmatprep.mubr.f32.mxu0 0.0
      %3590 = vmatmul.mubr.f32.gmra.mrb[0].mxu0 %v3405
      %v3591 = vpop.f32.mrb[0].mxu0
      %v3592 = vadd.f32 0.0, %v3591
      %v3593 = vpop.f32.mrb[0].mxu0
      %3594 = vmatprep.mubr.f32.mxu0 0.0
      %3595 = vmatmul.mubr.f32.gmra.mrb[0].mxu0 %v3408
      %v3596 = vpop.f32.mrb[0].mxu0
      %v3597 = vadd.f32 0.0, %v3596
      %v3598 = vpop.f32.mrb[0].mxu0
      %3599 = vmatprep.mubr.f32.mxu0 0.0
      %3600 = vmatmul.mubr.f32.gmra.mrb[0].mxu0 %v3411
      %v3601 = vpop.f32.mrb[0].mxu0
      %v3602 = vadd.f32 0.0, %v3601
      %v3603 = vpop.f32.mrb[0].mxu0
      %3604 = vmatprep.mubr.f32.mxu0 0.0
      %3605 = vmatmul.mubr.f32.gmra.mrb[0].mxu0 %v3414
      %v3606 = vpop.f32.mrb[0].mxu0
      %v3607 = vadd.f32 0.0, %v3606
      %v3608 = vpop.f32.mrb[0].mxu0
      %3609 = vmatprep.mubr.f32.mxu0 0.0
      %3610 = vmatmul.mubr.f32.gmra.mrb[0].mxu0 %v3417
      %v3611 = vpop.f32.mrb[0].mxu0
      %v3612 = vadd.f32 0.0, %v3611
      %v3613 = vpop.f32.mrb[0].mxu0
      %3614 = vmatprep.mubr.f32.mxu0 0.0
      %3615 = vmatmul.mubr.f32.gmra.mrb[0].mxu0 %v3420
      %v3616 = vpop.f32.mrb[0].mxu0
      %v3617 = vadd.f32 0.0, %v3616
      %v3618 = vpop.f32.mrb[0].mxu0
      %3619 = vmatprep.mubr.f32.mxu0 0.0
      %3620 = vmatmul.mubr.f32.gmra.mrb[0].mxu0 %v3423
      %v3621 = vpop.f32.mrb[0].mxu0
      %v3622 = vadd.f32 0.0, %v3621
      %v3623 = vpop.f32.mrb[0].mxu0
      %3624 = vmatprep.mubr.f32.mxu0 0.0
      %3625 = vmatmul.mubr.f32.gmra.mrb[0].mxu0 %v3426
      %v3626 = vpop.f32.mrb[0].mxu0
      %v3627 = vadd.f32 0.0, %v3626
      %v3628 = vpop.f32.mrb[0].mxu0
      %3629 = vmatprep.mubr.f32.mxu0 0.0
      %3630 = vmatmul.mubr.f32.gmra.mrb[0].mxu0 %v3429
      %v3631 = vpop.f32.mrb[0].mxu0
      %v3632 = vadd.f32 0.0, %v3631
      %v3633 = vpop.f32.mrb[0].mxu0
      %3634 = vmatprep.mubr.f32.mxu0 0.0
      %3635 = vmatmul.mubr.f32.gmra.mrb[0].mxu0 %v3432
      %v3636 = vpop.f32.mrb[0].mxu0
      %v3637 = vadd.f32 0.0, %v3636
      %v3638 = vpop.f32.mrb[0].mxu0
      %3639 = vmatprep.mubr.f32.mxu0 0.0
      %3640 = vmatmul.mubr.f32.gmra.mrb[0].mxu0 %v3435
      %v3641 = vpop.f32.mrb[0].mxu0
      %v3642 = vadd.f32 0.0, %v3641
      %v3643 = vpop.f32.mrb[0].mxu0
      %3644 = vmatprep.mubr.f32.mxu0 0.0
      %3645 = vmatmul.mubr.f32.gmra.mrb[0].mxu0 %v3438
      %v3646 = vpop.f32.mrb[0].mxu0
      %v3647 = vadd.f32 0.0, %v3646
      %v3648 = vpop.f32.mrb[0].mxu0
      %3649 = vmatprep.mubr.f32.mxu0 0.0
      %3650 = vmatmul.mubr.f32.gmra.mrb[0].mxu0 %v3441
      %v3651 = vpop.f32.mrb[0].mxu0
      %v3652 = vadd.f32 0.0, %v3651
      %v3653 = vpop.f32.mrb[0].mxu0
      %3654 = vmatprep.mubr.f32.mxu0 0.0
      %3655 = vmatmul.mubr.f32.gmra.mrb[0].mxu0 %v3444
      %v3656 = vpop.f32.mrb[0].mxu0
      %v3657 = vadd.f32 0.0, %v3656
      %v3658 = vpop.f32.mrb[0].mxu0
      %3659 = vmatprep.mubr.f32.mxu0 0.0
      %3660 = vmatmul.mubr.f32.gmra.mrb[0].mxu0 %v3447
      %v3661 = vpop.f32.mrb[0].mxu0
      %v3662 = vadd.f32 0.0, %v3661
      %v3663 = vpop.f32.mrb[0].mxu0
      %3664 = vmatprep.mubr.f32.mxu0 0.0
      %3665 = vmatmul.mubr.f32.gmra.mrb[0].mxu0 %v3450
      %v3666 = vpop.f32.mrb[0].mxu0
      %v3667 = vadd.f32 0.0, %v3666
      %v3668 = vpop.f32.mrb[0].mxu0
      %3669 = vmatprep.mubr.f32.mxu0 0.0
      %3670 = vmatmul.mubr.f32.gmra.mrb[0].mxu0 %v3453
      %v3671 = vpop.f32.mrb[0].mxu0
      %v3672 = vadd.f32 0.0, %v3671
      %v3673 = vpop.f32.mrb[0].mxu0
      %3674 = vmatprep.mubr.f32.mxu0 0.0
      %3675 = vmatmul.mubr.f32.gmra.mrb[0].mxu0 %v3456
      %v3676 = vpop.f32.mrb[0].mxu0
      %v3677 = vadd.f32 0.0, %v3676
      %v3678 = vpop.f32.mrb[0].mxu0
      %3679 = vmatprep.mubr.f32.mxu0 0.0
      %3680 = vmatmul.mubr.f32.gmra.mrb[0].mxu0 %v3459
      %v3681 = vpop.f32.mrb[0].mxu0
      %v3682 = vadd.f32 0.0, %v3681
      %v3683 = vpop.f32.mrb[0].mxu0
      %3684 = vmatprep.mubr.f32.mxu0 0.0
      %3685 = vmatmul.mubr.f32.gmra.mrb[0].mxu0 %v3462
      %v3686 = vpop.f32.mrb[0].mxu0
      %v3687 = vadd.f32 0.0, %v3686
      %v3688 = vpop.f32.mrb[0].mxu0
      %3689 = vmatprep.mubr.f32.mxu0 0.0
      %3690 = vmatmul.mubr.f32.gmra.mrb[0].mxu0 %v3465
      %v3691 = vpop.f32.mrb[0].mxu0
      %v3692 = vadd.f32 0.0, %v3691
      %v3693 = vpop.f32.mrb[0].mxu0
      %3694 = vdwg.mxu0
      %v3695 = vadd.f32 %v3304, %v3537
      %v3696 = vadd.f32 %v3305, %v3542
      %v3697 = vadd.f32 %v3306, %v3547
      %v3698 = vadd.f32 %v3307, %v3552
      %v3699 = vadd.f32 %v3308, %v3557
      %v3700 = vadd.f32 %v3309, %v3562
      %v3701 = vadd.f32 %v3310, %v3567
      %v3702 = vadd.f32 %v3311, %v3572
      %v3703 = vadd.f32 %v3312, %v3577
      %v3704 = vadd.f32 %v3313, %v3582
      %v3705 = vadd.f32 %v3314, %v3587
      %v3706 = vadd.f32 %v3315, %v3592
      %v3707 = vadd.f32 %v3316, %v3597
      %v3708 = vadd.f32 %v3317, %v3602
      %v3709 = vadd.f32 %v3318, %v3607
      %v3710 = vadd.f32 %v3319, %v3612
      %v3711 = vadd.f32 %v3320, %v3617
      %v3712 = vadd.f32 %v3321, %v3622
      %v3713 = vadd.f32 %v3322, %v3627
      %v3714 = vadd.f32 %v3323, %v3632
      %v3715 = vadd.f32 %v3324, %v3637
      %v3716 = vadd.f32 %v3325, %v3642
      %v3717 = vadd.f32 %v3326, %v3647
      %v3718 = vadd.f32 %v3327, %v3652
      %v3719 = vadd.f32 %v3328, %v3657
      %v3720 = vadd.f32 %v3329, %v3662
      %v3721 = vadd.f32 %v3330, %v3667
      %v3722 = vadd.f32 %v3331, %v3672
      %v3723 = vadd.f32 %v3332, %v3677
      %v3724 = vadd.f32 %v3333, %v3682
      %v3725 = vadd.f32 %v3334, %v3687
      %v3726 = vadd.f32 %v3335, %v3692
      %3727 = vst [vmem:[%s255] sm:$0xff] %v3695
      %3728 = vst [vmem:[%s255 + $0x8] sm:$0xff] %v3696
      %3729 = vst [vmem:[%s255 + $0x10] sm:$0xff] %v3697
      %3730 = vst [vmem:[%s255 + $0x18] sm:$0xff] %v3698
      %3731 = vst [vmem:[%s255 + $0x20] sm:$0xff] %v3699
      %3732 = vst [vmem:[%s255 + $0x28] sm:$0xff] %v3700
      %3733 = vst [vmem:[%s255 + $0x30] sm:$0xff] %v3701
      %3734 = vst [vmem:[%s255 + $0x38] sm:$0xff] %v3702
      %3735 = vst [vmem:[%s255 + $0x40] sm:$0xff] %v3703
      %3736 = vst [vmem:[%s255 + $0x48] sm:$0xff] %v3704
      %3737 = vst [vmem:[%s255 + $0x50] sm:$0xff] %v3705
      %3738 = vst [vmem:[%s255 + $0x58] sm:$0xff] %v3706
      %3739 = vst [vmem:[%s255 + $0x60] sm:$0xff] %v3707
      %3740 = vst [vmem:[%s255 + $0x68] sm:$0xff] %v3708
      %3741 = vst [vmem:[%s255 + $0x70] sm:$0xff] %v3709
      %3742 = vst [vmem:[%s255 + $0x78] sm:$0xff] %v3710
      %3743 = vst [vmem:[%s255 + $0x80] sm:$0xff] %v3711
      %3744 = vst [vmem:[%s255 + $0x88] sm:$0xff] %v3712
      %3745 = vst [vmem:[%s255 + $0x90] sm:$0xff] %v3713
      %3746 = vst [vmem:[%s255 + $0x98] sm:$0xff] %v3714
      %3747 = vst [vmem:[%s255 + $0xa0] sm:$0xff] %v3715
      %3748 = vst [vmem:[%s255 + $0xa8] sm:$0xff] %v3716
      %3749 = vst [vmem:[%s255 + $0xb0] sm:$0xff] %v3717
      %3750 = vst [vmem:[%s255 + $0xb8] sm:$0xff] %v3718
      %3751 = vst [vmem:[%s255 + $0xc0] sm:$0xff] %v3719
      %3752 = vst [vmem:[%s255 + $0xc8] sm:$0xff] %v3720
      %3753 = vst [vmem:[%s255 + $0xd0] sm:$0xff] %v3721
      %3754 = vst [vmem:[%s255 + $0xd8] sm:$0xff] %v3722
      %3755 = vst [vmem:[%s255 + $0xe0] sm:$0xff] %v3723
      %3756 = vst [vmem:[%s255 + $0xe8] sm:$0xff] %v3724
      %3757 = vst [vmem:[%s255 + $0xf0] sm:$0xff] %v3725
      %3758 = vst [vmem:[%s255 + $0xf8] sm:$0xff] %v3726
      %v3759 = vadd.f32 %v3695, %v3696
      %v3760 = vadd.f32 %v3759, %v3697
      %v3761 = vadd.f32 %v3760, %v3698
      %v3762 = vadd.f32 %v3761, %v3699
      %v3763 = vadd.f32 %v3762, %v3700
      %v3764 = vadd.f32 %v3763, %v3701
      %v3765 = vadd.f32 %v3764, %v3702
      %v3766 = vadd.f32 %v3765, %v3703
      %v3767 = vadd.f32 %v3766, %v3704
      %v3768 = vadd.f32 %v3767, %v3705
      %v3769 = vadd.f32 %v3768, %v3706
      %v3770 = vadd.f32 %v3769, %v3707
      %v3771 = vadd.f32 %v3770, %v3708
      %v3772 = vadd.f32 %v3771, %v3709
      %v3773 = vadd.f32 %v3772, %v3710
      %v3774 = vadd.f32 %v3773, %v3711
      %v3775 = vadd.f32 %v3774, %v3712
      %v3776 = vadd.f32 %v3775, %v3713
      %v3777 = vadd.f32 %v3776, %v3714
      %v3778 = vadd.f32 %v3777, %v3715
      %v3779 = vadd.f32 %v3778, %v3716
      %v3780 = vadd.f32 %v3779, %v3717
      %v3781 = vadd.f32 %v3780, %v3718
      %v3782 = vadd.f32 %v3781, %v3719
      %v3783 = vadd.f32 %v3782, %v3720
      %v3784 = vadd.f32 %v3783, %v3721
      %v3785 = vadd.f32 %v3784, %v3722
      %v3786 = vadd.f32 %v3785, %v3723
      %v3787 = vadd.f32 %v3786, %v3724
      %v3788 = vadd.f32 %v3787, %v3725
      %v3789 = vadd.f32 %v3788, %v3726
      %v3790 = vrot.slane %v3789, 4
      %v3791 = vadd.f32 %v3789, %v3790
      %v3792 = vrot.slane %v3791, 2
      %v3793 = vadd.f32 %v3791, %v3792
      %v3794 = vrot.slane %v3793, 1
      %v3795 = vadd.f32 %v3793, %v3794
      %3796 = vst [vmem:[%s262] sm:$0x1] %v3795
      %v3797 = vmul.f32 %v3695, %v3695
      %v3798 = vmul.f32 %v3696, %v3696
      %v3799 = vmul.f32 %v3697, %v3697
      %v3800 = vmul.f32 %v3698, %v3698
      %v3801 = vmul.f32 %v3699, %v3699
      %v3802 = vmul.f32 %v3700, %v3700
      %v3803 = vmul.f32 %v3701, %v3701
      %v3804 = vmul.f32 %v3702, %v3702
      %v3805 = vmul.f32 %v3703, %v3703
      %v3806 = vmul.f32 %v3704, %v3704
      %v3807 = vmul.f32 %v3705, %v3705
      %v3808 = vmul.f32 %v3706, %v3706
      %v3809 = vmul.f32 %v3707, %v3707
      %v3810 = vmul.f32 %v3708, %v3708
      %v3811 = vmul.f32 %v3709, %v3709
      %v3812 = vmul.f32 %v3710, %v3710
      %v3813 = vmul.f32 %v3711, %v3711
      %v3814 = vmul.f32 %v3712, %v3712
      %v3815 = vmul.f32 %v3713, %v3713
      %v3816 = vmul.f32 %v3714, %v3714
      %v3817 = vmul.f32 %v3715, %v3715
      %v3818 = vmul.f32 %v3716, %v3716
      %v3819 = vmul.f32 %v3717, %v3717
      %v3820 = vmul.f32 %v3718, %v3718
      %v3821 = vmul.f32 %v3719, %v3719
      %v3822 = vmul.f32 %v3720, %v3720
      %v3823 = vmul.f32 %v3721, %v3721
      %v3824 = vmul.f32 %v3722, %v3722
      %v3825 = vmul.f32 %v3723, %v3723
      %v3826 = vmul.f32 %v3724, %v3724
      %v3827 = vmul.f32 %v3725, %v3725
      %v3828 = vmul.f32 %v3726, %v3726
      %v3829 = vadd.f32 %v3797, %v3798
      %v3830 = vadd.f32 %v3829, %v3799
      %v3831 = vadd.f32 %v3830, %v3800
      %v3832 = vadd.f32 %v3831, %v3801
      %v3833 = vadd.f32 %v3832, %v3802
      %v3834 = vadd.f32 %v3833, %v3803
      %v3835 = vadd.f32 %v3834, %v3804
      %v3836 = vadd.f32 %v3835, %v3805
      %v3837 = vadd.f32 %v3836, %v3806
      %v3838 = vadd.f32 %v3837, %v3807
      %v3839 = vadd.f32 %v3838, %v3808
      %v3840 = vadd.f32 %v3839, %v3809
      %v3841 = vadd.f32 %v3840, %v3810
      %v3842 = vadd.f32 %v3841, %v3811
      %v3843 = vadd.f32 %v3842, %v3812
      %v3844 = vadd.f32 %v3843, %v3813
      %v3845 = vadd.f32 %v3844, %v3814
      %v3846 = vadd.f32 %v3845, %v3815
      %v3847 = vadd.f32 %v3846, %v3816
      %v3848 = vadd.f32 %v3847, %v3817
      %v3849 = vadd.f32 %v3848, %v3818
      %v3850 = vadd.f32 %v3849, %v3819
      %v3851 = vadd.f32 %v3850, %v3820
      %v3852 = vadd.f32 %v3851, %v3821
      %v3853 = vadd.f32 %v3852, %v3822
      %v3854 = vadd.f32 %v3853, %v3823
      %v3855 = vadd.f32 %v3854, %v3824
      %v3856 = vadd.f32 %v3855, %v3825
      %v3857 = vadd.f32 %v3856, %v3826
      %v3858 = vadd.f32 %v3857, %v3827
      %v3859 = vadd.f32 %v3858, %v3828
      %v3860 = vrot.slane %v3859, 4
      %v3861 = vadd.f32 %v3859, %v3860
      %v3862 = vrot.slane %v3861, 2
      %v3863 = vadd.f32 %v3861, %v3862
      %v3864 = vrot.slane %v3863, 1
      %v3865 = vadd.f32 %v3863, %v3864
      %3866 = vst [vmem:[%s268] sm:$0x1] %v3865
      %s3867 = smul.u32 32, %s20
      %p3868 = scmp.lt.s32.totalorder %s3867, 63
      %s3869 = scalar_select %p3868, %s3867, 63
      %p3870 = scmp.lt.s32.totalorder %s21, 0
      %s3871 = scalar_select %p3870, %s21, 0
      %s3872 = sadd.s32 %s3871, %s3869
      %s3873 = smul.addr %s3872, 8
      %s3874 = scalar_lea.vmem %s2, %s3873
      %p3875 = scmp.lt.s32.totalorder %s20, 1
      %s3876 = scalar_select %p3875, %s20, 1
      %p3877 = scmp.lt.s32.totalorder %s21, 0
      %s3878 = scalar_select %p3877, %s21, 0
      %s3879 = sadd.s32 %s3878, %s3876
      %s3880 = scalar_lea.vmem %s3, %s3879
      %p3881 = scmp.lt.s32.totalorder %s20, 1
      %s3882 = scalar_select %p3881, %s20, 1
      %p3883 = scmp.lt.s32.totalorder %s21, 0
      %s3884 = scalar_select %p3883, %s21, 0
      %s3885 = sadd.s32 %s3884, %s3882
      %s3886 = scalar_lea.vmem %s4, %s3885
      // Predicated region
      $region29: #{dorefa_conv_bn_relu.2} parent=27 // pred_check
        %p3887 = pneg %p100
      $region30: #{dorefa_conv_bn_relu.2} parent=27 // pred_check_branch
        %3889 = sbr.rel (%p3887) target = $region32
      $region31: #{dorefa_conv_bn_relu.2} parent=27 // pred_region
        %s3890 = smul.u32 32, %s20
      $region32: #{dorefa_conv_bn_relu.2} parent=27 // pred_fallthru
        _
      // Predicated region
      $region33: #{dorefa_conv_bn_relu.2} parent=27 // pred_check
        %p3891 = pneg %p128
      $region34: #{dorefa_conv_bn_relu.2} parent=27 // pred_check_branch
        %3893 = sbr.rel (%p3891) target = $region36
      $region35: #{dorefa_conv_bn_relu.2} parent=27 // pred_region
        _
      $region36: #{dorefa_conv_bn_relu.2} parent=27 // pred_fallthru
        _
      // Predicated region
      $region37: #{dorefa_conv_bn_relu.2} parent=27 // pred_check
        %p3894 = pneg %p156
      $region38: #{dorefa_conv_bn_relu.2} parent=27 // pred_check_branch
        %3896 = sbr.rel (%p3894) target = $region40
      $region39: #{dorefa_conv_bn_relu.2} parent=27 // pred_region
        _
      $region40: #{dorefa_conv_bn_relu.2} parent=27 // pred_fallthru
        _
    $region28: #{dorefa_conv_bn_relu.2} parent=5 // pred_fallthru
      _
    %p3897 = scmp.le.s32.totalorder 2, %s11
    // Predicated region
    $region41: #{dorefa_conv_bn_relu.2} parent=5 // pred_check
      %p3898 = pneg %p3897
    $region42: #{dorefa_conv_bn_relu.2} parent=5 // pred_check_branch
      %3900 = sbr.rel (%p3898) target = $region44
    $region43: #{dorefa_conv_bn_relu.2} parent=5 // pred_region
      %s3901 = ssub.s32 %s11, 2
      // Predicated region
      $region45: #{dorefa_conv_bn_relu.2} parent=43 // pred_check
        %p3902 = pneg %p106
      $region46: #{dorefa_conv_bn_relu.2} parent=43 // pred_check_branch
        %3904 = sbr.rel (%p3902) target = $region48
      $region47: #{dorefa_conv_bn_relu.2} parent=43 // pred_region
        %s3905 = smul.u32 32, %s22
        %p3906 = scmp.lt.s32.totalorder %s3905, 63
        %s3907 = scalar_select %p3906, %s3905, 63
        %p3908 = scmp.lt.s32.totalorder %s23, 0
        %s3909 = scalar_select %p3908, %s23, 0
        %s3910 = sadd.s32 %s3909, %s3907
        %s3911 = smul.addr %s3910, 8
        %s3912 = scalar_lea.vmem %s2, %s3911
      $region48: #{dorefa_conv_bn_relu.2} parent=43 // pred_fallthru
        _
      // Predicated region
      $region49: #{dorefa_conv_bn_relu.2} parent=43 // pred_check
        %p3913 = pneg %p134
      $region50: #{dorefa_conv_bn_relu.2} parent=43 // pred_check_branch
        %3915 = sbr.rel (%p3913) target = $region52
      $region51: #{dorefa_conv_bn_relu.2} parent=43 // pred_region
        %p3916 = scmp.lt.s32.totalorder %s22, 1
        %s3917 = scalar_select %p3916, %s22, 1
        %p3918 = scmp.lt.s32.totalorder %s23, 0
        %s3919 = scalar_select %p3918, %s23, 0
        %s3920 = sadd.s32 %s3919, %s3917
        %s3921 = scalar_lea.vmem %s3, %s3920
      $region52: #{dorefa_conv_bn_relu.2} parent=43 // pred_fallthru
        _
      // Predicated region
      $region53: #{dorefa_conv_bn_relu.2} parent=43 // pred_check
        %p3922 = pneg %p162
      $region54: #{dorefa_conv_bn_relu.2} parent=43 // pred_check_branch
        %3924 = sbr.rel (%p3922) target = $region56
      $region55: #{dorefa_conv_bn_relu.2} parent=43 // pred_region
        %p3925 = scmp.lt.s32.totalorder %s22, 1
        %s3926 = scalar_select %p3925, %s22, 1
        %p3927 = scmp.lt.s32.totalorder %s23, 0
        %s3928 = scalar_select %p3927, %s23, 0
        %s3929 = sadd.s32 %s3928, %s3926
        %s3930 = scalar_lea.vmem %s4, %s3929
      $region56: #{dorefa_conv_bn_relu.2} parent=43 // pred_fallthru
        _
    $region44: #{dorefa_conv_bn_relu.2} parent=5 // pred_fallthru
      _
  $region6: #{dorefa_conv_bn_relu.2} parent=0 // loop_footer
    %s15 = sadd.s32 1, %s11
  $region7: #{dorefa_conv_bn_relu.2} parent=0 // loop_footer_branch
    %10 = sbr.rel target = $region3
  $region8: #{dorefa_conv_bn_relu.2} parent=0 // loop_exit
    _

</llo_original>
